<compile_context>
chip_gen: v6e
topology: v6e:2x2x1
jax: 0.10.0
libtpu: 0.0.40
codegen_flags: <defaults>
</compile_context>

<pallas_src>
import jax
import jax.numpy as jnp
from jax.experimental import pallas as pl
from jax.experimental.pallas import tpu as pltpu


K = 7                 # spatial conv kernel size
P = K // 2            # padding = 3
_UNROLL_C_MAX = 32    # unroll channel loops up to this C; jnp reductions above
_ROW_CHUNK = 32       # conv row-chunk so partial accumulators stay register-resident


def _round_up(x, m):
    return (x + m - 1) // m * m


def _sublane_multiple(dtype):
    # second-to-last dim packing: f32 -> 8, bf16 -> 16, int8 -> 32
    return max(8, 32 // jnp.dtype(dtype).itemsize)


def _vmem_tile_bytes(rows, cols, dtype):
    it = jnp.dtype(dtype).itemsize
    return _round_up(rows, _sublane_multiple(dtype)) * _round_up(cols, 128) * it


def _make_kernel(Nb, C, H, W, has_pre, x_dtype):
    """Build the SpatialGate kernel body for static shapes (Nb batch items / block)."""

    def kernel(*refs):
        if has_pre:
            params_ref, x_ref, pre_ref, y_ref, att_ref, pad_ref, flat_ref = refs
        else:
            params_ref, x_ref, y_ref, att_ref, pad_ref, flat_ref = refs
            pre_ref = None

        # Hoist the 98 conv weights + bias: one SMEM read each per grid step
        # instead of per batch item.
        w = [params_ref[i] for i in range(2 * K * K)]
        bias = params_ref[2 * K * K]

        # Zero the padded conv scratch once per grid step.  Gating this on
        # pl.program_id(0) == 0 would be unsafe on multi-TC parts: with
        # "parallel" semantics the second core never executes step 0 and would
        # read an uninitialized border.  Cost is only 2*ceil((H+2P)/8)*ceil(Ws/128)
        # vector stores per step, amortized over the Nb packed items.
        pad_ref[...] = jnp.zeros_like(pad_ref)

        for b in range(Nb):
            # ---- ChannelPool on lane-dense (C, H*W) data: max in native dtype,
            #      channel sum in f32 (1/C is folded into the conv weights).
            if C <= _UNROLL_C_MAX:
                x0 = x_ref[b, 0:1, :]
                cmax = x0
                csum = x0.astype(jnp.float32)
                for c in range(1, C):
                    xc = x_ref[b, c:c + 1, :]
                    cmax = jnp.maximum(cmax, xc)
                    csum = csum + xc.astype(jnp.float32)
            else:
                xb = x_ref[b]                                     # (C, HW)
                cmax = jnp.max(xb, axis=0, keepdims=True)
                csum = jnp.sum(xb, axis=0, keepdims=True, dtype=jnp.float32)

            flat_ref[0:1, :] = cmax.astype(jnp.float32)
            flat_ref[1:2, :] = csum

            # ---- Scatter the two pooled planes into the zero-bordered spatial
            #      scratch (synthesizes the conv's zero padding): H small
            #      ref->ref row copies per plane, O(1) vregs each.
            for h in range(H):
                pad_ref[0, P + h:P + h + 1, P:P + W] = flat_ref[0:1, h * W:h * W + W]
                pad_ref[1, P + h:P + h + 1, P:P + W] = flat_ref[1:2, h * W:h * W + W]

            # ---- 7x7 conv (2 in-ch -> 1 out-ch), BatchNorm folded in.
            # Row-chunked so accumulators stay in the vreg file; 4 independent
            # partial accumulators break the 98-add serial dependency; the
            # per-tap lane shift is hoisted (one lane-offset read per (c, dx)).
            for r0 in range(0, H, _ROW_CHUNK):
                rh = min(_ROW_CHUNK, H - r0)
                accs = [jnp.zeros((rh, W), jnp.float32) for _ in range(4)]
                for c in range(2):
                    for dx in range(K):
                        col = pad_ref[c, r0:r0 + rh + 2 * P, dx:dx + W]   # (rh+2P, W)
                        a = 2 * c + (dx & 1)
                        for dy in range(K):
                            accs[a] = accs[a] + w[c * K * K + dy * K + dx] * col[dy:dy + rh, :]
                acc = (accs[0] + accs[1]) + (accs[2] + accs[3])
                # Gather the chunk back into the lane-dense flat layout.
                for hh in range(rh):
                    g = r0 + hh
                    flat_ref[2:3, g * W:g * W + W] = acc[hh:hh + 1, :]

            acc_flat = flat_ref[2:3, :] + bias                    # (1, HW) f32
            if has_pre:
                acc_flat = acc_flat + pre_ref[b].astype(jnp.float32)

            # key 1: pre-sigmoid spatial attention map (lane-dense store)
            att_ref[b] = acc_flat.astype(att_ref.dtype)

            # key 0: x * sigmoid(att).  exp and the approximate reciprocal both
            # run on the EUP slot; the argument is clamped so exp(-acc) cannot
            # overflow to +inf for very negative acc.
            scale = pl.reciprocal(1.0 + jnp.exp(-jnp.maximum(acc_flat, -60.0)),
                                  approx=True).astype(x_dtype)
            if C <= _UNROLL_C_MAX:
                for c in range(C):
                    y_ref[b, c:c + 1, :] = (x_ref[b, c:c + 1, :] * scale).astype(y_ref.dtype)
            else:
                y_ref[b] = (x_ref[b] * scale).astype(y_ref.dtype)

    return kernel


def spatial_gate_forward(x, pre_spatial_att, params, in_channel, channel):
    """Pallas implementation of SpatialGate.forward(input=(x, pre_spatial_att))."""
    N, C, H, W = x.shape
    HW = H * W
    x_dtype = x.dtype

    # Fold BatchNorm (inference mode) into the conv weight / bias; also fold 1/C
    # into the mean-plane weights so the kernel only needs the channel *sum*.
    s = params["gamma"] / jnp.sqrt(params["var"] + 1e-5)
    w_eff = params["conv_w"].astype(jnp.float32) * s                    # (1, 2, K, K)
    w_eff = w_eff.at[:, 1].multiply(1.0 / C)                            # mean plane
    b_eff = (params["beta"] - params["mean"] * s).astype(jnp.float32)   # scalar
    flat_params = jnp.concatenate(
        [w_eff.reshape(-1), jnp.reshape(b_eff, (1,))]).astype(jnp.float32)   # (99,)

    has_pre = pre_spatial_att is not None
    if has_pre:
        if in_channel != channel:
            # att_pool = MaxPool2d(kernel=2, stride=2) on the previous attention map (glue).
            n, _, hp, wp = pre_spatial_att.shape
            assert hp % 2 == 0 and wp % 2 == 0, "att_pool expects even spatial dims"
            pre_spatial_att = pre_spatial_att.reshape(
                n, 1, hp // 2, 2, wp // 2, 2).max(axis=(3, 5))
        assert pre_spatial_att.shape == (N, 1, H, W)
        # Keep pre in x.dtype in HBM (halves its read traffic for bf16 inputs);
        # it is upcast to f32 inside the kernel when added to the conv output.
        pre_flat = pre_spatial_att.astype(x_dtype).reshape(N, 1, HW)

    # Lane-dense layout: merge H,W onto the lane axis (free metadata reshape for
    # contiguous NCHW) so pool / scale / stores run at full 128-lane density.
    x_flat = x.reshape(N, C, HW)

    # ---- Block-size selection against the *padded* VMEM footprint ----
    per_item_x = _vmem_tile_bytes(C, HW, x_dtype)
    target_blk = 4 << 20                  # ~4 MiB of padded x per grid step
    nb_cap = N // 2 if N >= 2 else 1      # >= 2 grid steps so v7x's 2 TCs both get work
    Nb = 1
    for d in range(1, N + 1):
        if N % d == 0 and d <= nb_cap and d * per_item_x <= target_blk:
            Nb = d

    Ws = _round_up(W + 2 * P, 128)        # lane-aligned padded-scratch width

    # ---- VMEM budget with padded tile sizes (lane 128 / sublane 8|16|32) ----
    blk = 2 * Nb * per_item_x                                        # x + y blocks
    blk += Nb * _vmem_tile_bytes(1, HW, x_dtype)                     # att block
    if has_pre:
        blk += Nb * _vmem_tile_bytes(1, HW, x_dtype)                 # pre block
    scratch = 2 * _round_up(H + 2 * P, 8) * Ws * 4 + 8 * _round_up(HW, 128) * 4
    need = 2 * blk + scratch                                         # double-buffered
    try:
        cap = int(getattr(pltpu.get_tpu_info(), "vmem_capacity_bytes", 64 << 20))
    except Exception:
        cap = 64 << 20
    clamp = min(cap * 3 // 4, 100 << 20)  # ~96 MiB on 128 MiB parts, 48 MiB on v7x
    # TODO(synk): if a single item exceeds `clamp` (e.g. 64x224x224 f32 on v7x),
    # add an intra-item H-tiled grid axis with a +/-3-row halo instead of failing.
    vmem_limit = int(min(max(need * 3 // 2, 16 << 20), clamp))

    kernel = _make_kernel(Nb, C, H, W, has_pre, x_dtype)

    in_specs = [
        pl.BlockSpec(memory_space=pltpu.MemorySpace.SMEM),           # params (99,)
        pl.BlockSpec((Nb, C, HW), lambda n: (n, 0, 0)),              # x (lane-dense)
    ]
    args = [flat_params, x_flat]
    if has_pre:
        in_specs.append(pl.BlockSpec((Nb, 1, HW), lambda n: (n, 0, 0)))
        args.append(pre_flat)

    out_x, out_att = pl.pallas_call(
        kernel,
        out_shape=(
            jax.ShapeDtypeStruct((N, C, HW), x_dtype),
            jax.ShapeDtypeStruct((N, 1, HW), x_dtype),
        ),
        grid=(N // Nb,),
        in_specs=in_specs,
        out_specs=(
            pl.BlockSpec((Nb, C, HW), lambda n: (n, 0, 0)),
            pl.BlockSpec((Nb, 1, HW), lambda n: (n, 0, 0)),
        ),
        scratch_shapes=[
            pltpu.VMEM((2, H + 2 * P, Ws), jnp.float32),   # zero-bordered conv input
            pltpu.VMEM((3, HW), jnp.float32),              # flat: cmax / csum / conv out
        ],
        compiler_params=pltpu.CompilerParams(
            dimension_semantics=("parallel",),
            vmem_limit_bytes=vmem_limit,
        ),
        # NOTE: input_output_aliases={1: 0} (x -> out_x) would save one NCHW HBM
        # buffer if callers never reuse x afterwards; left off to keep the
        # functional signature unchanged.
    )(*args)

    return {0: out_x.reshape(N, C, H, W), 1: out_att.reshape(N, 1, H, W)}


def spatial_gate_reference(x, pre_spatial_att, params, in_channel, channel):
    """Pure-JAX reference (for verification only)."""
    cmax = jnp.max(x, axis=1, keepdims=True)
    cmean = jnp.mean(x, axis=1, keepdims=True)
    xc = jnp.concatenate([cmax, cmean], axis=1)
    conv = jax.lax.conv_general_dilated(
        xc, params["conv_w"], (1, 1), [(P, P), (P, P)],
        dimension_numbers=("NCHW", "OIHW", "NCHW"))
    s = params["gamma"] / jnp.sqrt(params["var"] + 1e-5)
    x_out = conv * s + (params["beta"] - params["mean"] * s)
    if pre_spatial_att is not None:
        if in_channel != channel:
            n, _, hp, wp = pre_spatial_att.shape
            pre_spatial_att = pre_spatial_att.reshape(
                n, 1, hp // 2, 2, wp // 2, 2).max(axis=(3, 5))
        x_out = x_out + pre_spatial_att
    scale = jax.nn.sigmoid(x_out)
    return {0: x * scale, 1: x_out}


if __name__ == "__main__":
    key = jax.random.PRNGKey(0)
    k1, k2, k3 = jax.random.split(key, 3)

    N, C, H, W = 2, 4, 16, 16
    in_channel, channel = 8, 4      # in_channel != channel -> att_pool (2x2 maxpool) path

    x = jax.random.normal(k1, (N, C, H, W), dtype=jnp.float32)
    pre_att = jax.random.normal(k2, (N, 1, 2 * H, 2 * W), dtype=jnp.float32)

    # Deterministic synthetic parameters (Conv2d(2,1,7,7,bias=False) + BatchNorm2d(1)).
    params = dict(
        conv_w=jax.random.normal(k3, (1, 2, K, K), dtype=jnp.float32) * 0.1,
        gamma=jnp.float32(1.1),
        beta=jnp.float32(0.05),
        mean=jnp.float32(0.02),
        var=jnp.float32(0.9),
    )

    # out[1] (pre-sigmoid map) is exact up to f32 summation order -> tight tolerance.
    # out[0] uses the approximate EUP reciprocal inside sigmoid (~2^-12 relative),
    # so its tolerance is slightly looser.
    TIGHT = dict(atol=1e-4, rtol=1e-4)
    LOOSE = dict(atol=5e-3, rtol=5e-3)

    # Path 1: pre_spatial_att present, with att_pool (in_channel != channel).
    out = spatial_gate_forward(x, pre_att, params, in_channel, channel)
    jax.block_until_ready(out[0])
    jax.block_until_ready(out[1])
    ref = spatial_gate_reference(x, pre_att, params, in_channel, channel)
    assert jnp.allclose(out[1], ref[1], **TIGHT)
    assert jnp.allclose(out[0], ref[0], **LOOSE)

    # Path 2: pre_spatial_att is None.
    out_none = spatial_gate_forward(x, None, params, channel, channel)
    jax.block_until_ready(out_none[0])
    jax.block_until_ready(out_none[1])
    ref_none = spatial_gate_reference(x, None, params, channel, channel)
    assert jnp.allclose(out_none[1], ref_none[1], **TIGHT)
    assert jnp.allclose(out_none[0], ref_none[0], **LOOSE)

    print("KERNEL_OK")
</pallas_src>

<mosaic_0001>
module attributes {stable_mosaic.version = 11 : i64} {
  func.func @kernel(%arg0: i32, %arg1: memref<99xf32, #tpu.memory_space<smem>>, %arg2: memref<1x4x256xf32, #tpu.memory_space<vmem>>, %arg3: memref<1x1x256xf32, #tpu.memory_space<vmem>>, %arg4: memref<1x4x256xf32, #tpu.memory_space<vmem>>, %arg5: memref<1x1x256xf32, #tpu.memory_space<vmem>>, %arg6: memref<2x22x128xf32, #tpu.memory_space<vmem>>, %arg7: memref<3x256xf32, #tpu.memory_space<vmem>>) attributes {dimension_semantics = [#tpu.dimension_semantics<parallel>], iteration_bounds = array<i64: 2>, scalar_prefetch = 0 : i64, scratch_operands = 2 : i64, tpu.core_type = #tpu.core_type<tc>, window_params = [{transform_indices = @transform_0, window_bounds = array<i64: 99>}, {transform_indices = @transform_1, window_bounds = array<i64: 1, 4, 256>}, {transform_indices = @transform_2, window_bounds = array<i64: 1, 1, 256>}, {transform_indices = @transform_3, window_bounds = array<i64: 1, 4, 256>}, {transform_indices = @transform_4, window_bounds = array<i64: 1, 1, 256>}]} {
    %c0 = arith.constant 0 : index
    %0 = memref.load %arg1[%c0] : memref<99xf32, #tpu.memory_space<smem>>
    %c1 = arith.constant 1 : index
    %1 = memref.load %arg1[%c1] : memref<99xf32, #tpu.memory_space<smem>>
    %c2 = arith.constant 2 : index
    %2 = memref.load %arg1[%c2] : memref<99xf32, #tpu.memory_space<smem>>
    %c3 = arith.constant 3 : index
    %3 = memref.load %arg1[%c3] : memref<99xf32, #tpu.memory_space<smem>>
    %c4 = arith.constant 4 : index
    %4 = memref.load %arg1[%c4] : memref<99xf32, #tpu.memory_space<smem>>
    %c5 = arith.constant 5 : index
    %5 = memref.load %arg1[%c5] : memref<99xf32, #tpu.memory_space<smem>>
    %c6 = arith.constant 6 : index
    %6 = memref.load %arg1[%c6] : memref<99xf32, #tpu.memory_space<smem>>
    %c7 = arith.constant 7 : index
    %7 = memref.load %arg1[%c7] : memref<99xf32, #tpu.memory_space<smem>>
    %c8 = arith.constant 8 : index
    %8 = memref.load %arg1[%c8] : memref<99xf32, #tpu.memory_space<smem>>
    %c9 = arith.constant 9 : index
    %9 = memref.load %arg1[%c9] : memref<99xf32, #tpu.memory_space<smem>>
    %c10 = arith.constant 10 : index
    %10 = memref.load %arg1[%c10] : memref<99xf32, #tpu.memory_space<smem>>
    %c11 = arith.constant 11 : index
    %11 = memref.load %arg1[%c11] : memref<99xf32, #tpu.memory_space<smem>>
    %c12 = arith.constant 12 : index
    %12 = memref.load %arg1[%c12] : memref<99xf32, #tpu.memory_space<smem>>
    %c13 = arith.constant 13 : index
    %13 = memref.load %arg1[%c13] : memref<99xf32, #tpu.memory_space<smem>>
    %c14 = arith.constant 14 : index
    %14 = memref.load %arg1[%c14] : memref<99xf32, #tpu.memory_space<smem>>
    %c15 = arith.constant 15 : index
    %15 = memref.load %arg1[%c15] : memref<99xf32, #tpu.memory_space<smem>>
    %c16 = arith.constant 16 : index
    %16 = memref.load %arg1[%c16] : memref<99xf32, #tpu.memory_space<smem>>
    %c17 = arith.constant 17 : index
    %17 = memref.load %arg1[%c17] : memref<99xf32, #tpu.memory_space<smem>>
    %c18 = arith.constant 18 : index
    %18 = memref.load %arg1[%c18] : memref<99xf32, #tpu.memory_space<smem>>
    %c19 = arith.constant 19 : index
    %19 = memref.load %arg1[%c19] : memref<99xf32, #tpu.memory_space<smem>>
    %c20 = arith.constant 20 : index
    %20 = memref.load %arg1[%c20] : memref<99xf32, #tpu.memory_space<smem>>
    %c21 = arith.constant 21 : index
    %21 = memref.load %arg1[%c21] : memref<99xf32, #tpu.memory_space<smem>>
    %c22 = arith.constant 22 : index
    %22 = memref.load %arg1[%c22] : memref<99xf32, #tpu.memory_space<smem>>
    %c23 = arith.constant 23 : index
    %23 = memref.load %arg1[%c23] : memref<99xf32, #tpu.memory_space<smem>>
    %c24 = arith.constant 24 : index
    %24 = memref.load %arg1[%c24] : memref<99xf32, #tpu.memory_space<smem>>
    %c25 = arith.constant 25 : index
    %25 = memref.load %arg1[%c25] : memref<99xf32, #tpu.memory_space<smem>>
    %c26 = arith.constant 26 : index
    %26 = memref.load %arg1[%c26] : memref<99xf32, #tpu.memory_space<smem>>
    %c27 = arith.constant 27 : index
    %27 = memref.load %arg1[%c27] : memref<99xf32, #tpu.memory_space<smem>>
    %c28 = arith.constant 28 : index
    %28 = memref.load %arg1[%c28] : memref<99xf32, #tpu.memory_space<smem>>
    %c29 = arith.constant 29 : index
    %29 = memref.load %arg1[%c29] : memref<99xf32, #tpu.memory_space<smem>>
    %c30 = arith.constant 30 : index
    %30 = memref.load %arg1[%c30] : memref<99xf32, #tpu.memory_space<smem>>
    %c31 = arith.constant 31 : index
    %31 = memref.load %arg1[%c31] : memref<99xf32, #tpu.memory_space<smem>>
    %c32 = arith.constant 32 : index
    %32 = memref.load %arg1[%c32] : memref<99xf32, #tpu.memory_space<smem>>
    %c33 = arith.constant 33 : index
    %33 = memref.load %arg1[%c33] : memref<99xf32, #tpu.memory_space<smem>>
    %c34 = arith.constant 34 : index
    %34 = memref.load %arg1[%c34] : memref<99xf32, #tpu.memory_space<smem>>
    %c35 = arith.constant 35 : index
    %35 = memref.load %arg1[%c35] : memref<99xf32, #tpu.memory_space<smem>>
    %c36 = arith.constant 36 : index
    %36 = memref.load %arg1[%c36] : memref<99xf32, #tpu.memory_space<smem>>
    %c37 = arith.constant 37 : index
    %37 = memref.load %arg1[%c37] : memref<99xf32, #tpu.memory_space<smem>>
    %c38 = arith.constant 38 : index
    %38 = memref.load %arg1[%c38] : memref<99xf32, #tpu.memory_space<smem>>
    %c39 = arith.constant 39 : index
    %39 = memref.load %arg1[%c39] : memref<99xf32, #tpu.memory_space<smem>>
    %c40 = arith.constant 40 : index
    %40 = memref.load %arg1[%c40] : memref<99xf32, #tpu.memory_space<smem>>
    %c41 = arith.constant 41 : index
    %41 = memref.load %arg1[%c41] : memref<99xf32, #tpu.memory_space<smem>>
    %c42 = arith.constant 42 : index
    %42 = memref.load %arg1[%c42] : memref<99xf32, #tpu.memory_space<smem>>
    %c43 = arith.constant 43 : index
    %43 = memref.load %arg1[%c43] : memref<99xf32, #tpu.memory_space<smem>>
    %c44 = arith.constant 44 : index
    %44 = memref.load %arg1[%c44] : memref<99xf32, #tpu.memory_space<smem>>
    %c45 = arith.constant 45 : index
    %45 = memref.load %arg1[%c45] : memref<99xf32, #tpu.memory_space<smem>>
    %c46 = arith.constant 46 : index
    %46 = memref.load %arg1[%c46] : memref<99xf32, #tpu.memory_space<smem>>
    %c47 = arith.constant 47 : index
    %47 = memref.load %arg1[%c47] : memref<99xf32, #tpu.memory_space<smem>>
    %c48 = arith.constant 48 : index
    %48 = memref.load %arg1[%c48] : memref<99xf32, #tpu.memory_space<smem>>
    %c49 = arith.constant 49 : index
    %49 = memref.load %arg1[%c49] : memref<99xf32, #tpu.memory_space<smem>>
    %c50 = arith.constant 50 : index
    %50 = memref.load %arg1[%c50] : memref<99xf32, #tpu.memory_space<smem>>
    %c51 = arith.constant 51 : index
    %51 = memref.load %arg1[%c51] : memref<99xf32, #tpu.memory_space<smem>>
    %c52 = arith.constant 52 : index
    %52 = memref.load %arg1[%c52] : memref<99xf32, #tpu.memory_space<smem>>
    %c53 = arith.constant 53 : index
    %53 = memref.load %arg1[%c53] : memref<99xf32, #tpu.memory_space<smem>>
    %c54 = arith.constant 54 : index
    %54 = memref.load %arg1[%c54] : memref<99xf32, #tpu.memory_space<smem>>
    %c55 = arith.constant 55 : index
    %55 = memref.load %arg1[%c55] : memref<99xf32, #tpu.memory_space<smem>>
    %c56 = arith.constant 56 : index
    %56 = memref.load %arg1[%c56] : memref<99xf32, #tpu.memory_space<smem>>
    %c57 = arith.constant 57 : index
    %57 = memref.load %arg1[%c57] : memref<99xf32, #tpu.memory_space<smem>>
    %c58 = arith.constant 58 : index
    %58 = memref.load %arg1[%c58] : memref<99xf32, #tpu.memory_space<smem>>
    %c59 = arith.constant 59 : index
    %59 = memref.load %arg1[%c59] : memref<99xf32, #tpu.memory_space<smem>>
    %c60 = arith.constant 60 : index
    %60 = memref.load %arg1[%c60] : memref<99xf32, #tpu.memory_space<smem>>
    %c61 = arith.constant 61 : index
    %61 = memref.load %arg1[%c61] : memref<99xf32, #tpu.memory_space<smem>>
    %c62 = arith.constant 62 : index
    %62 = memref.load %arg1[%c62] : memref<99xf32, #tpu.memory_space<smem>>
    %c63 = arith.constant 63 : index
    %63 = memref.load %arg1[%c63] : memref<99xf32, #tpu.memory_space<smem>>
    %c64 = arith.constant 64 : index
    %64 = memref.load %arg1[%c64] : memref<99xf32, #tpu.memory_space<smem>>
    %c65 = arith.constant 65 : index
    %65 = memref.load %arg1[%c65] : memref<99xf32, #tpu.memory_space<smem>>
    %c66 = arith.constant 66 : index
    %66 = memref.load %arg1[%c66] : memref<99xf32, #tpu.memory_space<smem>>
    %c67 = arith.constant 67 : index
    %67 = memref.load %arg1[%c67] : memref<99xf32, #tpu.memory_space<smem>>
    %c68 = arith.constant 68 : index
    %68 = memref.load %arg1[%c68] : memref<99xf32, #tpu.memory_space<smem>>
    %c69 = arith.constant 69 : index
    %69 = memref.load %arg1[%c69] : memref<99xf32, #tpu.memory_space<smem>>
    %c70 = arith.constant 70 : index
    %70 = memref.load %arg1[%c70] : memref<99xf32, #tpu.memory_space<smem>>
    %c71 = arith.constant 71 : index
    %71 = memref.load %arg1[%c71] : memref<99xf32, #tpu.memory_space<smem>>
    %c72 = arith.constant 72 : index
    %72 = memref.load %arg1[%c72] : memref<99xf32, #tpu.memory_space<smem>>
    %c73 = arith.constant 73 : index
    %73 = memref.load %arg1[%c73] : memref<99xf32, #tpu.memory_space<smem>>
    %c74 = arith.constant 74 : index
    %74 = memref.load %arg1[%c74] : memref<99xf32, #tpu.memory_space<smem>>
    %c75 = arith.constant 75 : index
    %75 = memref.load %arg1[%c75] : memref<99xf32, #tpu.memory_space<smem>>
    %c76 = arith.constant 76 : index
    %76 = memref.load %arg1[%c76] : memref<99xf32, #tpu.memory_space<smem>>
    %c77 = arith.constant 77 : index
    %77 = memref.load %arg1[%c77] : memref<99xf32, #tpu.memory_space<smem>>
    %c78 = arith.constant 78 : index
    %78 = memref.load %arg1[%c78] : memref<99xf32, #tpu.memory_space<smem>>
    %c79 = arith.constant 79 : index
    %79 = memref.load %arg1[%c79] : memref<99xf32, #tpu.memory_space<smem>>
    %c80 = arith.constant 80 : index
    %80 = memref.load %arg1[%c80] : memref<99xf32, #tpu.memory_space<smem>>
    %c81 = arith.constant 81 : index
    %81 = memref.load %arg1[%c81] : memref<99xf32, #tpu.memory_space<smem>>
    %c82 = arith.constant 82 : index
    %82 = memref.load %arg1[%c82] : memref<99xf32, #tpu.memory_space<smem>>
    %c83 = arith.constant 83 : index
    %83 = memref.load %arg1[%c83] : memref<99xf32, #tpu.memory_space<smem>>
    %c84 = arith.constant 84 : index
    %84 = memref.load %arg1[%c84] : memref<99xf32, #tpu.memory_space<smem>>
    %c85 = arith.constant 85 : index
    %85 = memref.load %arg1[%c85] : memref<99xf32, #tpu.memory_space<smem>>
    %c86 = arith.constant 86 : index
    %86 = memref.load %arg1[%c86] : memref<99xf32, #tpu.memory_space<smem>>
    %c87 = arith.constant 87 : index
    %87 = memref.load %arg1[%c87] : memref<99xf32, #tpu.memory_space<smem>>
    %c88 = arith.constant 88 : index
    %88 = memref.load %arg1[%c88] : memref<99xf32, #tpu.memory_space<smem>>
    %c89 = arith.constant 89 : index
    %89 = memref.load %arg1[%c89] : memref<99xf32, #tpu.memory_space<smem>>
    %c90 = arith.constant 90 : index
    %90 = memref.load %arg1[%c90] : memref<99xf32, #tpu.memory_space<smem>>
    %c91 = arith.constant 91 : index
    %91 = memref.load %arg1[%c91] : memref<99xf32, #tpu.memory_space<smem>>
    %c92 = arith.constant 92 : index
    %92 = memref.load %arg1[%c92] : memref<99xf32, #tpu.memory_space<smem>>
    %c93 = arith.constant 93 : index
    %93 = memref.load %arg1[%c93] : memref<99xf32, #tpu.memory_space<smem>>
    %c94 = arith.constant 94 : index
    %94 = memref.load %arg1[%c94] : memref<99xf32, #tpu.memory_space<smem>>
    %c95 = arith.constant 95 : index
    %95 = memref.load %arg1[%c95] : memref<99xf32, #tpu.memory_space<smem>>
    %c96 = arith.constant 96 : index
    %96 = memref.load %arg1[%c96] : memref<99xf32, #tpu.memory_space<smem>>
    %c97 = arith.constant 97 : index
    %97 = memref.load %arg1[%c97] : memref<99xf32, #tpu.memory_space<smem>>
    %c98 = arith.constant 98 : index
    %98 = memref.load %arg1[%c98] : memref<99xf32, #tpu.memory_space<smem>>
    %cst = arith.constant 0.000000e+00 : f32
    %99 = vector.broadcast %cst : f32 to vector<2x22x128xf32>
    %c0_0 = arith.constant 0 : index
    %c0_1 = arith.constant 0 : index
    %c0_2 = arith.constant 0 : index
    %100 = vector.load %arg6[%c0_0, %c0_1, %c0_2] : memref<2x22x128xf32, #tpu.memory_space<vmem>>, vector<2x22x128xf32>
    tpu.vector_store %arg6[%c0_0, %c0_1, %c0_2], %99 {strides = array<i32>} : memref<2x22x128xf32, #tpu.memory_space<vmem>>, vector<2x22x128xf32>,
    %c0_3 = arith.constant 0 : index
    %c0_4 = arith.constant 0 : index
    %c0_5 = arith.constant 0 : index
    %101 = vector.load %arg2[%c0_3, %c0_4, %c0_5] : memref<1x4x256xf32, #tpu.memory_space<vmem>>, vector<1x1x256xf32>
    %102 = vector.shape_cast %101 : vector<1x1x256xf32> to vector<1x256xf32>
    %c0_6 = arith.constant 0 : index
    %c1_7 = arith.constant 1 : index
    %c0_8 = arith.constant 0 : index
    %103 = vector.load %arg2[%c0_6, %c1_7, %c0_8] : memref<1x4x256xf32, #tpu.memory_space<vmem>>, vector<1x1x256xf32>
    %104 = vector.shape_cast %103 : vector<1x1x256xf32> to vector<1x256xf32>
    %105 = arith.maximumf %102, %104 : vector<1x256xf32>
    %106 = arith.addf %102, %104 : vector<1x256xf32>
    %c0_9 = arith.constant 0 : index
    %c2_10 = arith.constant 2 : index
    %c0_11 = arith.constant 0 : index
    %107 = vector.load %arg2[%c0_9, %c2_10, %c0_11] : memref<1x4x256xf32, #tpu.memory_space<vmem>>, vector<1x1x256xf32>
    %108 = vector.shape_cast %107 : vector<1x1x256xf32> to vector<1x256xf32>
    %109 = arith.maximumf %105, %108 : vector<1x256xf32>
    %110 = arith.addf %106, %108 : vector<1x256xf32>
    %c0_12 = arith.constant 0 : index
    %c3_13 = arith.constant 3 : index
    %c0_14 = arith.constant 0 : index
    %111 = vector.load %arg2[%c0_12, %c3_13, %c0_14] : memref<1x4x256xf32, #tpu.memory_space<vmem>>, vector<1x1x256xf32>
    %112 = vector.shape_cast %111 : vector<1x1x256xf32> to vector<1x256xf32>
    %113 = arith.maximumf %109, %112 : vector<1x256xf32>
    %114 = arith.addf %110, %112 : vector<1x256xf32>
    %c0_15 = arith.constant 0 : index
    %c0_16 = arith.constant 0 : index
    %115 = vector.load %arg7[%c0_15, %c0_16] : memref<3x256xf32, #tpu.memory_space<vmem>>, vector<1x256xf32>
    tpu.vector_store %arg7[%c0_15, %c0_16], %113 {strides = array<i32>} : memref<3x256xf32, #tpu.memory_space<vmem>>, vector<1x256xf32>,
    %c1_17 = arith.constant 1 : index
    %c0_18 = arith.constant 0 : index
    %116 = vector.load %arg7[%c1_17, %c0_18] : memref<3x256xf32, #tpu.memory_space<vmem>>, vector<1x256xf32>
    tpu.vector_store %arg7[%c1_17, %c0_18], %114 {strides = array<i32>} : memref<3x256xf32, #tpu.memory_space<vmem>>, vector<1x256xf32>,
    %c0_19 = arith.constant 0 : index
    %c0_20 = arith.constant 0 : index
    %117 = vector.load %arg7[%c0_19, %c0_20] : memref<3x256xf32, #tpu.memory_space<vmem>>, vector<1x16xf32>
    %c0_21 = arith.constant 0 : index
    %c3_22 = arith.constant 3 : index
    %c3_23 = arith.constant 3 : index
    %118 = vector.load %arg6[%c0_21, %c3_22, %c3_23] : memref<2x22x128xf32, #tpu.memory_space<vmem>>, vector<1x1x16xf32>
    %119 = vector.shape_cast %118 : vector<1x1x16xf32> to vector<1x16xf32>
    %120 = vector.shape_cast %117 : vector<1x16xf32> to vector<1x1x16xf32>
    tpu.vector_store %arg6[%c0_21, %c3_22, %c3_23], %120 {strides = array<i32>} : memref<2x22x128xf32, #tpu.memory_space<vmem>>, vector<1x1x16xf32>,
    %c1_24 = arith.constant 1 : index
    %c0_25 = arith.constant 0 : index
    %121 = vector.load %arg7[%c1_24, %c0_25] : memref<3x256xf32, #tpu.memory_space<vmem>>, vector<1x16xf32>
    %c1_26 = arith.constant 1 : index
    %c3_27 = arith.constant 3 : index
    %c3_28 = arith.constant 3 : index
    %122 = vector.load %arg6[%c1_26, %c3_27, %c3_28] : memref<2x22x128xf32, #tpu.memory_space<vmem>>, vector<1x1x16xf32>
    %123 = vector.shape_cast %122 : vector<1x1x16xf32> to vector<1x16xf32>
    %124 = vector.shape_cast %121 : vector<1x16xf32> to vector<1x1x16xf32>
    tpu.vector_store %arg6[%c1_26, %c3_27, %c3_28], %124 {strides = array<i32>} : memref<2x22x128xf32, #tpu.memory_space<vmem>>, vector<1x1x16xf32>,
    %c0_29 = arith.constant 0 : index
    %c16_30 = arith.constant 16 : index
    %125 = vector.load %arg7[%c0_29, %c16_30] : memref<3x256xf32, #tpu.memory_space<vmem>>, vector<1x16xf32>
    %c0_31 = arith.constant 0 : index
    %c4_32 = arith.constant 4 : index
    %c3_33 = arith.constant 3 : index
    %126 = vector.load %arg6[%c0_31, %c4_32, %c3_33] : memref<2x22x128xf32, #tpu.memory_space<vmem>>, vector<1x1x16xf32>
    %127 = vector.shape_cast %126 : vector<1x1x16xf32> to vector<1x16xf32>
    %128 = vector.shape_cast %125 : vector<1x16xf32> to vector<1x1x16xf32>
    tpu.vector_store %arg6[%c0_31, %c4_32, %c3_33], %128 {strides = array<i32>} : memref<2x22x128xf32, #tpu.memory_space<vmem>>, vector<1x1x16xf32>,
    %c1_34 = arith.constant 1 : index
    %c16_35 = arith.constant 16 : index
    %129 = vector.load %arg7[%c1_34, %c16_35] : memref<3x256xf32, #tpu.memory_space<vmem>>, vector<1x16xf32>
    %c1_36 = arith.constant 1 : index
    %c4_37 = arith.constant 4 : index
    %c3_38 = arith.constant 3 : index
    %130 = vector.load %arg6[%c1_36, %c4_37, %c3_38] : memref<2x22x128xf32, #tpu.memory_space<vmem>>, vector<1x1x16xf32>
    %131 = vector.shape_cast %130 : vector<1x1x16xf32> to vector<1x16xf32>
    %132 = vector.shape_cast %129 : vector<1x16xf32> to vector<1x1x16xf32>
    tpu.vector_store %arg6[%c1_36, %c4_37, %c3_38], %132 {strides = array<i32>} : memref<2x22x128xf32, #tpu.memory_space<vmem>>, vector<1x1x16xf32>,
    %c0_39 = arith.constant 0 : index
    %c32_40 = arith.constant 32 : index
    %133 = vector.load %arg7[%c0_39, %c32_40] : memref<3x256xf32, #tpu.memory_space<vmem>>, vector<1x16xf32>
    %c0_41 = arith.constant 0 : index
    %c5_42 = arith.constant 5 : index
    %c3_43 = arith.constant 3 : index
    %134 = vector.load %arg6[%c0_41, %c5_42, %c3_43] : memref<2x22x128xf32, #tpu.memory_space<vmem>>, vector<1x1x16xf32>
    %135 = vector.shape_cast %134 : vector<1x1x16xf32> to vector<1x16xf32>
    %136 = vector.shape_cast %133 : vector<1x16xf32> to vector<1x1x16xf32>
    tpu.vector_store %arg6[%c0_41, %c5_42, %c3_43], %136 {strides = array<i32>} : memref<2x22x128xf32, #tpu.memory_space<vmem>>, vector<1x1x16xf32>,
    %c1_44 = arith.constant 1 : index
    %c32_45 = arith.constant 32 : index
    %137 = vector.load %arg7[%c1_44, %c32_45] : memref<3x256xf32, #tpu.memory_space<vmem>>, vector<1x16xf32>
    %c1_46 = arith.constant 1 : index
    %c5_47 = arith.constant 5 : index
    %c3_48 = arith.constant 3 : index
    %138 = vector.load %arg6[%c1_46, %c5_47, %c3_48] : memref<2x22x128xf32, #tpu.memory_space<vmem>>, vector<1x1x16xf32>
    %139 = vector.shape_cast %138 : vector<1x1x16xf32> to vector<1x16xf32>
    %140 = vector.shape_cast %137 : vector<1x16xf32> to vector<1x1x16xf32>
    tpu.vector_store %arg6[%c1_46, %c5_47, %c3_48], %140 {strides = array<i32>} : memref<2x22x128xf32, #tpu.memory_space<vmem>>, vector<1x1x16xf32>,
    %c0_49 = arith.constant 0 : index
    %c48_50 = arith.constant 48 : index
    %141 = vector.load %arg7[%c0_49, %c48_50] : memref<3x256xf32, #tpu.memory_space<vmem>>, vector<1x16xf32>
    %c0_51 = arith.constant 0 : index
    %c6_52 = arith.constant 6 : index
    %c3_53 = arith.constant 3 : index
    %142 = vector.load %arg6[%c0_51, %c6_52, %c3_53] : memref<2x22x128xf32, #tpu.memory_space<vmem>>, vector<1x1x16xf32>
    %143 = vector.shape_cast %142 : vector<1x1x16xf32> to vector<1x16xf32>
    %144 = vector.shape_cast %141 : vector<1x16xf32> to vector<1x1x16xf32>
    tpu.vector_store %arg6[%c0_51, %c6_52, %c3_53], %144 {strides = array<i32>} : memref<2x22x128xf32, #tpu.memory_space<vmem>>, vector<1x1x16xf32>,
    %c1_54 = arith.constant 1 : index
    %c48_55 = arith.constant 48 : index
    %145 = vector.load %arg7[%c1_54, %c48_55] : memref<3x256xf32, #tpu.memory_space<vmem>>, vector<1x16xf32>
    %c1_56 = arith.constant 1 : index
    %c6_57 = arith.constant 6 : index
    %c3_58 = arith.constant 3 : index
    %146 = vector.load %arg6[%c1_56, %c6_57, %c3_58] : memref<2x22x128xf32, #tpu.memory_space<vmem>>, vector<1x1x16xf32>
    %147 = vector.shape_cast %146 : vector<1x1x16xf32> to vector<1x16xf32>
    %148 = vector.shape_cast %145 : vector<1x16xf32> to vector<1x1x16xf32>
    tpu.vector_store %arg6[%c1_56, %c6_57, %c3_58], %148 {strides = array<i32>} : memref<2x22x128xf32, #tpu.memory_space<vmem>>, vector<1x1x16xf32>,
    %c0_59 = arith.constant 0 : index
    %c64_60 = arith.constant 64 : index
    %149 = vector.load %arg7[%c0_59, %c64_60] : memref<3x256xf32, #tpu.memory_space<vmem>>, vector<1x16xf32>
    %c0_61 = arith.constant 0 : index
    %c7_62 = arith.constant 7 : index
    %c3_63 = arith.constant 3 : index
    %150 = vector.load %arg6[%c0_61, %c7_62, %c3_63] : memref<2x22x128xf32, #tpu.memory_space<vmem>>, vector<1x1x16xf32>
    %151 = vector.shape_cast %150 : vector<1x1x16xf32> to vector<1x16xf32>
    %152 = vector.shape_cast %149 : vector<1x16xf32> to vector<1x1x16xf32>
    tpu.vector_store %arg6[%c0_61, %c7_62, %c3_63], %152 {strides = array<i32>} : memref<2x22x128xf32, #tpu.memory_space<vmem>>, vector<1x1x16xf32>,
    %c1_64 = arith.constant 1 : index
    %c64_65 = arith.constant 64 : index
    %153 = vector.load %arg7[%c1_64, %c64_65] : memref<3x256xf32, #tpu.memory_space<vmem>>, vector<1x16xf32>
    %c1_66 = arith.constant 1 : index
    %c7_67 = arith.constant 7 : index
    %c3_68 = arith.constant 3 : index
    %154 = vector.load %arg6[%c1_66, %c7_67, %c3_68] : memref<2x22x128xf32, #tpu.memory_space<vmem>>, vector<1x1x16xf32>
    %155 = vector.shape_cast %154 : vector<1x1x16xf32> to vector<1x16xf32>
    %156 = vector.shape_cast %153 : vector<1x16xf32> to vector<1x1x16xf32>
    tpu.vector_store %arg6[%c1_66, %c7_67, %c3_68], %156 {strides = array<i32>} : memref<2x22x128xf32, #tpu.memory_space<vmem>>, vector<1x1x16xf32>,
    %c0_69 = arith.constant 0 : index
    %c80_70 = arith.constant 80 : index
    %157 = vector.load %arg7[%c0_69, %c80_70] : memref<3x256xf32, #tpu.memory_space<vmem>>, vector<1x16xf32>
    %c0_71 = arith.constant 0 : index
    %c8_72 = arith.constant 8 : index
    %c3_73 = arith.constant 3 : index
    %158 = vector.load %arg6[%c0_71, %c8_72, %c3_73] : memref<2x22x128xf32, #tpu.memory_space<vmem>>, vector<1x1x16xf32>
    %159 = vector.shape_cast %158 : vector<1x1x16xf32> to vector<1x16xf32>
    %160 = vector.shape_cast %157 : vector<1x16xf32> to vector<1x1x16xf32>
    tpu.vector_store %arg6[%c0_71, %c8_72, %c3_73], %160 {strides = array<i32>} : memref<2x22x128xf32, #tpu.memory_space<vmem>>, vector<1x1x16xf32>,
    %c1_74 = arith.constant 1 : index
    %c80_75 = arith.constant 80 : index
    %161 = vector.load %arg7[%c1_74, %c80_75] : memref<3x256xf32, #tpu.memory_space<vmem>>, vector<1x16xf32>
    %c1_76 = arith.constant 1 : index
    %c8_77 = arith.constant 8 : index
    %c3_78 = arith.constant 3 : index
    %162 = vector.load %arg6[%c1_76, %c8_77, %c3_78] : memref<2x22x128xf32, #tpu.memory_space<vmem>>, vector<1x1x16xf32>
    %163 = vector.shape_cast %162 : vector<1x1x16xf32> to vector<1x16xf32>
    %164 = vector.shape_cast %161 : vector<1x16xf32> to vector<1x1x16xf32>
    tpu.vector_store %arg6[%c1_76, %c8_77, %c3_78], %164 {strides = array<i32>} : memref<2x22x128xf32, #tpu.memory_space<vmem>>, vector<1x1x16xf32>,
    %c0_79 = arith.constant 0 : index
    %c96_80 = arith.constant 96 : index
    %165 = vector.load %arg7[%c0_79, %c96_80] : memref<3x256xf32, #tpu.memory_space<vmem>>, vector<1x16xf32>
    %c0_81 = arith.constant 0 : index
    %c9_82 = arith.constant 9 : index
    %c3_83 = arith.constant 3 : index
    %166 = vector.load %arg6[%c0_81, %c9_82, %c3_83] : memref<2x22x128xf32, #tpu.memory_space<vmem>>, vector<1x1x16xf32>
    %167 = vector.shape_cast %166 : vector<1x1x16xf32> to vector<1x16xf32>
    %168 = vector.shape_cast %165 : vector<1x16xf32> to vector<1x1x16xf32>
    tpu.vector_store %arg6[%c0_81, %c9_82, %c3_83], %168 {strides = array<i32>} : memref<2x22x128xf32, #tpu.memory_space<vmem>>, vector<1x1x16xf32>,
    %c1_84 = arith.constant 1 : index
    %c96_85 = arith.constant 96 : index
    %169 = vector.load %arg7[%c1_84, %c96_85] : memref<3x256xf32, #tpu.memory_space<vmem>>, vector<1x16xf32>
    %c1_86 = arith.constant 1 : index
    %c9_87 = arith.constant 9 : index
    %c3_88 = arith.constant 3 : index
    %170 = vector.load %arg6[%c1_86, %c9_87, %c3_88] : memref<2x22x128xf32, #tpu.memory_space<vmem>>, vector<1x1x16xf32>
    %171 = vector.shape_cast %170 : vector<1x1x16xf32> to vector<1x16xf32>
    %172 = vector.shape_cast %169 : vector<1x16xf32> to vector<1x1x16xf32>
    tpu.vector_store %arg6[%c1_86, %c9_87, %c3_88], %172 {strides = array<i32>} : memref<2x22x128xf32, #tpu.memory_space<vmem>>, vector<1x1x16xf32>,
    %c0_89 = arith.constant 0 : index
    %c112 = arith.constant 112 : index
    %173 = vector.load %arg7[%c0_89, %c112] : memref<3x256xf32, #tpu.memory_space<vmem>>, vector<1x16xf32>
    %c0_90 = arith.constant 0 : index
    %c10_91 = arith.constant 10 : index
    %c3_92 = arith.constant 3 : index
    %174 = vector.load %arg6[%c0_90, %c10_91, %c3_92] : memref<2x22x128xf32, #tpu.memory_space<vmem>>, vector<1x1x16xf32>
    %175 = vector.shape_cast %174 : vector<1x1x16xf32> to vector<1x16xf32>
    %176 = vector.shape_cast %173 : vector<1x16xf32> to vector<1x1x16xf32>
    tpu.vector_store %arg6[%c0_90, %c10_91, %c3_92], %176 {strides = array<i32>} : memref<2x22x128xf32, #tpu.memory_space<vmem>>, vector<1x1x16xf32>,
    %c1_93 = arith.constant 1 : index
    %c112_94 = arith.constant 112 : index
    %177 = vector.load %arg7[%c1_93, %c112_94] : memref<3x256xf32, #tpu.memory_space<vmem>>, vector<1x16xf32>
    %c1_95 = arith.constant 1 : index
    %c10_96 = arith.constant 10 : index
    %c3_97 = arith.constant 3 : index
    %178 = vector.load %arg6[%c1_95, %c10_96, %c3_97] : memref<2x22x128xf32, #tpu.memory_space<vmem>>, vector<1x1x16xf32>
    %179 = vector.shape_cast %178 : vector<1x1x16xf32> to vector<1x16xf32>
    %180 = vector.shape_cast %177 : vector<1x16xf32> to vector<1x1x16xf32>
    tpu.vector_store %arg6[%c1_95, %c10_96, %c3_97], %180 {strides = array<i32>} : memref<2x22x128xf32, #tpu.memory_space<vmem>>, vector<1x1x16xf32>,
    %c0_98 = arith.constant 0 : index
    %c128 = arith.constant 128 : index
    %181 = vector.load %arg7[%c0_98, %c128] : memref<3x256xf32, #tpu.memory_space<vmem>>, vector<1x16xf32>
    %c0_99 = arith.constant 0 : index
    %c11_100 = arith.constant 11 : index
    %c3_101 = arith.constant 3 : index
    %182 = vector.load %arg6[%c0_99, %c11_100, %c3_101] : memref<2x22x128xf32, #tpu.memory_space<vmem>>, vector<1x1x16xf32>
    %183 = vector.shape_cast %182 : vector<1x1x16xf32> to vector<1x16xf32>
    %184 = vector.shape_cast %181 : vector<1x16xf32> to vector<1x1x16xf32>
    tpu.vector_store %arg6[%c0_99, %c11_100, %c3_101], %184 {strides = array<i32>} : memref<2x22x128xf32, #tpu.memory_space<vmem>>, vector<1x1x16xf32>,
    %c1_102 = arith.constant 1 : index
    %c128_103 = arith.constant 128 : index
    %185 = vector.load %arg7[%c1_102, %c128_103] : memref<3x256xf32, #tpu.memory_space<vmem>>, vector<1x16xf32>
    %c1_104 = arith.constant 1 : index
    %c11_105 = arith.constant 11 : index
    %c3_106 = arith.constant 3 : index
    %186 = vector.load %arg6[%c1_104, %c11_105, %c3_106] : memref<2x22x128xf32, #tpu.memory_space<vmem>>, vector<1x1x16xf32>
    %187 = vector.shape_cast %186 : vector<1x1x16xf32> to vector<1x16xf32>
    %188 = vector.shape_cast %185 : vector<1x16xf32> to vector<1x1x16xf32>
    tpu.vector_store %arg6[%c1_104, %c11_105, %c3_106], %188 {strides = array<i32>} : memref<2x22x128xf32, #tpu.memory_space<vmem>>, vector<1x1x16xf32>,
    %c0_107 = arith.constant 0 : index
    %c144 = arith.constant 144 : index
    %189 = vector.load %arg7[%c0_107, %c144] : memref<3x256xf32, #tpu.memory_space<vmem>>, vector<1x16xf32>
    %c0_108 = arith.constant 0 : index
    %c12_109 = arith.constant 12 : index
    %c3_110 = arith.constant 3 : index
    %190 = vector.load %arg6[%c0_108, %c12_109, %c3_110] : memref<2x22x128xf32, #tpu.memory_space<vmem>>, vector<1x1x16xf32>
    %191 = vector.shape_cast %190 : vector<1x1x16xf32> to vector<1x16xf32>
    %192 = vector.shape_cast %189 : vector<1x16xf32> to vector<1x1x16xf32>
    tpu.vector_store %arg6[%c0_108, %c12_109, %c3_110], %192 {strides = array<i32>} : memref<2x22x128xf32, #tpu.memory_space<vmem>>, vector<1x1x16xf32>,
    %c1_111 = arith.constant 1 : index
    %c144_112 = arith.constant 144 : index
    %193 = vector.load %arg7[%c1_111, %c144_112] : memref<3x256xf32, #tpu.memory_space<vmem>>, vector<1x16xf32>
    %c1_113 = arith.constant 1 : index
    %c12_114 = arith.constant 12 : index
    %c3_115 = arith.constant 3 : index
    %194 = vector.load %arg6[%c1_113, %c12_114, %c3_115] : memref<2x22x128xf32, #tpu.memory_space<vmem>>, vector<1x1x16xf32>
    %195 = vector.shape_cast %194 : vector<1x1x16xf32> to vector<1x16xf32>
    %196 = vector.shape_cast %193 : vector<1x16xf32> to vector<1x1x16xf32>
    tpu.vector_store %arg6[%c1_113, %c12_114, %c3_115], %196 {strides = array<i32>} : memref<2x22x128xf32, #tpu.memory_space<vmem>>, vector<1x1x16xf32>,
    %c0_116 = arith.constant 0 : index
    %c160 = arith.constant 160 : index
    %197 = vector.load %arg7[%c0_116, %c160] : memref<3x256xf32, #tpu.memory_space<vmem>>, vector<1x16xf32>
    %c0_117 = arith.constant 0 : index
    %c13_118 = arith.constant 13 : index
    %c3_119 = arith.constant 3 : index
    %198 = vector.load %arg6[%c0_117, %c13_118, %c3_119] : memref<2x22x128xf32, #tpu.memory_space<vmem>>, vector<1x1x16xf32>
    %199 = vector.shape_cast %198 : vector<1x1x16xf32> to vector<1x16xf32>
    %200 = vector.shape_cast %197 : vector<1x16xf32> to vector<1x1x16xf32>
    tpu.vector_store %arg6[%c0_117, %c13_118, %c3_119], %200 {strides = array<i32>} : memref<2x22x128xf32, #tpu.memory_space<vmem>>, vector<1x1x16xf32>,
    %c1_120 = arith.constant 1 : index
    %c160_121 = arith.constant 160 : index
    %201 = vector.load %arg7[%c1_120, %c160_121] : memref<3x256xf32, #tpu.memory_space<vmem>>, vector<1x16xf32>
    %c1_122 = arith.constant 1 : index
    %c13_123 = arith.constant 13 : index
    %c3_124 = arith.constant 3 : index
    %202 = vector.load %arg6[%c1_122, %c13_123, %c3_124] : memref<2x22x128xf32, #tpu.memory_space<vmem>>, vector<1x1x16xf32>
    %203 = vector.shape_cast %202 : vector<1x1x16xf32> to vector<1x16xf32>
    %204 = vector.shape_cast %201 : vector<1x16xf32> to vector<1x1x16xf32>
    tpu.vector_store %arg6[%c1_122, %c13_123, %c3_124], %204 {strides = array<i32>} : memref<2x22x128xf32, #tpu.memory_space<vmem>>, vector<1x1x16xf32>,
    %c0_125 = arith.constant 0 : index
    %c176 = arith.constant 176 : index
    %205 = vector.load %arg7[%c0_125, %c176] : memref<3x256xf32, #tpu.memory_space<vmem>>, vector<1x16xf32>
    %c0_126 = arith.constant 0 : index
    %c14_127 = arith.constant 14 : index
    %c3_128 = arith.constant 3 : index
    %206 = vector.load %arg6[%c0_126, %c14_127, %c3_128] : memref<2x22x128xf32, #tpu.memory_space<vmem>>, vector<1x1x16xf32>
    %207 = vector.shape_cast %206 : vector<1x1x16xf32> to vector<1x16xf32>
    %208 = vector.shape_cast %205 : vector<1x16xf32> to vector<1x1x16xf32>
    tpu.vector_store %arg6[%c0_126, %c14_127, %c3_128], %208 {strides = array<i32>} : memref<2x22x128xf32, #tpu.memory_space<vmem>>, vector<1x1x16xf32>,
    %c1_129 = arith.constant 1 : index
    %c176_130 = arith.constant 176 : index
    %209 = vector.load %arg7[%c1_129, %c176_130] : memref<3x256xf32, #tpu.memory_space<vmem>>, vector<1x16xf32>
    %c1_131 = arith.constant 1 : index
    %c14_132 = arith.constant 14 : index
    %c3_133 = arith.constant 3 : index
    %210 = vector.load %arg6[%c1_131, %c14_132, %c3_133] : memref<2x22x128xf32, #tpu.memory_space<vmem>>, vector<1x1x16xf32>
    %211 = vector.shape_cast %210 : vector<1x1x16xf32> to vector<1x16xf32>
    %212 = vector.shape_cast %209 : vector<1x16xf32> to vector<1x1x16xf32>
    tpu.vector_store %arg6[%c1_131, %c14_132, %c3_133], %212 {strides = array<i32>} : memref<2x22x128xf32, #tpu.memory_space<vmem>>, vector<1x1x16xf32>,
    %c0_134 = arith.constant 0 : index
    %c192 = arith.constant 192 : index
    %213 = vector.load %arg7[%c0_134, %c192] : memref<3x256xf32, #tpu.memory_space<vmem>>, vector<1x16xf32>
    %c0_135 = arith.constant 0 : index
    %c15_136 = arith.constant 15 : index
    %c3_137 = arith.constant 3 : index
    %214 = vector.load %arg6[%c0_135, %c15_136, %c3_137] : memref<2x22x128xf32, #tpu.memory_space<vmem>>, vector<1x1x16xf32>
    %215 = vector.shape_cast %214 : vector<1x1x16xf32> to vector<1x16xf32>
    %216 = vector.shape_cast %213 : vector<1x16xf32> to vector<1x1x16xf32>
    tpu.vector_store %arg6[%c0_135, %c15_136, %c3_137], %216 {strides = array<i32>} : memref<2x22x128xf32, #tpu.memory_space<vmem>>, vector<1x1x16xf32>,
    %c1_138 = arith.constant 1 : index
    %c192_139 = arith.constant 192 : index
    %217 = vector.load %arg7[%c1_138, %c192_139] : memref<3x256xf32, #tpu.memory_space<vmem>>, vector<1x16xf32>
    %c1_140 = arith.constant 1 : index
    %c15_141 = arith.constant 15 : index
    %c3_142 = arith.constant 3 : index
    %218 = vector.load %arg6[%c1_140, %c15_141, %c3_142] : memref<2x22x128xf32, #tpu.memory_space<vmem>>, vector<1x1x16xf32>
    %219 = vector.shape_cast %218 : vector<1x1x16xf32> to vector<1x16xf32>
    %220 = vector.shape_cast %217 : vector<1x16xf32> to vector<1x1x16xf32>
    tpu.vector_store %arg6[%c1_140, %c15_141, %c3_142], %220 {strides = array<i32>} : memref<2x22x128xf32, #tpu.memory_space<vmem>>, vector<1x1x16xf32>,
    %c0_143 = arith.constant 0 : index
    %c208 = arith.constant 208 : index
    %221 = vector.load %arg7[%c0_143, %c208] : memref<3x256xf32, #tpu.memory_space<vmem>>, vector<1x16xf32>
    %c0_144 = arith.constant 0 : index
    %c16_145 = arith.constant 16 : index
    %c3_146 = arith.constant 3 : index
    %222 = vector.load %arg6[%c0_144, %c16_145, %c3_146] : memref<2x22x128xf32, #tpu.memory_space<vmem>>, vector<1x1x16xf32>
    %223 = vector.shape_cast %222 : vector<1x1x16xf32> to vector<1x16xf32>
    %224 = vector.shape_cast %221 : vector<1x16xf32> to vector<1x1x16xf32>
    tpu.vector_store %arg6[%c0_144, %c16_145, %c3_146], %224 {strides = array<i32>} : memref<2x22x128xf32, #tpu.memory_space<vmem>>, vector<1x1x16xf32>,
    %c1_147 = arith.constant 1 : index
    %c208_148 = arith.constant 208 : index
    %225 = vector.load %arg7[%c1_147, %c208_148] : memref<3x256xf32, #tpu.memory_space<vmem>>, vector<1x16xf32>
    %c1_149 = arith.constant 1 : index
    %c16_150 = arith.constant 16 : index
    %c3_151 = arith.constant 3 : index
    %226 = vector.load %arg6[%c1_149, %c16_150, %c3_151] : memref<2x22x128xf32, #tpu.memory_space<vmem>>, vector<1x1x16xf32>
    %227 = vector.shape_cast %226 : vector<1x1x16xf32> to vector<1x16xf32>
    %228 = vector.shape_cast %225 : vector<1x16xf32> to vector<1x1x16xf32>
    tpu.vector_store %arg6[%c1_149, %c16_150, %c3_151], %228 {strides = array<i32>} : memref<2x22x128xf32, #tpu.memory_space<vmem>>, vector<1x1x16xf32>,
    %c0_152 = arith.constant 0 : index
    %c224 = arith.constant 224 : index
    %229 = vector.load %arg7[%c0_152, %c224] : memref<3x256xf32, #tpu.memory_space<vmem>>, vector<1x16xf32>
    %c0_153 = arith.constant 0 : index
    %c17_154 = arith.constant 17 : index
    %c3_155 = arith.constant 3 : index
    %230 = vector.load %arg6[%c0_153, %c17_154, %c3_155] : memref<2x22x128xf32, #tpu.memory_space<vmem>>, vector<1x1x16xf32>
    %231 = vector.shape_cast %230 : vector<1x1x16xf32> to vector<1x16xf32>
    %232 = vector.shape_cast %229 : vector<1x16xf32> to vector<1x1x16xf32>
    tpu.vector_store %arg6[%c0_153, %c17_154, %c3_155], %232 {strides = array<i32>} : memref<2x22x128xf32, #tpu.memory_space<vmem>>, vector<1x1x16xf32>,
    %c1_156 = arith.constant 1 : index
    %c224_157 = arith.constant 224 : index
    %233 = vector.load %arg7[%c1_156, %c224_157] : memref<3x256xf32, #tpu.memory_space<vmem>>, vector<1x16xf32>
    %c1_158 = arith.constant 1 : index
    %c17_159 = arith.constant 17 : index
    %c3_160 = arith.constant 3 : index
    %234 = vector.load %arg6[%c1_158, %c17_159, %c3_160] : memref<2x22x128xf32, #tpu.memory_space<vmem>>, vector<1x1x16xf32>
    %235 = vector.shape_cast %234 : vector<1x1x16xf32> to vector<1x16xf32>
    %236 = vector.shape_cast %233 : vector<1x16xf32> to vector<1x1x16xf32>
    tpu.vector_store %arg6[%c1_158, %c17_159, %c3_160], %236 {strides = array<i32>} : memref<2x22x128xf32, #tpu.memory_space<vmem>>, vector<1x1x16xf32>,
    %c0_161 = arith.constant 0 : index
    %c240 = arith.constant 240 : index
    %237 = vector.load %arg7[%c0_161, %c240] : memref<3x256xf32, #tpu.memory_space<vmem>>, vector<1x16xf32>
    %c0_162 = arith.constant 0 : index
    %c18_163 = arith.constant 18 : index
    %c3_164 = arith.constant 3 : index
    %238 = vector.load %arg6[%c0_162, %c18_163, %c3_164] : memref<2x22x128xf32, #tpu.memory_space<vmem>>, vector<1x1x16xf32>
    %239 = vector.shape_cast %238 : vector<1x1x16xf32> to vector<1x16xf32>
    %240 = vector.shape_cast %237 : vector<1x16xf32> to vector<1x1x16xf32>
    tpu.vector_store %arg6[%c0_162, %c18_163, %c3_164], %240 {strides = array<i32>} : memref<2x22x128xf32, #tpu.memory_space<vmem>>, vector<1x1x16xf32>,
    %c1_165 = arith.constant 1 : index
    %c240_166 = arith.constant 240 : index
    %241 = vector.load %arg7[%c1_165, %c240_166] : memref<3x256xf32, #tpu.memory_space<vmem>>, vector<1x16xf32>
    %c1_167 = arith.constant 1 : index
    %c18_168 = arith.constant 18 : index
    %c3_169 = arith.constant 3 : index
    %242 = vector.load %arg6[%c1_167, %c18_168, %c3_169] : memref<2x22x128xf32, #tpu.memory_space<vmem>>, vector<1x1x16xf32>
    %243 = vector.shape_cast %242 : vector<1x1x16xf32> to vector<1x16xf32>
    %244 = vector.shape_cast %241 : vector<1x16xf32> to vector<1x1x16xf32>
    tpu.vector_store %arg6[%c1_167, %c18_168, %c3_169], %244 {strides = array<i32>} : memref<2x22x128xf32, #tpu.memory_space<vmem>>, vector<1x1x16xf32>,
    %cst_170 = arith.constant 0.000000e+00 : f32
    %245 = vector.broadcast %cst_170 : f32 to vector<16x16xf32>
    %cst_171 = arith.constant 0.000000e+00 : f32
    %246 = vector.broadcast %cst_171 : f32 to vector<16x16xf32>
    %cst_172 = arith.constant 0.000000e+00 : f32
    %247 = vector.broadcast %cst_172 : f32 to vector<16x16xf32>
    %cst_173 = arith.constant 0.000000e+00 : f32
    %248 = vector.broadcast %cst_173 : f32 to vector<16x16xf32>
    %c0_174 = arith.constant 0 : index
    %c0_175 = arith.constant 0 : index
    %c0_176 = arith.constant 0 : index
    %249 = vector.load %arg6[%c0_174, %c0_175, %c0_176] : memref<2x22x128xf32, #tpu.memory_space<vmem>>, vector<1x22x16xf32>
    %250 = vector.shape_cast %249 : vector<1x22x16xf32> to vector<22x16xf32>
    %251 = vector.extract_strided_slice %250 {offsets = [0, 0], sizes = [16, 16], strides = [1, 1]} : vector<22x16xf32> to vector<16x16xf32>
    %252 = vector.broadcast %0 : f32 to vector<16x16xf32>
    %253 = arith.mulf %252, %251 : vector<16x16xf32>
    %254 = arith.addf %245, %253 : vector<16x16xf32>
    %255 = vector.extract_strided_slice %250 {offsets = [1, 0], sizes = [16, 16], strides = [1, 1]} : vector<22x16xf32> to vector<16x16xf32>
    %256 = vector.broadcast %7 : f32 to vector<16x16xf32>
    %257 = arith.mulf %256, %255 : vector<16x16xf32>
    %258 = arith.addf %254, %257 : vector<16x16xf32>
    %259 = vector.extract_strided_slice %250 {offsets = [2, 0], sizes = [16, 16], strides = [1, 1]} : vector<22x16xf32> to vector<16x16xf32>
    %260 = vector.broadcast %14 : f32 to vector<16x16xf32>
    %261 = arith.mulf %260, %259 : vector<16x16xf32>
    %262 = arith.addf %258, %261 : vector<16x16xf32>
    %263 = vector.extract_strided_slice %250 {offsets = [3, 0], sizes = [16, 16], strides = [1, 1]} : vector<22x16xf32> to vector<16x16xf32>
    %264 = vector.broadcast %21 : f32 to vector<16x16xf32>
    %265 = arith.mulf %264, %263 : vector<16x16xf32>
    %266 = arith.addf %262, %265 : vector<16x16xf32>
    %267 = vector.extract_strided_slice %250 {offsets = [4, 0], sizes = [16, 16], strides = [1, 1]} : vector<22x16xf32> to vector<16x16xf32>
    %268 = vector.broadcast %28 : f32 to vector<16x16xf32>
    %269 = arith.mulf %268, %267 : vector<16x16xf32>
    %270 = arith.addf %266, %269 : vector<16x16xf32>
    %271 = vector.extract_strided_slice %250 {offsets = [5, 0], sizes = [16, 16], strides = [1, 1]} : vector<22x16xf32> to vector<16x16xf32>
    %272 = vector.broadcast %35 : f32 to vector<16x16xf32>
    %273 = arith.mulf %272, %271 : vector<16x16xf32>
    %274 = arith.addf %270, %273 : vector<16x16xf32>
    %275 = vector.extract_strided_slice %250 {offsets = [6, 0], sizes = [16, 16], strides = [1, 1]} : vector<22x16xf32> to vector<16x16xf32>
    %276 = vector.broadcast %42 : f32 to vector<16x16xf32>
    %277 = arith.mulf %276, %275 : vector<16x16xf32>
    %278 = arith.addf %274, %277 : vector<16x16xf32>
    %c0_177 = arith.constant 0 : index
    %c0_178 = arith.constant 0 : index
    %c1_179 = arith.constant 1 : index
    %279 = vector.load %arg6[%c0_177, %c0_178, %c1_179] : memref<2x22x128xf32, #tpu.memory_space<vmem>>, vector<1x22x16xf32>
    %280 = vector.shape_cast %279 : vector<1x22x16xf32> to vector<22x16xf32>
    %281 = vector.extract_strided_slice %280 {offsets = [0, 0], sizes = [16, 16], strides = [1, 1]} : vector<22x16xf32> to vector<16x16xf32>
    %282 = vector.broadcast %1 : f32 to vector<16x16xf32>
    %283 = arith.mulf %282, %281 : vector<16x16xf32>
    %284 = arith.addf %246, %283 : vector<16x16xf32>
    %285 = vector.extract_strided_slice %280 {offsets = [1, 0], sizes = [16, 16], strides = [1, 1]} : vector<22x16xf32> to vector<16x16xf32>
    %286 = vector.broadcast %8 : f32 to vector<16x16xf32>
    %287 = arith.mulf %286, %285 : vector<16x16xf32>
    %288 = arith.addf %284, %287 : vector<16x16xf32>
    %289 = vector.extract_strided_slice %280 {offsets = [2, 0], sizes = [16, 16], strides = [1, 1]} : vector<22x16xf32> to vector<16x16xf32>
    %290 = vector.broadcast %15 : f32 to vector<16x16xf32>
    %291 = arith.mulf %290, %289 : vector<16x16xf32>
    %292 = arith.addf %288, %291 : vector<16x16xf32>
    %293 = vector.extract_strided_slice %280 {offsets = [3, 0], sizes = [16, 16], strides = [1, 1]} : vector<22x16xf32> to vector<16x16xf32>
    %294 = vector.broadcast %22 : f32 to vector<16x16xf32>
    %295 = arith.mulf %294, %293 : vector<16x16xf32>
    %296 = arith.addf %292, %295 : vector<16x16xf32>
    %297 = vector.extract_strided_slice %280 {offsets = [4, 0], sizes = [16, 16], strides = [1, 1]} : vector<22x16xf32> to vector<16x16xf32>
    %298 = vector.broadcast %29 : f32 to vector<16x16xf32>
    %299 = arith.mulf %298, %297 : vector<16x16xf32>
    %300 = arith.addf %296, %299 : vector<16x16xf32>
    %301 = vector.extract_strided_slice %280 {offsets = [5, 0], sizes = [16, 16], strides = [1, 1]} : vector<22x16xf32> to vector<16x16xf32>
    %302 = vector.broadcast %36 : f32 to vector<16x16xf32>
    %303 = arith.mulf %302, %301 : vector<16x16xf32>
    %304 = arith.addf %300, %303 : vector<16x16xf32>
    %305 = vector.extract_strided_slice %280 {offsets = [6, 0], sizes = [16, 16], strides = [1, 1]} : vector<22x16xf32> to vector<16x16xf32>
    %306 = vector.broadcast %43 : f32 to vector<16x16xf32>
    %307 = arith.mulf %306, %305 : vector<16x16xf32>
    %308 = arith.addf %304, %307 : vector<16x16xf32>
    %c0_180 = arith.constant 0 : index
    %c0_181 = arith.constant 0 : index
    %c2_182 = arith.constant 2 : index
    %309 = vector.load %arg6[%c0_180, %c0_181, %c2_182] : memref<2x22x128xf32, #tpu.memory_space<vmem>>, vector<1x22x16xf32>
    %310 = vector.shape_cast %309 : vector<1x22x16xf32> to vector<22x16xf32>
    %311 = vector.extract_strided_slice %310 {offsets = [0, 0], sizes = [16, 16], strides = [1, 1]} : vector<22x16xf32> to vector<16x16xf32>
    %312 = vector.broadcast %2 : f32 to vector<16x16xf32>
    %313 = arith.mulf %312, %311 : vector<16x16xf32>
    %314 = arith.addf %278, %313 : vector<16x16xf32>
    %315 = vector.extract_strided_slice %310 {offsets = [1, 0], sizes = [16, 16], strides = [1, 1]} : vector<22x16xf32> to vector<16x16xf32>
    %316 = vector.broadcast %9 : f32 to vector<16x16xf32>
    %317 = arith.mulf %316, %315 : vector<16x16xf32>
    %318 = arith.addf %314, %317 : vector<16x16xf32>
    %319 = vector.extract_strided_slice %310 {offsets = [2, 0], sizes = [16, 16], strides = [1, 1]} : vector<22x16xf32> to vector<16x16xf32>
    %320 = vector.broadcast %16 : f32 to vector<16x16xf32>
    %321 = arith.mulf %320, %319 : vector<16x16xf32>
    %322 = arith.addf %318, %321 : vector<16x16xf32>
    %323 = vector.extract_strided_slice %310 {offsets = [3, 0], sizes = [16, 16], strides = [1, 1]} : vector<22x16xf32> to vector<16x16xf32>
    %324 = vector.broadcast %23 : f32 to vector<16x16xf32>
    %325 = arith.mulf %324, %323 : vector<16x16xf32>
    %326 = arith.addf %322, %325 : vector<16x16xf32>
    %327 = vector.extract_strided_slice %310 {offsets = [4, 0], sizes = [16, 16], strides = [1, 1]} : vector<22x16xf32> to vector<16x16xf32>
    %328 = vector.broadcast %30 : f32 to vector<16x16xf32>
    %329 = arith.mulf %328, %327 : vector<16x16xf32>
    %330 = arith.addf %326, %329 : vector<16x16xf32>
    %331 = vector.extract_strided_slice %310 {offsets = [5, 0], sizes = [16, 16], strides = [1, 1]} : vector<22x16xf32> to vector<16x16xf32>
    %332 = vector.broadcast %37 : f32 to vector<16x16xf32>
    %333 = arith.mulf %332, %331 : vector<16x16xf32>
    %334 = arith.addf %330, %333 : vector<16x16xf32>
    %335 = vector.extract_strided_slice %310 {offsets = [6, 0], sizes = [16, 16], strides = [1, 1]} : vector<22x16xf32> to vector<16x16xf32>
    %336 = vector.broadcast %44 : f32 to vector<16x16xf32>
    %337 = arith.mulf %336, %335 : vector<16x16xf32>
    %338 = arith.addf %334, %337 : vector<16x16xf32>
    %c0_183 = arith.constant 0 : index
    %c0_184 = arith.constant 0 : index
    %c3_185 = arith.constant 3 : index
    %339 = vector.load %arg6[%c0_183, %c0_184, %c3_185] : memref<2x22x128xf32, #tpu.memory_space<vmem>>, vector<1x22x16xf32>
    %340 = vector.shape_cast %339 : vector<1x22x16xf32> to vector<22x16xf32>
    %341 = vector.extract_strided_slice %340 {offsets = [0, 0], sizes = [16, 16], strides = [1, 1]} : vector<22x16xf32> to vector<16x16xf32>
    %342 = vector.broadcast %3 : f32 to vector<16x16xf32>
    %343 = arith.mulf %342, %341 : vector<16x16xf32>
    %344 = arith.addf %308, %343 : vector<16x16xf32>
    %345 = vector.extract_strided_slice %340 {offsets = [1, 0], sizes = [16, 16], strides = [1, 1]} : vector<22x16xf32> to vector<16x16xf32>
    %346 = vector.broadcast %10 : f32 to vector<16x16xf32>
    %347 = arith.mulf %346, %345 : vector<16x16xf32>
    %348 = arith.addf %344, %347 : vector<16x16xf32>
    %349 = vector.extract_strided_slice %340 {offsets = [2, 0], sizes = [16, 16], strides = [1, 1]} : vector<22x16xf32> to vector<16x16xf32>
    %350 = vector.broadcast %17 : f32 to vector<16x16xf32>
    %351 = arith.mulf %350, %349 : vector<16x16xf32>
    %352 = arith.addf %348, %351 : vector<16x16xf32>
    %353 = vector.extract_strided_slice %340 {offsets = [3, 0], sizes = [16, 16], strides = [1, 1]} : vector<22x16xf32> to vector<16x16xf32>
    %354 = vector.broadcast %24 : f32 to vector<16x16xf32>
    %355 = arith.mulf %354, %353 : vector<16x16xf32>
    %356 = arith.addf %352, %355 : vector<16x16xf32>
    %357 = vector.extract_strided_slice %340 {offsets = [4, 0], sizes = [16, 16], strides = [1, 1]} : vector<22x16xf32> to vector<16x16xf32>
    %358 = vector.broadcast %31 : f32 to vector<16x16xf32>
    %359 = arith.mulf %358, %357 : vector<16x16xf32>
    %360 = arith.addf %356, %359 : vector<16x16xf32>
    %361 = vector.extract_strided_slice %340 {offsets = [5, 0], sizes = [16, 16], strides = [1, 1]} : vector<22x16xf32> to vector<16x16xf32>
    %362 = vector.broadcast %38 : f32 to vector<16x16xf32>
    %363 = arith.mulf %362, %361 : vector<16x16xf32>
    %364 = arith.addf %360, %363 : vector<16x16xf32>
    %365 = vector.extract_strided_slice %340 {offsets = [6, 0], sizes = [16, 16], strides = [1, 1]} : vector<22x16xf32> to vector<16x16xf32>
    %366 = vector.broadcast %45 : f32 to vector<16x16xf32>
    %367 = arith.mulf %366, %365 : vector<16x16xf32>
    %368 = arith.addf %364, %367 : vector<16x16xf32>
    %c0_186 = arith.constant 0 : index
    %c0_187 = arith.constant 0 : index
    %c4_188 = arith.constant 4 : index
    %369 = vector.load %arg6[%c0_186, %c0_187, %c4_188] : memref<2x22x128xf32, #tpu.memory_space<vmem>>, vector<1x22x16xf32>
    %370 = vector.shape_cast %369 : vector<1x22x16xf32> to vector<22x16xf32>
    %371 = vector.extract_strided_slice %370 {offsets = [0, 0], sizes = [16, 16], strides = [1, 1]} : vector<22x16xf32> to vector<16x16xf32>
    %372 = vector.broadcast %4 : f32 to vector<16x16xf32>
    %373 = arith.mulf %372, %371 : vector<16x16xf32>
    %374 = arith.addf %338, %373 : vector<16x16xf32>
    %375 = vector.extract_strided_slice %370 {offsets = [1, 0], sizes = [16, 16], strides = [1, 1]} : vector<22x16xf32> to vector<16x16xf32>
    %376 = vector.broadcast %11 : f32 to vector<16x16xf32>
    %377 = arith.mulf %376, %375 : vector<16x16xf32>
    %378 = arith.addf %374, %377 : vector<16x16xf32>
    %379 = vector.extract_strided_slice %370 {offsets = [2, 0], sizes = [16, 16], strides = [1, 1]} : vector<22x16xf32> to vector<16x16xf32>
    %380 = vector.broadcast %18 : f32 to vector<16x16xf32>
    %381 = arith.mulf %380, %379 : vector<16x16xf32>
    %382 = arith.addf %378, %381 : vector<16x16xf32>
    %383 = vector.extract_strided_slice %370 {offsets = [3, 0], sizes = [16, 16], strides = [1, 1]} : vector<22x16xf32> to vector<16x16xf32>
    %384 = vector.broadcast %25 : f32 to vector<16x16xf32>
    %385 = arith.mulf %384, %383 : vector<16x16xf32>
    %386 = arith.addf %382, %385 : vector<16x16xf32>
    %387 = vector.extract_strided_slice %370 {offsets = [4, 0], sizes = [16, 16], strides = [1, 1]} : vector<22x16xf32> to vector<16x16xf32>
    %388 = vector.broadcast %32 : f32 to vector<16x16xf32>
    %389 = arith.mulf %388, %387 : vector<16x16xf32>
    %390 = arith.addf %386, %389 : vector<16x16xf32>
    %391 = vector.extract_strided_slice %370 {offsets = [5, 0], sizes = [16, 16], strides = [1, 1]} : vector<22x16xf32> to vector<16x16xf32>
    %392 = vector.broadcast %39 : f32 to vector<16x16xf32>
    %393 = arith.mulf %392, %391 : vector<16x16xf32>
    %394 = arith.addf %390, %393 : vector<16x16xf32>
    %395 = vector.extract_strided_slice %370 {offsets = [6, 0], sizes = [16, 16], strides = [1, 1]} : vector<22x16xf32> to vector<16x16xf32>
    %396 = vector.broadcast %46 : f32 to vector<16x16xf32>
    %397 = arith.mulf %396, %395 : vector<16x16xf32>
    %398 = arith.addf %394, %397 : vector<16x16xf32>
    %c0_189 = arith.constant 0 : index
    %c0_190 = arith.constant 0 : index
    %c5_191 = arith.constant 5 : index
    %399 = vector.load %arg6[%c0_189, %c0_190, %c5_191] : memref<2x22x128xf32, #tpu.memory_space<vmem>>, vector<1x22x16xf32>
    %400 = vector.shape_cast %399 : vector<1x22x16xf32> to vector<22x16xf32>
    %401 = vector.extract_strided_slice %400 {offsets = [0, 0], sizes = [16, 16], strides = [1, 1]} : vector<22x16xf32> to vector<16x16xf32>
    %402 = vector.broadcast %5 : f32 to vector<16x16xf32>
    %403 = arith.mulf %402, %401 : vector<16x16xf32>
    %404 = arith.addf %368, %403 : vector<16x16xf32>
    %405 = vector.extract_strided_slice %400 {offsets = [1, 0], sizes = [16, 16], strides = [1, 1]} : vector<22x16xf32> to vector<16x16xf32>
    %406 = vector.broadcast %12 : f32 to vector<16x16xf32>
    %407 = arith.mulf %406, %405 : vector<16x16xf32>
    %408 = arith.addf %404, %407 : vector<16x16xf32>
    %409 = vector.extract_strided_slice %400 {offsets = [2, 0], sizes = [16, 16], strides = [1, 1]} : vector<22x16xf32> to vector<16x16xf32>
    %410 = vector.broadcast %19 : f32 to vector<16x16xf32>
    %411 = arith.mulf %410, %409 : vector<16x16xf32>
    %412 = arith.addf %408, %411 : vector<16x16xf32>
    %413 = vector.extract_strided_slice %400 {offsets = [3, 0], sizes = [16, 16], strides = [1, 1]} : vector<22x16xf32> to vector<16x16xf32>
    %414 = vector.broadcast %26 : f32 to vector<16x16xf32>
    %415 = arith.mulf %414, %413 : vector<16x16xf32>
    %416 = arith.addf %412, %415 : vector<16x16xf32>
    %417 = vector.extract_strided_slice %400 {offsets = [4, 0], sizes = [16, 16], strides = [1, 1]} : vector<22x16xf32> to vector<16x16xf32>
    %418 = vector.broadcast %33 : f32 to vector<16x16xf32>
    %419 = arith.mulf %418, %417 : vector<16x16xf32>
    %420 = arith.addf %416, %419 : vector<16x16xf32>
    %421 = vector.extract_strided_slice %400 {offsets = [5, 0], sizes = [16, 16], strides = [1, 1]} : vector<22x16xf32> to vector<16x16xf32>
    %422 = vector.broadcast %40 : f32 to vector<16x16xf32>
    %423 = arith.mulf %422, %421 : vector<16x16xf32>
    %424 = arith.addf %420, %423 : vector<16x16xf32>
    %425 = vector.extract_strided_slice %400 {offsets = [6, 0], sizes = [16, 16], strides = [1, 1]} : vector<22x16xf32> to vector<16x16xf32>
    %426 = vector.broadcast %47 : f32 to vector<16x16xf32>
    %427 = arith.mulf %426, %425 : vector<16x16xf32>
    %428 = arith.addf %424, %427 : vector<16x16xf32>
    %c0_192 = arith.constant 0 : index
    %c0_193 = arith.constant 0 : index
    %c6_194 = arith.constant 6 : index
    %429 = vector.load %arg6[%c0_192, %c0_193, %c6_194] : memref<2x22x128xf32, #tpu.memory_space<vmem>>, vector<1x22x16xf32>
    %430 = vector.shape_cast %429 : vector<1x22x16xf32> to vector<22x16xf32>
    %431 = vector.extract_strided_slice %430 {offsets = [0, 0], sizes = [16, 16], strides = [1, 1]} : vector<22x16xf32> to vector<16x16xf32>
    %432 = vector.broadcast %6 : f32 to vector<16x16xf32>
    %433 = arith.mulf %432, %431 : vector<16x16xf32>
    %434 = arith.addf %398, %433 : vector<16x16xf32>
    %435 = vector.extract_strided_slice %430 {offsets = [1, 0], sizes = [16, 16], strides = [1, 1]} : vector<22x16xf32> to vector<16x16xf32>
    %436 = vector.broadcast %13 : f32 to vector<16x16xf32>
    %437 = arith.mulf %436, %435 : vector<16x16xf32>
    %438 = arith.addf %434, %437 : vector<16x16xf32>
    %439 = vector.extract_strided_slice %430 {offsets = [2, 0], sizes = [16, 16], strides = [1, 1]} : vector<22x16xf32> to vector<16x16xf32>
    %440 = vector.broadcast %20 : f32 to vector<16x16xf32>
    %441 = arith.mulf %440, %439 : vector<16x16xf32>
    %442 = arith.addf %438, %441 : vector<16x16xf32>
    %443 = vector.extract_strided_slice %430 {offsets = [3, 0], sizes = [16, 16], strides = [1, 1]} : vector<22x16xf32> to vector<16x16xf32>
    %444 = vector.broadcast %27 : f32 to vector<16x16xf32>
    %445 = arith.mulf %444, %443 : vector<16x16xf32>
    %446 = arith.addf %442, %445 : vector<16x16xf32>
    %447 = vector.extract_strided_slice %430 {offsets = [4, 0], sizes = [16, 16], strides = [1, 1]} : vector<22x16xf32> to vector<16x16xf32>
    %448 = vector.broadcast %34 : f32 to vector<16x16xf32>
    %449 = arith.mulf %448, %447 : vector<16x16xf32>
    %450 = arith.addf %446, %449 : vector<16x16xf32>
    %451 = vector.extract_strided_slice %430 {offsets = [5, 0], sizes = [16, 16], strides = [1, 1]} : vector<22x16xf32> to vector<16x16xf32>
    %452 = vector.broadcast %41 : f32 to vector<16x16xf32>
    %453 = arith.mulf %452, %451 : vector<16x16xf32>
    %454 = arith.addf %450, %453 : vector<16x16xf32>
    %455 = vector.extract_strided_slice %430 {offsets = [6, 0], sizes = [16, 16], strides = [1, 1]} : vector<22x16xf32> to vector<16x16xf32>
    %456 = vector.broadcast %48 : f32 to vector<16x16xf32>
    %457 = arith.mulf %456, %455 : vector<16x16xf32>
    %458 = arith.addf %454, %457 : vector<16x16xf32>
    %c1_195 = arith.constant 1 : index
    %c0_196 = arith.constant 0 : index
    %c0_197 = arith.constant 0 : index
    %459 = vector.load %arg6[%c1_195, %c0_196, %c0_197] : memref<2x22x128xf32, #tpu.memory_space<vmem>>, vector<1x22x16xf32>
    %460 = vector.shape_cast %459 : vector<1x22x16xf32> to vector<22x16xf32>
    %461 = vector.extract_strided_slice %460 {offsets = [0, 0], sizes = [16, 16], strides = [1, 1]} : vector<22x16xf32> to vector<16x16xf32>
    %462 = vector.broadcast %49 : f32 to vector<16x16xf32>
    %463 = arith.mulf %462, %461 : vector<16x16xf32>
    %464 = arith.addf %247, %463 : vector<16x16xf32>
    %465 = vector.extract_strided_slice %460 {offsets = [1, 0], sizes = [16, 16], strides = [1, 1]} : vector<22x16xf32> to vector<16x16xf32>
    %466 = vector.broadcast %56 : f32 to vector<16x16xf32>
    %467 = arith.mulf %466, %465 : vector<16x16xf32>
    %468 = arith.addf %464, %467 : vector<16x16xf32>
    %469 = vector.extract_strided_slice %460 {offsets = [2, 0], sizes = [16, 16], strides = [1, 1]} : vector<22x16xf32> to vector<16x16xf32>
    %470 = vector.broadcast %63 : f32 to vector<16x16xf32>
    %471 = arith.mulf %470, %469 : vector<16x16xf32>
    %472 = arith.addf %468, %471 : vector<16x16xf32>
    %473 = vector.extract_strided_slice %460 {offsets = [3, 0], sizes = [16, 16], strides = [1, 1]} : vector<22x16xf32> to vector<16x16xf32>
    %474 = vector.broadcast %70 : f32 to vector<16x16xf32>
    %475 = arith.mulf %474, %473 : vector<16x16xf32>
    %476 = arith.addf %472, %475 : vector<16x16xf32>
    %477 = vector.extract_strided_slice %460 {offsets = [4, 0], sizes = [16, 16], strides = [1, 1]} : vector<22x16xf32> to vector<16x16xf32>
    %478 = vector.broadcast %77 : f32 to vector<16x16xf32>
    %479 = arith.mulf %478, %477 : vector<16x16xf32>
    %480 = arith.addf %476, %479 : vector<16x16xf32>
    %481 = vector.extract_strided_slice %460 {offsets = [5, 0], sizes = [16, 16], strides = [1, 1]} : vector<22x16xf32> to vector<16x16xf32>
    %482 = vector.broadcast %84 : f32 to vector<16x16xf32>
    %483 = arith.mulf %482, %481 : vector<16x16xf32>
    %484 = arith.addf %480, %483 : vector<16x16xf32>
    %485 = vector.extract_strided_slice %460 {offsets = [6, 0], sizes = [16, 16], strides = [1, 1]} : vector<22x16xf32> to vector<16x16xf32>
    %486 = vector.broadcast %91 : f32 to vector<16x16xf32>
    %487 = arith.mulf %486, %485 : vector<16x16xf32>
    %488 = arith.addf %484, %487 : vector<16x16xf32>
    %c1_198 = arith.constant 1 : index
    %c0_199 = arith.constant 0 : index
    %c1_200 = arith.constant 1 : index
    %489 = vector.load %arg6[%c1_198, %c0_199, %c1_200] : memref<2x22x128xf32, #tpu.memory_space<vmem>>, vector<1x22x16xf32>
    %490 = vector.shape_cast %489 : vector<1x22x16xf32> to vector<22x16xf32>
    %491 = vector.extract_strided_slice %490 {offsets = [0, 0], sizes = [16, 16], strides = [1, 1]} : vector<22x16xf32> to vector<16x16xf32>
    %492 = vector.broadcast %50 : f32 to vector<16x16xf32>
    %493 = arith.mulf %492, %491 : vector<16x16xf32>
    %494 = arith.addf %248, %493 : vector<16x16xf32>
    %495 = vector.extract_strided_slice %490 {offsets = [1, 0], sizes = [16, 16], strides = [1, 1]} : vector<22x16xf32> to vector<16x16xf32>
    %496 = vector.broadcast %57 : f32 to vector<16x16xf32>
    %497 = arith.mulf %496, %495 : vector<16x16xf32>
    %498 = arith.addf %494, %497 : vector<16x16xf32>
    %499 = vector.extract_strided_slice %490 {offsets = [2, 0], sizes = [16, 16], strides = [1, 1]} : vector<22x16xf32> to vector<16x16xf32>
    %500 = vector.broadcast %64 : f32 to vector<16x16xf32>
    %501 = arith.mulf %500, %499 : vector<16x16xf32>
    %502 = arith.addf %498, %501 : vector<16x16xf32>
    %503 = vector.extract_strided_slice %490 {offsets = [3, 0], sizes = [16, 16], strides = [1, 1]} : vector<22x16xf32> to vector<16x16xf32>
    %504 = vector.broadcast %71 : f32 to vector<16x16xf32>
    %505 = arith.mulf %504, %503 : vector<16x16xf32>
    %506 = arith.addf %502, %505 : vector<16x16xf32>
    %507 = vector.extract_strided_slice %490 {offsets = [4, 0], sizes = [16, 16], strides = [1, 1]} : vector<22x16xf32> to vector<16x16xf32>
    %508 = vector.broadcast %78 : f32 to vector<16x16xf32>
    %509 = arith.mulf %508, %507 : vector<16x16xf32>
    %510 = arith.addf %506, %509 : vector<16x16xf32>
    %511 = vector.extract_strided_slice %490 {offsets = [5, 0], sizes = [16, 16], strides = [1, 1]} : vector<22x16xf32> to vector<16x16xf32>
    %512 = vector.broadcast %85 : f32 to vector<16x16xf32>
    %513 = arith.mulf %512, %511 : vector<16x16xf32>
    %514 = arith.addf %510, %513 : vector<16x16xf32>
    %515 = vector.extract_strided_slice %490 {offsets = [6, 0], sizes = [16, 16], strides = [1, 1]} : vector<22x16xf32> to vector<16x16xf32>
    %516 = vector.broadcast %92 : f32 to vector<16x16xf32>
    %517 = arith.mulf %516, %515 : vector<16x16xf32>
    %518 = arith.addf %514, %517 : vector<16x16xf32>
    %c1_201 = arith.constant 1 : index
    %c0_202 = arith.constant 0 : index
    %c2_203 = arith.constant 2 : index
    %519 = vector.load %arg6[%c1_201, %c0_202, %c2_203] : memref<2x22x128xf32, #tpu.memory_space<vmem>>, vector<1x22x16xf32>
    %520 = vector.shape_cast %519 : vector<1x22x16xf32> to vector<22x16xf32>
    %521 = vector.extract_strided_slice %520 {offsets = [0, 0], sizes = [16, 16], strides = [1, 1]} : vector<22x16xf32> to vector<16x16xf32>
    %522 = vector.broadcast %51 : f32 to vector<16x16xf32>
    %523 = arith.mulf %522, %521 : vector<16x16xf32>
    %524 = arith.addf %488, %523 : vector<16x16xf32>
    %525 = vector.extract_strided_slice %520 {offsets = [1, 0], sizes = [16, 16], strides = [1, 1]} : vector<22x16xf32> to vector<16x16xf32>
    %526 = vector.broadcast %58 : f32 to vector<16x16xf32>
    %527 = arith.mulf %526, %525 : vector<16x16xf32>
    %528 = arith.addf %524, %527 : vector<16x16xf32>
    %529 = vector.extract_strided_slice %520 {offsets = [2, 0], sizes = [16, 16], strides = [1, 1]} : vector<22x16xf32> to vector<16x16xf32>
    %530 = vector.broadcast %65 : f32 to vector<16x16xf32>
    %531 = arith.mulf %530, %529 : vector<16x16xf32>
    %532 = arith.addf %528, %531 : vector<16x16xf32>
    %533 = vector.extract_strided_slice %520 {offsets = [3, 0], sizes = [16, 16], strides = [1, 1]} : vector<22x16xf32> to vector<16x16xf32>
    %534 = vector.broadcast %72 : f32 to vector<16x16xf32>
    %535 = arith.mulf %534, %533 : vector<16x16xf32>
    %536 = arith.addf %532, %535 : vector<16x16xf32>
    %537 = vector.extract_strided_slice %520 {offsets = [4, 0], sizes = [16, 16], strides = [1, 1]} : vector<22x16xf32> to vector<16x16xf32>
    %538 = vector.broadcast %79 : f32 to vector<16x16xf32>
    %539 = arith.mulf %538, %537 : vector<16x16xf32>
    %540 = arith.addf %536, %539 : vector<16x16xf32>
    %541 = vector.extract_strided_slice %520 {offsets = [5, 0], sizes = [16, 16], strides = [1, 1]} : vector<22x16xf32> to vector<16x16xf32>
    %542 = vector.broadcast %86 : f32 to vector<16x16xf32>
    %543 = arith.mulf %542, %541 : vector<16x16xf32>
    %544 = arith.addf %540, %543 : vector<16x16xf32>
    %545 = vector.extract_strided_slice %520 {offsets = [6, 0], sizes = [16, 16], strides = [1, 1]} : vector<22x16xf32> to vector<16x16xf32>
    %546 = vector.broadcast %93 : f32 to vector<16x16xf32>
    %547 = arith.mulf %546, %545 : vector<16x16xf32>
    %548 = arith.addf %544, %547 : vector<16x16xf32>
    %c1_204 = arith.constant 1 : index
    %c0_205 = arith.constant 0 : index
    %c3_206 = arith.constant 3 : index
    %549 = vector.load %arg6[%c1_204, %c0_205, %c3_206] : memref<2x22x128xf32, #tpu.memory_space<vmem>>, vector<1x22x16xf32>
    %550 = vector.shape_cast %549 : vector<1x22x16xf32> to vector<22x16xf32>
    %551 = vector.extract_strided_slice %550 {offsets = [0, 0], sizes = [16, 16], strides = [1, 1]} : vector<22x16xf32> to vector<16x16xf32>
    %552 = vector.broadcast %52 : f32 to vector<16x16xf32>
    %553 = arith.mulf %552, %551 : vector<16x16xf32>
    %554 = arith.addf %518, %553 : vector<16x16xf32>
    %555 = vector.extract_strided_slice %550 {offsets = [1, 0], sizes = [16, 16], strides = [1, 1]} : vector<22x16xf32> to vector<16x16xf32>
    %556 = vector.broadcast %59 : f32 to vector<16x16xf32>
    %557 = arith.mulf %556, %555 : vector<16x16xf32>
    %558 = arith.addf %554, %557 : vector<16x16xf32>
    %559 = vector.extract_strided_slice %550 {offsets = [2, 0], sizes = [16, 16], strides = [1, 1]} : vector<22x16xf32> to vector<16x16xf32>
    %560 = vector.broadcast %66 : f32 to vector<16x16xf32>
    %561 = arith.mulf %560, %559 : vector<16x16xf32>
    %562 = arith.addf %558, %561 : vector<16x16xf32>
    %563 = vector.extract_strided_slice %550 {offsets = [3, 0], sizes = [16, 16], strides = [1, 1]} : vector<22x16xf32> to vector<16x16xf32>
    %564 = vector.broadcast %73 : f32 to vector<16x16xf32>
    %565 = arith.mulf %564, %563 : vector<16x16xf32>
    %566 = arith.addf %562, %565 : vector<16x16xf32>
    %567 = vector.extract_strided_slice %550 {offsets = [4, 0], sizes = [16, 16], strides = [1, 1]} : vector<22x16xf32> to vector<16x16xf32>
    %568 = vector.broadcast %80 : f32 to vector<16x16xf32>
    %569 = arith.mulf %568, %567 : vector<16x16xf32>
    %570 = arith.addf %566, %569 : vector<16x16xf32>
    %571 = vector.extract_strided_slice %550 {offsets = [5, 0], sizes = [16, 16], strides = [1, 1]} : vector<22x16xf32> to vector<16x16xf32>
    %572 = vector.broadcast %87 : f32 to vector<16x16xf32>
    %573 = arith.mulf %572, %571 : vector<16x16xf32>
    %574 = arith.addf %570, %573 : vector<16x16xf32>
    %575 = vector.extract_strided_slice %550 {offsets = [6, 0], sizes = [16, 16], strides = [1, 1]} : vector<22x16xf32> to vector<16x16xf32>
    %576 = vector.broadcast %94 : f32 to vector<16x16xf32>
    %577 = arith.mulf %576, %575 : vector<16x16xf32>
    %578 = arith.addf %574, %577 : vector<16x16xf32>
    %c1_207 = arith.constant 1 : index
    %c0_208 = arith.constant 0 : index
    %c4_209 = arith.constant 4 : index
    %579 = vector.load %arg6[%c1_207, %c0_208, %c4_209] : memref<2x22x128xf32, #tpu.memory_space<vmem>>, vector<1x22x16xf32>
    %580 = vector.shape_cast %579 : vector<1x22x16xf32> to vector<22x16xf32>
    %581 = vector.extract_strided_slice %580 {offsets = [0, 0], sizes = [16, 16], strides = [1, 1]} : vector<22x16xf32> to vector<16x16xf32>
    %582 = vector.broadcast %53 : f32 to vector<16x16xf32>
    %583 = arith.mulf %582, %581 : vector<16x16xf32>
    %584 = arith.addf %548, %583 : vector<16x16xf32>
    %585 = vector.extract_strided_slice %580 {offsets = [1, 0], sizes = [16, 16], strides = [1, 1]} : vector<22x16xf32> to vector<16x16xf32>
    %586 = vector.broadcast %60 : f32 to vector<16x16xf32>
    %587 = arith.mulf %586, %585 : vector<16x16xf32>
    %588 = arith.addf %584, %587 : vector<16x16xf32>
    %589 = vector.extract_strided_slice %580 {offsets = [2, 0], sizes = [16, 16], strides = [1, 1]} : vector<22x16xf32> to vector<16x16xf32>
    %590 = vector.broadcast %67 : f32 to vector<16x16xf32>
    %591 = arith.mulf %590, %589 : vector<16x16xf32>
    %592 = arith.addf %588, %591 : vector<16x16xf32>
    %593 = vector.extract_strided_slice %580 {offsets = [3, 0], sizes = [16, 16], strides = [1, 1]} : vector<22x16xf32> to vector<16x16xf32>
    %594 = vector.broadcast %74 : f32 to vector<16x16xf32>
    %595 = arith.mulf %594, %593 : vector<16x16xf32>
    %596 = arith.addf %592, %595 : vector<16x16xf32>
    %597 = vector.extract_strided_slice %580 {offsets = [4, 0], sizes = [16, 16], strides = [1, 1]} : vector<22x16xf32> to vector<16x16xf32>
    %598 = vector.broadcast %81 : f32 to vector<16x16xf32>
    %599 = arith.mulf %598, %597 : vector<16x16xf32>
    %600 = arith.addf %596, %599 : vector<16x16xf32>
    %601 = vector.extract_strided_slice %580 {offsets = [5, 0], sizes = [16, 16], strides = [1, 1]} : vector<22x16xf32> to vector<16x16xf32>
    %602 = vector.broadcast %88 : f32 to vector<16x16xf32>
    %603 = arith.mulf %602, %601 : vector<16x16xf32>
    %604 = arith.addf %600, %603 : vector<16x16xf32>
    %605 = vector.extract_strided_slice %580 {offsets = [6, 0], sizes = [16, 16], strides = [1, 1]} : vector<22x16xf32> to vector<16x16xf32>
    %606 = vector.broadcast %95 : f32 to vector<16x16xf32>
    %607 = arith.mulf %606, %605 : vector<16x16xf32>
    %608 = arith.addf %604, %607 : vector<16x16xf32>
    %c1_210 = arith.constant 1 : index
    %c0_211 = arith.constant 0 : index
    %c5_212 = arith.constant 5 : index
    %609 = vector.load %arg6[%c1_210, %c0_211, %c5_212] : memref<2x22x128xf32, #tpu.memory_space<vmem>>, vector<1x22x16xf32>
    %610 = vector.shape_cast %609 : vector<1x22x16xf32> to vector<22x16xf32>
    %611 = vector.extract_strided_slice %610 {offsets = [0, 0], sizes = [16, 16], strides = [1, 1]} : vector<22x16xf32> to vector<16x16xf32>
    %612 = vector.broadcast %54 : f32 to vector<16x16xf32>
    %613 = arith.mulf %612, %611 : vector<16x16xf32>
    %614 = arith.addf %578, %613 : vector<16x16xf32>
    %615 = vector.extract_strided_slice %610 {offsets = [1, 0], sizes = [16, 16], strides = [1, 1]} : vector<22x16xf32> to vector<16x16xf32>
    %616 = vector.broadcast %61 : f32 to vector<16x16xf32>
    %617 = arith.mulf %616, %615 : vector<16x16xf32>
    %618 = arith.addf %614, %617 : vector<16x16xf32>
    %619 = vector.extract_strided_slice %610 {offsets = [2, 0], sizes = [16, 16], strides = [1, 1]} : vector<22x16xf32> to vector<16x16xf32>
    %620 = vector.broadcast %68 : f32 to vector<16x16xf32>
    %621 = arith.mulf %620, %619 : vector<16x16xf32>
    %622 = arith.addf %618, %621 : vector<16x16xf32>
    %623 = vector.extract_strided_slice %610 {offsets = [3, 0], sizes = [16, 16], strides = [1, 1]} : vector<22x16xf32> to vector<16x16xf32>
    %624 = vector.broadcast %75 : f32 to vector<16x16xf32>
    %625 = arith.mulf %624, %623 : vector<16x16xf32>
    %626 = arith.addf %622, %625 : vector<16x16xf32>
    %627 = vector.extract_strided_slice %610 {offsets = [4, 0], sizes = [16, 16], strides = [1, 1]} : vector<22x16xf32> to vector<16x16xf32>
    %628 = vector.broadcast %82 : f32 to vector<16x16xf32>
    %629 = arith.mulf %628, %627 : vector<16x16xf32>
    %630 = arith.addf %626, %629 : vector<16x16xf32>
    %631 = vector.extract_strided_slice %610 {offsets = [5, 0], sizes = [16, 16], strides = [1, 1]} : vector<22x16xf32> to vector<16x16xf32>
    %632 = vector.broadcast %89 : f32 to vector<16x16xf32>
    %633 = arith.mulf %632, %631 : vector<16x16xf32>
    %634 = arith.addf %630, %633 : vector<16x16xf32>
    %635 = vector.extract_strided_slice %610 {offsets = [6, 0], sizes = [16, 16], strides = [1, 1]} : vector<22x16xf32> to vector<16x16xf32>
    %636 = vector.broadcast %96 : f32 to vector<16x16xf32>
    %637 = arith.mulf %636, %635 : vector<16x16xf32>
    %638 = arith.addf %634, %637 : vector<16x16xf32>
    %c1_213 = arith.constant 1 : index
    %c0_214 = arith.constant 0 : index
    %c6_215 = arith.constant 6 : index
    %639 = vector.load %arg6[%c1_213, %c0_214, %c6_215] : memref<2x22x128xf32, #tpu.memory_space<vmem>>, vector<1x22x16xf32>
    %640 = vector.shape_cast %639 : vector<1x22x16xf32> to vector<22x16xf32>
    %641 = vector.extract_strided_slice %640 {offsets = [0, 0], sizes = [16, 16], strides = [1, 1]} : vector<22x16xf32> to vector<16x16xf32>
    %642 = vector.broadcast %55 : f32 to vector<16x16xf32>
    %643 = arith.mulf %642, %641 : vector<16x16xf32>
    %644 = arith.addf %608, %643 : vector<16x16xf32>
    %645 = vector.extract_strided_slice %640 {offsets = [1, 0], sizes = [16, 16], strides = [1, 1]} : vector<22x16xf32> to vector<16x16xf32>
    %646 = vector.broadcast %62 : f32 to vector<16x16xf32>
    %647 = arith.mulf %646, %645 : vector<16x16xf32>
    %648 = arith.addf %644, %647 : vector<16x16xf32>
    %649 = vector.extract_strided_slice %640 {offsets = [2, 0], sizes = [16, 16], strides = [1, 1]} : vector<22x16xf32> to vector<16x16xf32>
    %650 = vector.broadcast %69 : f32 to vector<16x16xf32>
    %651 = arith.mulf %650, %649 : vector<16x16xf32>
    %652 = arith.addf %648, %651 : vector<16x16xf32>
    %653 = vector.extract_strided_slice %640 {offsets = [3, 0], sizes = [16, 16], strides = [1, 1]} : vector<22x16xf32> to vector<16x16xf32>
    %654 = vector.broadcast %76 : f32 to vector<16x16xf32>
    %655 = arith.mulf %654, %653 : vector<16x16xf32>
    %656 = arith.addf %652, %655 : vector<16x16xf32>
    %657 = vector.extract_strided_slice %640 {offsets = [4, 0], sizes = [16, 16], strides = [1, 1]} : vector<22x16xf32> to vector<16x16xf32>
    %658 = vector.broadcast %83 : f32 to vector<16x16xf32>
    %659 = arith.mulf %658, %657 : vector<16x16xf32>
    %660 = arith.addf %656, %659 : vector<16x16xf32>
    %661 = vector.extract_strided_slice %640 {offsets = [5, 0], sizes = [16, 16], strides = [1, 1]} : vector<22x16xf32> to vector<16x16xf32>
    %662 = vector.broadcast %90 : f32 to vector<16x16xf32>
    %663 = arith.mulf %662, %661 : vector<16x16xf32>
    %664 = arith.addf %660, %663 : vector<16x16xf32>
    %665 = vector.extract_strided_slice %640 {offsets = [6, 0], sizes = [16, 16], strides = [1, 1]} : vector<22x16xf32> to vector<16x16xf32>
    %666 = vector.broadcast %97 : f32 to vector<16x16xf32>
    %667 = arith.mulf %666, %665 : vector<16x16xf32>
    %668 = arith.addf %664, %667 : vector<16x16xf32>
    %669 = arith.addf %458, %428 : vector<16x16xf32>
    %670 = arith.addf %668, %638 : vector<16x16xf32>
    %671 = arith.addf %669, %670 : vector<16x16xf32>
    %672 = vector.extract_strided_slice %671 {offsets = [0, 0], sizes = [1, 16], strides = [1, 1]} : vector<16x16xf32> to vector<1x16xf32>
    %c2_216 = arith.constant 2 : index
    %c0_217 = arith.constant 0 : index
    %673 = vector.load %arg7[%c2_216, %c0_217] : memref<3x256xf32, #tpu.memory_space<vmem>>, vector<1x16xf32>
    tpu.vector_store %arg7[%c2_216, %c0_217], %672 {strides = array<i32>} : memref<3x256xf32, #tpu.memory_space<vmem>>, vector<1x16xf32>,
    %674 = vector.extract_strided_slice %671 {offsets = [1, 0], sizes = [1, 16], strides = [1, 1]} : vector<16x16xf32> to vector<1x16xf32>
    %c2_218 = arith.constant 2 : index
    %c16_219 = arith.constant 16 : index
    %675 = vector.load %arg7[%c2_218, %c16_219] : memref<3x256xf32, #tpu.memory_space<vmem>>, vector<1x16xf32>
    tpu.vector_store %arg7[%c2_218, %c16_219], %674 {strides = array<i32>} : memref<3x256xf32, #tpu.memory_space<vmem>>, vector<1x16xf32>,
    %676 = vector.extract_strided_slice %671 {offsets = [2, 0], sizes = [1, 16], strides = [1, 1]} : vector<16x16xf32> to vector<1x16xf32>
    %c2_220 = arith.constant 2 : index
    %c32_221 = arith.constant 32 : index
    %677 = vector.load %arg7[%c2_220, %c32_221] : memref<3x256xf32, #tpu.memory_space<vmem>>, vector<1x16xf32>
    tpu.vector_store %arg7[%c2_220, %c32_221], %676 {strides = array<i32>} : memref<3x256xf32, #tpu.memory_space<vmem>>, vector<1x16xf32>,
    %678 = vector.extract_strided_slice %671 {offsets = [3, 0], sizes = [1, 16], strides = [1, 1]} : vector<16x16xf32> to vector<1x16xf32>
    %c2_222 = arith.constant 2 : index
    %c48_223 = arith.constant 48 : index
    %679 = vector.load %arg7[%c2_222, %c48_223] : memref<3x256xf32, #tpu.memory_space<vmem>>, vector<1x16xf32>
    tpu.vector_store %arg7[%c2_222, %c48_223], %678 {strides = array<i32>} : memref<3x256xf32, #tpu.memory_space<vmem>>, vector<1x16xf32>,
    %680 = vector.extract_strided_slice %671 {offsets = [4, 0], sizes = [1, 16], strides = [1, 1]} : vector<16x16xf32> to vector<1x16xf32>
    %c2_224 = arith.constant 2 : index
    %c64_225 = arith.constant 64 : index
    %681 = vector.load %arg7[%c2_224, %c64_225] : memref<3x256xf32, #tpu.memory_space<vmem>>, vector<1x16xf32>
    tpu.vector_store %arg7[%c2_224, %c64_225], %680 {strides = array<i32>} : memref<3x256xf32, #tpu.memory_space<vmem>>, vector<1x16xf32>,
    %682 = vector.extract_strided_slice %671 {offsets = [5, 0], sizes = [1, 16], strides = [1, 1]} : vector<16x16xf32> to vector<1x16xf32>
    %c2_226 = arith.constant 2 : index
    %c80_227 = arith.constant 80 : index
    %683 = vector.load %arg7[%c2_226, %c80_227] : memref<3x256xf32, #tpu.memory_space<vmem>>, vector<1x16xf32>
    tpu.vector_store %arg7[%c2_226, %c80_227], %682 {strides = array<i32>} : memref<3x256xf32, #tpu.memory_space<vmem>>, vector<1x16xf32>,
    %684 = vector.extract_strided_slice %671 {offsets = [6, 0], sizes = [1, 16], strides = [1, 1]} : vector<16x16xf32> to vector<1x16xf32>
    %c2_228 = arith.constant 2 : index
    %c96_229 = arith.constant 96 : index
    %685 = vector.load %arg7[%c2_228, %c96_229] : memref<3x256xf32, #tpu.memory_space<vmem>>, vector<1x16xf32>
    tpu.vector_store %arg7[%c2_228, %c96_229], %684 {strides = array<i32>} : memref<3x256xf32, #tpu.memory_space<vmem>>, vector<1x16xf32>,
    %686 = vector.extract_strided_slice %671 {offsets = [7, 0], sizes = [1, 16], strides = [1, 1]} : vector<16x16xf32> to vector<1x16xf32>
    %c2_230 = arith.constant 2 : index
    %c112_231 = arith.constant 112 : index
    %687 = vector.load %arg7[%c2_230, %c112_231] : memref<3x256xf32, #tpu.memory_space<vmem>>, vector<1x16xf32>
    tpu.vector_store %arg7[%c2_230, %c112_231], %686 {strides = array<i32>} : memref<3x256xf32, #tpu.memory_space<vmem>>, vector<1x16xf32>,
    %688 = vector.extract_strided_slice %671 {offsets = [8, 0], sizes = [1, 16], strides = [1, 1]} : vector<16x16xf32> to vector<1x16xf32>
    %c2_232 = arith.constant 2 : index
    %c128_233 = arith.constant 128 : index
    %689 = vector.load %arg7[%c2_232, %c128_233] : memref<3x256xf32, #tpu.memory_space<vmem>>, vector<1x16xf32>
    tpu.vector_store %arg7[%c2_232, %c128_233], %688 {strides = array<i32>} : memref<3x256xf32, #tpu.memory_space<vmem>>, vector<1x16xf32>,
    %690 = vector.extract_strided_slice %671 {offsets = [9, 0], sizes = [1, 16], strides = [1, 1]} : vector<16x16xf32> to vector<1x16xf32>
    %c2_234 = arith.constant 2 : index
    %c144_235 = arith.constant 144 : index
    %691 = vector.load %arg7[%c2_234, %c144_235] : memref<3x256xf32, #tpu.memory_space<vmem>>, vector<1x16xf32>
    tpu.vector_store %arg7[%c2_234, %c144_235], %690 {strides = array<i32>} : memref<3x256xf32, #tpu.memory_space<vmem>>, vector<1x16xf32>,
    %692 = vector.extract_strided_slice %671 {offsets = [10, 0], sizes = [1, 16], strides = [1, 1]} : vector<16x16xf32> to vector<1x16xf32>
    %c2_236 = arith.constant 2 : index
    %c160_237 = arith.constant 160 : index
    %693 = vector.load %arg7[%c2_236, %c160_237] : memref<3x256xf32, #tpu.memory_space<vmem>>, vector<1x16xf32>
    tpu.vector_store %arg7[%c2_236, %c160_237], %692 {strides = array<i32>} : memref<3x256xf32, #tpu.memory_space<vmem>>, vector<1x16xf32>,
    %694 = vector.extract_strided_slice %671 {offsets = [11, 0], sizes = [1, 16], strides = [1, 1]} : vector<16x16xf32> to vector<1x16xf32>
    %c2_238 = arith.constant 2 : index
    %c176_239 = arith.constant 176 : index
    %695 = vector.load %arg7[%c2_238, %c176_239] : memref<3x256xf32, #tpu.memory_space<vmem>>, vector<1x16xf32>
    tpu.vector_store %arg7[%c2_238, %c176_239], %694 {strides = array<i32>} : memref<3x256xf32, #tpu.memory_space<vmem>>, vector<1x16xf32>,
    %696 = vector.extract_strided_slice %671 {offsets = [12, 0], sizes = [1, 16], strides = [1, 1]} : vector<16x16xf32> to vector<1x16xf32>
    %c2_240 = arith.constant 2 : index
    %c192_241 = arith.constant 192 : index
    %697 = vector.load %arg7[%c2_240, %c192_241] : memref<3x256xf32, #tpu.memory_space<vmem>>, vector<1x16xf32>
    tpu.vector_store %arg7[%c2_240, %c192_241], %696 {strides = array<i32>} : memref<3x256xf32, #tpu.memory_space<vmem>>, vector<1x16xf32>,
    %698 = vector.extract_strided_slice %671 {offsets = [13, 0], sizes = [1, 16], strides = [1, 1]} : vector<16x16xf32> to vector<1x16xf32>
    %c2_242 = arith.constant 2 : index
    %c208_243 = arith.constant 208 : index
    %699 = vector.load %arg7[%c2_242, %c208_243] : memref<3x256xf32, #tpu.memory_space<vmem>>, vector<1x16xf32>
    tpu.vector_store %arg7[%c2_242, %c208_243], %698 {strides = array<i32>} : memref<3x256xf32, #tpu.memory_space<vmem>>, vector<1x16xf32>,
    %700 = vector.extract_strided_slice %671 {offsets = [14, 0], sizes = [1, 16], strides = [1, 1]} : vector<16x16xf32> to vector<1x16xf32>
    %c2_244 = arith.constant 2 : index
    %c224_245 = arith.constant 224 : index
    %701 = vector.load %arg7[%c2_244, %c224_245] : memref<3x256xf32, #tpu.memory_space<vmem>>, vector<1x16xf32>
    tpu.vector_store %arg7[%c2_244, %c224_245], %700 {strides = array<i32>} : memref<3x256xf32, #tpu.memory_space<vmem>>, vector<1x16xf32>,
    %702 = vector.extract_strided_slice %671 {offsets = [15, 0], sizes = [1, 16], strides = [1, 1]} : vector<16x16xf32> to vector<1x16xf32>
    %c2_246 = arith.constant 2 : index
    %c240_247 = arith.constant 240 : index
    %703 = vector.load %arg7[%c2_246, %c240_247] : memref<3x256xf32, #tpu.memory_space<vmem>>, vector<1x16xf32>
    tpu.vector_store %arg7[%c2_246, %c240_247], %702 {strides = array<i32>} : memref<3x256xf32, #tpu.memory_space<vmem>>, vector<1x16xf32>,
    %c2_248 = arith.constant 2 : index
    %c0_249 = arith.constant 0 : index
    %704 = vector.load %arg7[%c2_248, %c0_249] : memref<3x256xf32, #tpu.memory_space<vmem>>, vector<1x256xf32>
    %705 = vector.broadcast %98 : f32 to vector<1x256xf32>
    %706 = arith.addf %704, %705 : vector<1x256xf32>
    %c0_250 = arith.constant 0 : index
    %c0_251 = arith.constant 0 : index
    %c0_252 = arith.constant 0 : index
    %707 = vector.load %arg3[%c0_250, %c0_251, %c0_252] : memref<1x1x256xf32, #tpu.memory_space<vmem>>, vector<1x1x256xf32>
    %708 = vector.shape_cast %707 : vector<1x1x256xf32> to vector<1x256xf32>
    %709 = arith.addf %706, %708 : vector<1x256xf32>
    %c0_253 = arith.constant 0 : index
    %c0_254 = arith.constant 0 : index
    %c0_255 = arith.constant 0 : index
    %710 = vector.load %arg5[%c0_253, %c0_254, %c0_255] : memref<1x1x256xf32, #tpu.memory_space<vmem>>, vector<1x1x256xf32>
    %711 = vector.shape_cast %710 : vector<1x1x256xf32> to vector<1x256xf32>
    %712 = vector.shape_cast %709 : vector<1x256xf32> to vector<1x1x256xf32>
    tpu.vector_store %arg5[%c0_253, %c0_254, %c0_255], %712 {strides = array<i32>} : memref<1x1x256xf32, #tpu.memory_space<vmem>>, vector<1x1x256xf32>,
    %cst_256 = arith.constant -6.000000e+01 : f32
    %713 = vector.broadcast %cst_256 : f32 to vector<1x256xf32>
    %714 = arith.maximumf %709, %713 : vector<1x256xf32>
    %cst_257 = arith.constant 0.000000e+00 : f32
    %715 = vector.broadcast %cst_257 : f32 to vector<1x256xf32>
    %716 = arith.subf %715, %714 : vector<1x256xf32>
    %717 = math.exp %716 : vector<1x256xf32>
    %cst_258 = arith.constant 1.000000e+00 : f32
    %718 = vector.broadcast %cst_258 : f32 to vector<1x256xf32>
    %719 = arith.addf %718, %717 : vector<1x256xf32>
    %720 = tpu.reciprocal %719 {approx = true} : vector<1x256xf32> -> vector<1x256xf32>
    %c0_259 = arith.constant 0 : index
    %c0_260 = arith.constant 0 : index
    %c0_261 = arith.constant 0 : index
    %721 = vector.load %arg2[%c0_259, %c0_260, %c0_261] : memref<1x4x256xf32, #tpu.memory_space<vmem>>, vector<1x1x256xf32>
    %722 = vector.shape_cast %721 : vector<1x1x256xf32> to vector<1x256xf32>
    %723 = arith.mulf %722, %720 : vector<1x256xf32>
    %c0_262 = arith.constant 0 : index
    %c0_263 = arith.constant 0 : index
    %c0_264 = arith.constant 0 : index
    %724 = vector.load %arg4[%c0_262, %c0_263, %c0_264] : memref<1x4x256xf32, #tpu.memory_space<vmem>>, vector<1x1x256xf32>
    %725 = vector.shape_cast %724 : vector<1x1x256xf32> to vector<1x256xf32>
    %726 = vector.shape_cast %723 : vector<1x256xf32> to vector<1x1x256xf32>
    tpu.vector_store %arg4[%c0_262, %c0_263, %c0_264], %726 {strides = array<i32>} : memref<1x4x256xf32, #tpu.memory_space<vmem>>, vector<1x1x256xf32>,
    %c0_265 = arith.constant 0 : index
    %c1_266 = arith.constant 1 : index
    %c0_267 = arith.constant 0 : index
    %727 = vector.load %arg2[%c0_265, %c1_266, %c0_267] : memref<1x4x256xf32, #tpu.memory_space<vmem>>, vector<1x1x256xf32>
    %728 = vector.shape_cast %727 : vector<1x1x256xf32> to vector<1x256xf32>
    %729 = arith.mulf %728, %720 : vector<1x256xf32>
    %c0_268 = arith.constant 0 : index
    %c1_269 = arith.constant 1 : index
    %c0_270 = arith.constant 0 : index
    %730 = vector.load %arg4[%c0_268, %c1_269, %c0_270] : memref<1x4x256xf32, #tpu.memory_space<vmem>>, vector<1x1x256xf32>
    %731 = vector.shape_cast %730 : vector<1x1x256xf32> to vector<1x256xf32>
    %732 = vector.shape_cast %729 : vector<1x256xf32> to vector<1x1x256xf32>
    tpu.vector_store %arg4[%c0_268, %c1_269, %c0_270], %732 {strides = array<i32>} : memref<1x4x256xf32, #tpu.memory_space<vmem>>, vector<1x1x256xf32>,
    %c0_271 = arith.constant 0 : index
    %c2_272 = arith.constant 2 : index
    %c0_273 = arith.constant 0 : index
    %733 = vector.load %arg2[%c0_271, %c2_272, %c0_273] : memref<1x4x256xf32, #tpu.memory_space<vmem>>, vector<1x1x256xf32>
    %734 = vector.shape_cast %733 : vector<1x1x256xf32> to vector<1x256xf32>
    %735 = arith.mulf %734, %720 : vector<1x256xf32>
    %c0_274 = arith.constant 0 : index
    %c2_275 = arith.constant 2 : index
    %c0_276 = arith.constant 0 : index
    %736 = vector.load %arg4[%c0_274, %c2_275, %c0_276] : memref<1x4x256xf32, #tpu.memory_space<vmem>>, vector<1x1x256xf32>
    %737 = vector.shape_cast %736 : vector<1x1x256xf32> to vector<1x256xf32>
    %738 = vector.shape_cast %735 : vector<1x256xf32> to vector<1x1x256xf32>
    tpu.vector_store %arg4[%c0_274, %c2_275, %c0_276], %738 {strides = array<i32>} : memref<1x4x256xf32, #tpu.memory_space<vmem>>, vector<1x1x256xf32>,
    %c0_277 = arith.constant 0 : index
    %c3_278 = arith.constant 3 : index
    %c0_279 = arith.constant 0 : index
    %739 = vector.load %arg2[%c0_277, %c3_278, %c0_279] : memref<1x4x256xf32, #tpu.memory_space<vmem>>, vector<1x1x256xf32>
    %740 = vector.shape_cast %739 : vector<1x1x256xf32> to vector<1x256xf32>
    %741 = arith.mulf %740, %720 : vector<1x256xf32>
    %c0_280 = arith.constant 0 : index
    %c3_281 = arith.constant 3 : index
    %c0_282 = arith.constant 0 : index
    %742 = vector.load %arg4[%c0_280, %c3_281, %c0_282] : memref<1x4x256xf32, #tpu.memory_space<vmem>>, vector<1x1x256xf32>
    %743 = vector.shape_cast %742 : vector<1x1x256xf32> to vector<1x256xf32>
    %744 = vector.shape_cast %741 : vector<1x256xf32> to vector<1x1x256xf32>
    tpu.vector_store %arg4[%c0_280, %c3_281, %c0_282], %744 {strides = array<i32>} : memref<1x4x256xf32, #tpu.memory_space<vmem>>, vector<1x1x256xf32>,
    return
  }
  func.func @transform_0(%arg0: i32) -> i32 {
    %c0_i32 = arith.constant 0 : i32
    %c0_i32_0 = arith.constant 0 : i32
    return %c0_i32 : i32
  }
  func.func @transform_1(%arg0: i32) -> (i32, i32, i32) {
    %c0_i32 = arith.constant 0 : i32
    %c0_i32_0 = arith.constant 0 : i32
    %c0_i32_1 = arith.constant 0 : i32
    return %arg0, %c0_i32, %c0_i32_0 : i32, i32, i32
  }
  func.func @transform_2(%arg0: i32) -> (i32, i32, i32) {
    %c0_i32 = arith.constant 0 : i32
    %c0_i32_0 = arith.constant 0 : i32
    %c0_i32_1 = arith.constant 0 : i32
    return %arg0, %c0_i32, %c0_i32_0 : i32, i32, i32
  }
  func.func @transform_3(%arg0: i32) -> (i32, i32, i32) {
    %c0_i32 = arith.constant 0 : i32
    %c0_i32_0 = arith.constant 0 : i32
    %c0_i32_1 = arith.constant 0 : i32
    return %arg0, %c0_i32, %c0_i32_0 : i32, i32, i32
  }
  func.func @transform_4(%arg0: i32) -> (i32, i32, i32) {
    %c0_i32 = arith.constant 0 : i32
    %c0_i32_0 = arith.constant 0 : i32
    %c0_i32_1 = arith.constant 0 : i32
    return %arg0, %c0_i32, %c0_i32_0 : i32, i32, i32
  }
}

</mosaic_0001>

<llo_original>
// kernel: tpu_custom_call.1
$region0: #{tpu_custom_call.1}
  #allocation0 [shape = 'u32[]', space=smem, size = 0x4, offset = 0x4, fixed_abs, tag = 'smem constant byte address 0x4 - core index']
  #allocation1 [shape = 'u32[144,128]{1,0:T(1,128)}', space=vmem, size = 0x12000, scoped, tag = 'internal scratch']
  #allocation2 [shape = 'f32[2,22,128]{2,1,0:T(8,128)}', space=vmem, size = 0x6000, scoped, tag = 'scratch operand']
  #allocation3 [shape = 'f32[3,256]{1,0:T(4,128)}', space=vmem, size = 0x1000, scoped, tag = 'scratch operand']
  %s0 = inlined_call_operand.hbm [shape: f32[99], index: 0, kind: input, shape index: {}]
  %s1 = inlined_call_operand.hbm [shape: f32[2,4,256], index: 1, kind: input, shape index: {}]
  %s2 = inlined_call_operand.hbm [shape: f32[2,1,256], index: 2, kind: input, shape index: {}]
  %s3 = inlined_call_operand.hbm [shape: f32[2,4,256], index: 3, kind: output, shape index: {0}]
  %s4 = inlined_call_operand.hbm [shape: f32[2,1,256], index: 4, kind: output, shape index: {1}]
  %5 = xla_tuple %s3, %s4
  %s6 = sld [smem:[#allocation0]]
  $region65: #{tpu_custom_call.1} parent=0
    _
  %s8 = ssub.s32 1, %s6
  %s9 = scalar_select 0, %s8, %s6
  $region1: #{tpu_custom_call.1} parent=0
    #allocation4 [shape = 'u8[512]{0}', space=smem, size = 0x200, scoped, tag = 'input window, operand 0, single buffered']
    #allocation5 [shape = 's32[2]{0}', space=sflag, size = 0x8, scoped, tag = 'scoped memory for tpu_custom_call.1']
    #allocation6 [shape = 's32[2]{0}', space=sflag, size = 0x8, scoped, tag = 'scoped memory for tpu_custom_call.1']
    #allocation7 [shape = 's32[2]{0}', space=sflag, size = 0x8, scoped, tag = 'scoped memory for tpu_custom_call.1']
    #allocation8 [shape = 'u8[8192]{0}', space=vmem, size = 0x2000, scoped, tag = 'input window, operand 1']
    #allocation9 [shape = 'u8[2048]{0}', space=vmem, size = 0x800, scoped, tag = 'input window, operand 2']
    #allocation10 [shape = 's32[2]{0}', space=sflag, size = 0x8, scoped, tag = 'scoped memory for tpu_custom_call.1']
    #allocation11 [shape = 'u8[8192]{0}', space=vmem, size = 0x2000, scoped, tag = 'output window, operand 0']
    #allocation12 [shape = 'u8[2048]{0}', space=vmem, size = 0x800, scoped, tag = 'output window, operand 1']
    #allocation13 [shape = 's32[2]{0}', space=sflag, size = 0x8, scoped, tag = 'scoped memory for tpu_custom_call.1']
    %10 = vsyncpa [#allocation7], 0
    %11 = vsyncpa [#allocation5], 0
    %s12 = scalar_lea.sflag [#allocation5], 1
    %13 = vsyncpa %s12, 0
    %14 = vsyncpa [#allocation10], 0
    %s15 = scalar_lea.sflag [#allocation10], 1
    %16 = vsyncpa %s15, 0
    %17 = vsyncpa [#allocation6], 0
    %s18 = scalar_lea.sflag [#allocation6], 1
    %19 = vsyncpa %s18, 0
    %20 = vsyncpa [#allocation13], 0
    %s21 = scalar_lea.sflag [#allocation13], 1
    %22 = vsyncpa %s21, 0
    loop: start=0, step=1, limit=4
    $region2: #{tpu_custom_call.1} parent=1 // loop_pre_header
      _
    $region3: #{tpu_custom_call.1} parent=1 // loop_header
      %s24 = sphi 0, %s28
      %p25 = scmp.ge.s32.totalorder %s24, 4
      %s32 = sphi 0, %s32
      %s34 = sphi 0, %s32
      %s35 = sphi 0, %s34
      %s49 = sphi 0, %s35
      %s55 = sphi 0, %s57
      %s58 = sphi 0, %s55
      %s59 = sphi 0, %s58
      %s75 = sphi 0, %s59
      %s81 = sphi 0, %s83
      %s84 = sphi 0, %s81
      %s85 = sphi 0, %s84
      %s101 = sphi 0, %s85
      %s107 = sphi 0, %s109
      %s110 = sphi 0, %s107
      %s111 = sphi 0, %s110
      %s127 = sphi 0, %s111
      %s133 = sphi 0, %s135
      %s136 = sphi 0, %s133
      %s137 = sphi 0, %s136
      %s153 = sphi 0, %s137
    $region4: #{tpu_custom_call.1} parent=1 // loop_header_branch
      %27 = sbr.rel (%p25) target = $region8
    $region5: #{tpu_custom_call.1} parent=1 // loop_body
      %s29 = ssub.s32 %s24, 1
      %s30 = ssub.s32 %s24, 2
      %s31 = sadd.s32 %s24, 1
      %s33 = sadd.s32 %s32, 1
      %p36 = scmp.eq.s32.totalorder %s24, 1
      %p37 = scmp.ne.s32.totalorder %s32, %s34
      %p38 = scmp.eq.s32.totalorder %s24, 0
      %p39 = por %p37, %p38
      %p40 = scmp.ne.s32.totalorder %s32, %s34
      %p41 = scmp.eq.s32.totalorder %s29, 1
      %p42 = por %p40, %p41
      %p43 = scmp.ne.s32.totalorder %s34, %s35
      %p44 = scmp.eq.s32.totalorder %s29, 0
      %p45 = por %p43, %p44
      %p46 = scmp.ne.s32.totalorder %s34, %s35
      %p47 = scmp.eq.s32.totalorder %s30, 1
      %p48 = por %p46, %p47
      %p50 = scmp.ne.s32.totalorder %s35, %s49
      %p51 = scmp.eq.s32.totalorder %s30, 0
      %p52 = por %p50, %p51
      %s53 = ssub.s32 %s24, %s31
      %p54 = scmp.eq.s32.totalorder %s53, 0
      %s56 = sadd.s32 %s55, 1
      %s57 = scalar_select %p54, %s55, %s56
      %p60 = pneg %p54
      %p61 = scmp.eq.s32.totalorder %s24, 1
      %p62 = por %p60, %p61
      %p63 = scmp.ne.s32.totalorder %s55, %s58
      %p64 = scmp.eq.s32.totalorder %s24, 0
      %p65 = por %p63, %p64
      %p66 = scmp.ne.s32.totalorder %s55, %s58
      %p67 = scmp.eq.s32.totalorder %s29, 1
      %p68 = por %p66, %p67
      %p69 = scmp.ne.s32.totalorder %s58, %s59
      %p70 = scmp.eq.s32.totalorder %s29, 0
      %p71 = por %p69, %p70
      %p72 = scmp.ne.s32.totalorder %s58, %s59
      %p73 = scmp.eq.s32.totalorder %s30, 1
      %p74 = por %p72, %p73
      %p76 = scmp.ne.s32.totalorder %s59, %s75
      %p77 = scmp.eq.s32.totalorder %s30, 0
      %p78 = por %p76, %p77
      %s79 = ssub.s32 %s24, %s31
      %p80 = scmp.eq.s32.totalorder %s79, 0
      %s82 = sadd.s32 %s81, 1
      %s83 = scalar_select %p80, %s81, %s82
      %p86 = pneg %p80
      %p87 = scmp.eq.s32.totalorder %s24, 1
      %p88 = por %p86, %p87
      %p89 = scmp.ne.s32.totalorder %s81, %s84
      %p90 = scmp.eq.s32.totalorder %s24, 0
      %p91 = por %p89, %p90
      %p92 = scmp.ne.s32.totalorder %s81, %s84
      %p93 = scmp.eq.s32.totalorder %s29, 1
      %p94 = por %p92, %p93
      %p95 = scmp.ne.s32.totalorder %s84, %s85
      %p96 = scmp.eq.s32.totalorder %s29, 0
      %p97 = por %p95, %p96
      %p98 = scmp.ne.s32.totalorder %s84, %s85
      %p99 = scmp.eq.s32.totalorder %s30, 1
      %p100 = por %p98, %p99
      %p102 = scmp.ne.s32.totalorder %s85, %s101
      %p103 = scmp.eq.s32.totalorder %s30, 0
      %p104 = por %p102, %p103
      %s105 = ssub.s32 %s24, %s31
      %p106 = scmp.eq.s32.totalorder %s105, 0
      %s108 = sadd.s32 %s107, 1
      %s109 = scalar_select %p106, %s107, %s108
      %p112 = pneg %p106
      %p113 = scmp.eq.s32.totalorder %s24, 1
      %p114 = por %p112, %p113
      %p115 = scmp.ne.s32.totalorder %s107, %s110
      %p116 = scmp.eq.s32.totalorder %s24, 0
      %p117 = por %p115, %p116
      %p118 = scmp.ne.s32.totalorder %s107, %s110
      %p119 = scmp.eq.s32.totalorder %s29, 1
      %p120 = por %p118, %p119
      %p121 = scmp.ne.s32.totalorder %s110, %s111
      %p122 = scmp.eq.s32.totalorder %s29, 0
      %p123 = por %p121, %p122
      %p124 = scmp.ne.s32.totalorder %s110, %s111
      %p125 = scmp.eq.s32.totalorder %s30, 1
      %p126 = por %p124, %p125
      %p128 = scmp.ne.s32.totalorder %s111, %s127
      %p129 = scmp.eq.s32.totalorder %s30, 0
      %p130 = por %p128, %p129
      %s131 = ssub.s32 %s24, %s31
      %p132 = scmp.eq.s32.totalorder %s131, 0
      %s134 = sadd.s32 %s133, 1
      %s135 = scalar_select %p132, %s133, %s134
      %p138 = pneg %p132
      %p139 = scmp.eq.s32.totalorder %s24, 1
      %p140 = por %p138, %p139
      %p141 = scmp.ne.s32.totalorder %s133, %s136
      %p142 = scmp.eq.s32.totalorder %s24, 0
      %p143 = por %p141, %p142
      %p144 = scmp.ne.s32.totalorder %s133, %s136
      %p145 = scmp.eq.s32.totalorder %s29, 1
      %p146 = por %p144, %p145
      %p147 = scmp.ne.s32.totalorder %s136, %s137
      %p148 = scmp.eq.s32.totalorder %s29, 0
      %p149 = por %p147, %p148
      %p150 = scmp.ne.s32.totalorder %s136, %s137
      %p151 = scmp.eq.s32.totalorder %s30, 1
      %p152 = por %p150, %p151
      %p154 = scmp.ne.s32.totalorder %s137, %s153
      %p155 = scmp.eq.s32.totalorder %s30, 0
      %p156 = por %p154, %p155
      %p157 = scmp.le.s32.totalorder 1, %s24
      %p158 = scmp.lt.s32.totalorder %s24, 3
      %p159 = pnand %p157, %p158
      %p160 = pneg %p159
      // Predicated region
      $region9: #{tpu_custom_call.1} parent=5 // pred_check
        _
      $region10: #{tpu_custom_call.1} parent=5 // pred_check_branch
        %162 = sbr.rel (%p159) target = $region12
      $region11: #{tpu_custom_call.1} parent=5 // pred_region
        %s163 = ssub.s32 %s24, 1
        // Predicated region
        $region13: #{tpu_custom_call.1} parent=11 // pred_check
          %p164 = pneg %p45
        $region14: #{tpu_custom_call.1} parent=11 // pred_check_branch
          %166 = sbr.rel (%p164) target = $region16
        $region15: #{tpu_custom_call.1} parent=11 // pred_region
          %s168 = ssub.s32 16, 16
          %169 = vsyncadd [#allocation7], %s168
          %172 = dma.hbm_to_smem %s0, 16, [#allocation4], [#allocation7]
        $region16: #{tpu_custom_call.1} parent=11 // pred_fallthru
          _
      $region12: #{tpu_custom_call.1} parent=5 // pred_fallthru
        _
      %p173 = scmp.lt.s32.totalorder %s24, 2
      // Predicated region
      $region17: #{tpu_custom_call.1} parent=5 // pred_check
        %p174 = pneg %p173
      $region18: #{tpu_custom_call.1} parent=5 // pred_check_branch
        %176 = sbr.rel (%p174) target = $region20
      $region19: #{tpu_custom_call.1} parent=5 // pred_region
        // Predicated region
        $region21: #{tpu_custom_call.1} parent=19 // pred_check
          %p177 = pneg %p65
        $region22: #{tpu_custom_call.1} parent=19 // pred_check_branch
          %179 = sbr.rel (%p177) target = $region24
        $region23: #{tpu_custom_call.1} parent=19 // pred_region
          %s180 = sand.u32 %s55, 1
          %s181 = scalar_lea.sflag [#allocation5], %s180
          %s182 = sand.u32 %s55, 1
          %s183 = smul.addr %s182, 8
          %s184 = scalar_lea.vmem [#allocation8], %s183
          %s186 = ssub.s32 128, 128
          %187 = vsyncadd %s181, %s186
          %s188 = smul.addr %s24, 2
          %s189 = smul.addr %s188, 64
          %s190 = scalar_lea.hbm %s1, %s189
          %s192 = sshll.u32 %s184, 4
          %s193 = int_to_ptr.vmem [resolvable:$true] %s192
          %195 = dma.hbm_to_vmem [thread:$0]  %s190, 128, %s193, %s181
        $region24: #{tpu_custom_call.1} parent=19 // pred_fallthru
          _
        // Predicated region
        $region25: #{tpu_custom_call.1} parent=19 // pred_check
          %p196 = pneg %p91
        $region26: #{tpu_custom_call.1} parent=19 // pred_check_branch
          %198 = sbr.rel (%p196) target = $region28
        $region27: #{tpu_custom_call.1} parent=19 // pred_region
          %s199 = sand.u32 %s81, 1
          %s200 = scalar_lea.sflag [#allocation10], %s199
          %s201 = sand.u32 %s81, 1
          %s202 = smul.addr %s201, 2
          %s203 = scalar_lea.vmem [#allocation9], %s202
          %s205 = ssub.s32 32, 32
          %206 = vsyncadd %s200, %s205
          %s207 = smul.addr %s24, 2
          %s208 = smul.addr %s207, 16
          %s209 = scalar_lea.hbm %s2, %s208
          %s211 = sshll.u32 %s203, 4
          %s212 = int_to_ptr.vmem [resolvable:$true] %s211
          %214 = dma.hbm_to_vmem [thread:$0]  %s209, 32, %s212, %s200
        $region28: #{tpu_custom_call.1} parent=19 // pred_fallthru
          _
      $region20: #{tpu_custom_call.1} parent=5 // pred_fallthru
        _
      %p215 = scmp.le.s32.totalorder 1, %s24
      %p216 = scmp.lt.s32.totalorder %s24, 3
      %p217 = pnand %p215, %p216
      %p218 = pneg %p217
      // Predicated region
      $region29: #{tpu_custom_call.1} parent=5 // pred_check
        _
      $region30: #{tpu_custom_call.1} parent=5 // pred_check_branch
        %220 = sbr.rel (%p217) target = $region32
      $region31: #{tpu_custom_call.1} parent=5 // pred_region
        %s221 = ssub.s32 %s24, 1
        // Predicated region
        $region33: #{tpu_custom_call.1} parent=31 // pred_check
          %p222 = pneg %p45
        $region34: #{tpu_custom_call.1} parent=31 // pred_check_branch
          %224 = sbr.rel (%p222) target = $region36
        $region35: #{tpu_custom_call.1} parent=31 // pred_region
          %225 = dma.done [#allocation7], 16
        $region36: #{tpu_custom_call.1} parent=31 // pred_fallthru
          _
        %s226 = sand.u32 %s58, 1
        %s227 = scalar_lea.sflag [#allocation5], %s226
        %s228 = sand.u32 %s58, 1
        %s229 = smul.addr %s228, 8
        %s230 = scalar_lea.vmem [#allocation8], %s229
        // Predicated region
        $region37: #{tpu_custom_call.1} parent=31 // pred_check
          %p231 = pneg %p71
        $region38: #{tpu_custom_call.1} parent=31 // pred_check_branch
          %233 = sbr.rel (%p231) target = $region40
        $region39: #{tpu_custom_call.1} parent=31 // pred_region
          %234 = dma.done %s227, 128
        $region40: #{tpu_custom_call.1} parent=31 // pred_fallthru
          _
        %s235 = sand.u32 %s84, 1
        %s236 = scalar_lea.sflag [#allocation10], %s235
        %s237 = sand.u32 %s84, 1
        %s238 = smul.addr %s237, 2
        %s239 = scalar_lea.vmem [#allocation9], %s238
        // Predicated region
        $region41: #{tpu_custom_call.1} parent=31 // pred_check
          %p240 = pneg %p97
        $region42: #{tpu_custom_call.1} parent=31 // pred_check_branch
          %242 = sbr.rel (%p240) target = $region44
        $region43: #{tpu_custom_call.1} parent=31 // pred_region
          %243 = dma.done %s236, 32
        $region44: #{tpu_custom_call.1} parent=31 // pred_fallthru
          _
        %244 = sfence
        %p245 = pneg %p45
        %p246 = pneg %p42
        %s247 = sand.u32 %s58, 1
        %s248 = scalar_lea.sflag [#allocation5], %s247
        %s249 = sand.u32 %s58, 1
        %s250 = smul.addr %s249, 8
        %s251 = scalar_lea.vmem [#allocation8], %s250
        %p252 = pneg %p71
        %p253 = pneg %p68
        %s254 = sand.u32 %s84, 1
        %s255 = scalar_lea.sflag [#allocation10], %s254
        %s256 = sand.u32 %s84, 1
        %s257 = smul.addr %s256, 2
        %s258 = scalar_lea.vmem [#allocation9], %s257
        %p259 = pneg %p97
        %p260 = pneg %p94
        %p261 = pneg %p123
        %p262 = pneg %p120
        %s263 = sand.u32 %s110, 1
        %s264 = scalar_lea.sflag [#allocation6], %s263
        %s265 = sand.u32 %s110, 1
        %s266 = smul.addr %s265, 8
        %s267 = scalar_lea.vmem [#allocation11], %s266
        %p268 = pneg %p149
        %p269 = pneg %p146
        %s270 = sand.u32 %s136, 1
        %s271 = scalar_lea.sflag [#allocation13], %s270
        %s272 = sand.u32 %s136, 1
        %s273 = smul.addr %s272, 2
        %s274 = scalar_lea.vmem [#allocation12], %s273
        %s275 = sld [smem:[#allocation4]]
        %s276 = sld [smem:[#allocation4 + $0x1]]
        %s277 = sld [smem:[#allocation4 + $0x2]]
        %s278 = sld [smem:[#allocation4 + $0x3]]
        %s279 = sld [smem:[#allocation4 + $0x4]]
        %s280 = sld [smem:[#allocation4 + $0x5]]
        %s281 = sld [smem:[#allocation4 + $0x6]]
        %s282 = sld [smem:[#allocation4 + $0x7]]
        %s283 = sld [smem:[#allocation4 + $0x8]]
        %s284 = sld [smem:[#allocation4 + $0x9]]
        %s285 = sld [smem:[#allocation4 + $0xa]]
        %s286 = sld [smem:[#allocation4 + $0xb]]
        %s287 = sld [smem:[#allocation4 + $0xc]]
        %s288 = sld [smem:[#allocation4 + $0xd]]
        %s289 = sld [smem:[#allocation4 + $0xe]]
        %s290 = sld [smem:[#allocation4 + $0xf]]
        %s291 = sld [smem:[#allocation4 + $0x10]]
        %s292 = sld [smem:[#allocation4 + $0x11]]
        %s293 = sld [smem:[#allocation4 + $0x12]]
        %s294 = sld [smem:[#allocation4 + $0x13]]
        %s295 = sld [smem:[#allocation4 + $0x14]]
        %s296 = sld [smem:[#allocation4 + $0x15]]
        %s297 = sld [smem:[#allocation4 + $0x16]]
        %s298 = sld [smem:[#allocation4 + $0x17]]
        %s299 = sld [smem:[#allocation4 + $0x18]]
        %s300 = sld [smem:[#allocation4 + $0x19]]
        %s301 = sld [smem:[#allocation4 + $0x1a]]
        %s302 = sld [smem:[#allocation4 + $0x1b]]
        %s303 = sld [smem:[#allocation4 + $0x1c]]
        %s304 = sld [smem:[#allocation4 + $0x1d]]
        %s305 = sld [smem:[#allocation4 + $0x1e]]
        %s306 = sld [smem:[#allocation4 + $0x1f]]
        %s307 = sld [smem:[#allocation4 + $0x20]]
        %s308 = sld [smem:[#allocation4 + $0x21]]
        %s309 = sld [smem:[#allocation4 + $0x22]]
        %s310 = sld [smem:[#allocation4 + $0x23]]
        %s311 = sld [smem:[#allocation4 + $0x24]]
        %s312 = sld [smem:[#allocation4 + $0x25]]
        %s313 = sld [smem:[#allocation4 + $0x26]]
        %s314 = sld [smem:[#allocation4 + $0x27]]
        %s315 = sld [smem:[#allocation4 + $0x28]]
        %s316 = sld [smem:[#allocation4 + $0x29]]
        %s317 = sld [smem:[#allocation4 + $0x2a]]
        %s318 = sld [smem:[#allocation4 + $0x2b]]
        %s319 = sld [smem:[#allocation4 + $0x2c]]
        %s320 = sld [smem:[#allocation4 + $0x2d]]
        %s321 = sld [smem:[#allocation4 + $0x2e]]
        %s322 = sld [smem:[#allocation4 + $0x2f]]
        %s323 = sld [smem:[#allocation4 + $0x30]]
        %s324 = sld [smem:[#allocation4 + $0x31]]
        %s325 = sld [smem:[#allocation4 + $0x32]]
        %s326 = sld [smem:[#allocation4 + $0x33]]
        %s327 = sld [smem:[#allocation4 + $0x34]]
        %s328 = sld [smem:[#allocation4 + $0x35]]
        %s329 = sld [smem:[#allocation4 + $0x36]]
        %s330 = sld [smem:[#allocation4 + $0x37]]
        %s331 = sld [smem:[#allocation4 + $0x38]]
        %s332 = sld [smem:[#allocation4 + $0x39]]
        %s333 = sld [smem:[#allocation4 + $0x3a]]
        %s334 = sld [smem:[#allocation4 + $0x3b]]
        %s335 = sld [smem:[#allocation4 + $0x3c]]
        %s336 = sld [smem:[#allocation4 + $0x3d]]
        %s337 = sld [smem:[#allocation4 + $0x3e]]
        %s338 = sld [smem:[#allocation4 + $0x3f]]
        %s339 = sld [smem:[#allocation4 + $0x40]]
        %s340 = sld [smem:[#allocation4 + $0x41]]
        %s341 = sld [smem:[#allocation4 + $0x42]]
        %s342 = sld [smem:[#allocation4 + $0x43]]
        %s343 = sld [smem:[#allocation4 + $0x44]]
        %s344 = sld [smem:[#allocation4 + $0x45]]
        %s345 = sld [smem:[#allocation4 + $0x46]]
        %s346 = sld [smem:[#allocation4 + $0x47]]
        %s347 = sld [smem:[#allocation4 + $0x48]]
        %s348 = sld [smem:[#allocation4 + $0x49]]
        %s349 = sld [smem:[#allocation4 + $0x4a]]
        %s350 = sld [smem:[#allocation4 + $0x4b]]
        %s351 = sld [smem:[#allocation4 + $0x4c]]
        %s352 = sld [smem:[#allocation4 + $0x4d]]
        %s353 = sld [smem:[#allocation4 + $0x4e]]
        %s354 = sld [smem:[#allocation4 + $0x4f]]
        %s355 = sld [smem:[#allocation4 + $0x50]]
        %s356 = sld [smem:[#allocation4 + $0x51]]
        %s357 = sld [smem:[#allocation4 + $0x52]]
        %s358 = sld [smem:[#allocation4 + $0x53]]
        %s359 = sld [smem:[#allocation4 + $0x54]]
        %s360 = sld [smem:[#allocation4 + $0x55]]
        %s361 = sld [smem:[#allocation4 + $0x56]]
        %s362 = sld [smem:[#allocation4 + $0x57]]
        %s363 = sld [smem:[#allocation4 + $0x58]]
        %s364 = sld [smem:[#allocation4 + $0x59]]
        %s365 = sld [smem:[#allocation4 + $0x5a]]
        %s366 = sld [smem:[#allocation4 + $0x5b]]
        %s367 = sld [smem:[#allocation4 + $0x5c]]
        %s368 = sld [smem:[#allocation4 + $0x5d]]
        %s369 = sld [smem:[#allocation4 + $0x5e]]
        %s370 = sld [smem:[#allocation4 + $0x5f]]
        %s371 = sld [smem:[#allocation4 + $0x60]]
        %s372 = sld [smem:[#allocation4 + $0x61]]
        %s373 = sld [smem:[#allocation4 + $0x62]]
        %374 = vst [vmem:[#allocation2] sm:$0xff] 0.0
        %375 = vst [vmem:[#allocation2 + $0x8] sm:$0xff] 0.0
        %376 = vst [vmem:[#allocation2 + $0x10] sm:$0x3f] 0.0
        %377 = vst [vmem:[#allocation2 + $0x18] sm:$0xff] 0.0
        %378 = vst [vmem:[#allocation2 + $0x20] sm:$0xff] 0.0
        %379 = vst [vmem:[#allocation2 + $0x28] sm:$0x3f] 0.0
        %v380 = vld [vmem:[%s230] ss:$4 sm:$0x3]
        %s381 = scalar_lea.vmem %s230, 1 [#allocation8]
        %v382 = vld [vmem:[%s381] ss:$4 sm:$0x3]
        %v383 = vmax.f32 %v380, %v382
        %v384 = vadd.f32 %v380, %v382
        %s385 = scalar_lea.vmem %s230, 2 [#allocation8]
        %v386 = vld [vmem:[%s385] ss:$4 sm:$0x3]
        %v387 = vmax.f32 %v383, %v386
        %v388 = vadd.f32 %v384, %v386
        %s389 = scalar_lea.vmem %s230, 3 [#allocation8]
        %v390 = vld [vmem:[%s389] ss:$4 sm:$0x3]
        %v391 = vmax.f32 %v387, %v390
        %v392 = vadd.f32 %v388, %v390
        %v393 = vlaneseq
        %vm394 = vcmp.ge.s32.totalorder %v393, 0
        %vm395 = vcmp.lt.s32.totalorder %v393, 256
        %vm396 = vmand %vm394, %vm395
        %397 = vst.msk [vmem:[#allocation3] ss:$4 sm:$0x3] %vm396, %v391
        %s398 = scalar_lea.vmem [#allocation3], 1
        %399 = vst.msk [vmem:[%s398] ss:$4 sm:$0x3] %vm396, %v392
        %v400 = vld [vmem:[#allocation3] sm:$0x1]
        %v402 = vlaneseq
        %v403 = vshrl.u32 %v402, 7
        %v404 = vsub.s32 0, %v403
        %v405 = vrot.slane %v400, %v404
        %406 = vrot.lane.b32.xlu0 %v405, 3
        %v407 = vpop.permute.xlu0 %406
        %vm409 = vcmask 147480
        %410 = vst.msk [vmem:[#allocation2 + $0x3] sm:$0x1] %vm409, %v407
        %v411 = vld [vmem:[#allocation3 + $0x1] sm:$0x1]
        %v413 = vlaneseq
        %v414 = vshrl.u32 %v413, 7
        %v415 = vsub.s32 0, %v414
        %v416 = vrot.slane %v411, %v415
        %417 = vrot.lane.b32.xlu0 %v416, 3
        %v418 = vpop.permute.xlu0 %417
        %s420 = scalar_lea.vmem [#allocation2], 24
        %421 = vst.msk [vmem:[%s420 + $0x3] sm:$0x1] %vm409, %v418
        %v422 = vld [vmem:[#allocation3] sm:$0x1]
        %v424 = vlaneseq
        %v425 = vshrl.u32 %v424, 7
        %v426 = vsub.s32 0, %v425
        %v427 = vrot.slane %v422, %v426
        %428 = vrot.lane.b32.xlu0 %v427, 115
        %v429 = vpop.permute.xlu0 %428
        %431 = vst.msk [vmem:[#allocation2 + $0x4] sm:$0x1] %vm409, %v429
        %v432 = vld [vmem:[#allocation3 + $0x1] sm:$0x1]
        %v434 = vlaneseq
        %v435 = vshrl.u32 %v434, 7
        %v436 = vsub.s32 0, %v435
        %v437 = vrot.slane %v432, %v436
        %438 = vrot.lane.b32.xlu0 %v437, 115
        %v439 = vpop.permute.xlu0 %438
        %441 = vst.msk [vmem:[%s420 + $0x4] sm:$0x1] %vm409, %v439
        %v442 = vld [vmem:[#allocation3] sm:$0x1]
        %v444 = vlaneseq
        %v445 = vshrl.u32 %v444, 7
        %v446 = vsub.s32 0, %v445
        %v447 = vrot.slane %v442, %v446
        %448 = vrot.lane.b32.xlu0 %v447, 99
        %v449 = vpop.permute.xlu0 %448
        %451 = vst.msk [vmem:[#allocation2 + $0x5] sm:$0x1] %vm409, %v449
        %v452 = vld [vmem:[#allocation3 + $0x1] sm:$0x1]
        %v454 = vlaneseq
        %v455 = vshrl.u32 %v454, 7
        %v456 = vsub.s32 0, %v455
        %v457 = vrot.slane %v452, %v456
        %458 = vrot.lane.b32.xlu0 %v457, 99
        %v459 = vpop.permute.xlu0 %458
        %461 = vst.msk [vmem:[%s420 + $0x5] sm:$0x1] %vm409, %v459
        %v462 = vld [vmem:[#allocation3] sm:$0x1]
        %v464 = vlaneseq
        %v465 = vshrl.u32 %v464, 7
        %v466 = vsub.s32 0, %v465
        %v467 = vrot.slane %v462, %v466
        %468 = vrot.lane.b32.xlu0 %v467, 83
        %v469 = vpop.permute.xlu0 %468
        %471 = vst.msk [vmem:[#allocation2 + $0x6] sm:$0x1] %vm409, %v469
        %v472 = vld [vmem:[#allocation3 + $0x1] sm:$0x1]
        %v474 = vlaneseq
        %v475 = vshrl.u32 %v474, 7
        %v476 = vsub.s32 0, %v475
        %v477 = vrot.slane %v472, %v476
        %478 = vrot.lane.b32.xlu0 %v477, 83
        %v479 = vpop.permute.xlu0 %478
        %481 = vst.msk [vmem:[%s420 + $0x6] sm:$0x1] %vm409, %v479
        %v482 = vld [vmem:[#allocation3] sm:$0x1]
        %v484 = vlaneseq
        %v485 = vshrl.u32 %v484, 7
        %v486 = vsub.s32 0, %v485
        %v487 = vrot.slane %v482, %v486
        %488 = vrot.lane.b32.xlu0 %v487, 67
        %v489 = vpop.permute.xlu0 %488
        %491 = vst.msk [vmem:[#allocation2 + $0x7] sm:$0x1] %vm409, %v489
        %v492 = vld [vmem:[#allocation3 + $0x1] sm:$0x1]
        %v494 = vlaneseq
        %v495 = vshrl.u32 %v494, 7
        %v496 = vsub.s32 0, %v495
        %v497 = vrot.slane %v492, %v496
        %498 = vrot.lane.b32.xlu0 %v497, 67
        %v499 = vpop.permute.xlu0 %498
        %501 = vst.msk [vmem:[%s420 + $0x7] sm:$0x1] %vm409, %v499
        %v502 = vld [vmem:[#allocation3] sm:$0x1]
        %v504 = vlaneseq
        %v505 = vshrl.u32 %v504, 7
        %v506 = vsub.s32 0, %v505
        %v507 = vrot.slane %v502, %v506
        %508 = vrot.lane.b32.xlu0 %v507, 51
        %v509 = vpop.permute.xlu0 %508
        %511 = vst.msk [vmem:[#allocation2 + $0x8] sm:$0x1] %vm409, %v509
        %v512 = vld [vmem:[#allocation3 + $0x1] sm:$0x1]
        %v514 = vlaneseq
        %v515 = vshrl.u32 %v514, 7
        %v516 = vsub.s32 0, %v515
        %v517 = vrot.slane %v512, %v516
        %518 = vrot.lane.b32.xlu0 %v517, 51
        %v519 = vpop.permute.xlu0 %518
        %521 = vst.msk [vmem:[%s420 + $0x8] sm:$0x1] %vm409, %v519
        %v522 = vld [vmem:[#allocation3] sm:$0x1]
        %v524 = vlaneseq
        %v525 = vshrl.u32 %v524, 7
        %v526 = vsub.s32 0, %v525
        %v527 = vrot.slane %v522, %v526
        %528 = vrot.lane.b32.xlu0 %v527, 35
        %v529 = vpop.permute.xlu0 %528
        %531 = vst.msk [vmem:[#allocation2 + $0x9] sm:$0x1] %vm409, %v529
        %v532 = vld [vmem:[#allocation3 + $0x1] sm:$0x1]
        %v534 = vlaneseq
        %v535 = vshrl.u32 %v534, 7
        %v536 = vsub.s32 0, %v535
        %v537 = vrot.slane %v532, %v536
        %538 = vrot.lane.b32.xlu0 %v537, 35
        %v539 = vpop.permute.xlu0 %538
        %541 = vst.msk [vmem:[%s420 + $0x9] sm:$0x1] %vm409, %v539
        %v542 = vld [vmem:[#allocation3] sm:$0x1]
        %v544 = vlaneseq
        %v545 = vshrl.u32 %v544, 7
        %v546 = vsub.s32 0, %v545
        %v547 = vrot.slane %v542, %v546
        %548 = vrot.lane.b32.xlu0 %v547, 19
        %v549 = vpop.permute.xlu0 %548
        %551 = vst.msk [vmem:[#allocation2 + $0xa] sm:$0x1] %vm409, %v549
        %v552 = vld [vmem:[#allocation3 + $0x1] sm:$0x1]
        %v554 = vlaneseq
        %v555 = vshrl.u32 %v554, 7
        %v556 = vsub.s32 0, %v555
        %v557 = vrot.slane %v552, %v556
        %558 = vrot.lane.b32.xlu0 %v557, 19
        %v559 = vpop.permute.xlu0 %558
        %561 = vst.msk [vmem:[%s420 + $0xa] sm:$0x1] %vm409, %v559
        %v562 = vld [vmem:[#allocation3 + $0x4] sm:$0x1]
        %v564 = vlaneseq
        %v565 = vshrl.u32 %v564, 7
        %v566 = vsub.s32 0, %v565
        %v567 = vrot.slane %v562, %v566
        %568 = vrot.lane.b32.xlu0 %v567, 3
        %v569 = vpop.permute.xlu0 %568
        %571 = vst.msk [vmem:[#allocation2 + $0xb] sm:$0x1] %vm409, %v569
        %v572 = vld [vmem:[#allocation3 + $0x5] sm:$0x1]
        %v574 = vlaneseq
        %v575 = vshrl.u32 %v574, 7
        %v576 = vsub.s32 0, %v575
        %v577 = vrot.slane %v572, %v576
        %578 = vrot.lane.b32.xlu0 %v577, 3
        %v579 = vpop.permute.xlu0 %578
        %581 = vst.msk [vmem:[%s420 + $0xb] sm:$0x1] %vm409, %v579
        %v582 = vld [vmem:[#allocation3 + $0x4] sm:$0x1]
        %v584 = vlaneseq
        %v585 = vshrl.u32 %v584, 7
        %v586 = vsub.s32 0, %v585
        %v587 = vrot.slane %v582, %v586
        %588 = vrot.lane.b32.xlu0 %v587, 115
        %v589 = vpop.permute.xlu0 %588
        %591 = vst.msk [vmem:[#allocation2 + $0xc] sm:$0x1] %vm409, %v589
        %v592 = vld [vmem:[#allocation3 + $0x5] sm:$0x1]
        %v594 = vlaneseq
        %v595 = vshrl.u32 %v594, 7
        %v596 = vsub.s32 0, %v595
        %v597 = vrot.slane %v592, %v596
        %598 = vrot.lane.b32.xlu0 %v597, 115
        %v599 = vpop.permute.xlu0 %598
        %601 = vst.msk [vmem:[%s420 + $0xc] sm:$0x1] %vm409, %v599
        %v602 = vld [vmem:[#allocation3 + $0x4] sm:$0x1]
        %v604 = vlaneseq
        %v605 = vshrl.u32 %v604, 7
        %v606 = vsub.s32 0, %v605
        %v607 = vrot.slane %v602, %v606
        %608 = vrot.lane.b32.xlu0 %v607, 99
        %v609 = vpop.permute.xlu0 %608
        %611 = vst.msk [vmem:[#allocation2 + $0xd] sm:$0x1] %vm409, %v609
        %v612 = vld [vmem:[#allocation3 + $0x5] sm:$0x1]
        %v614 = vlaneseq
        %v615 = vshrl.u32 %v614, 7
        %v616 = vsub.s32 0, %v615
        %v617 = vrot.slane %v612, %v616
        %618 = vrot.lane.b32.xlu0 %v617, 99
        %v619 = vpop.permute.xlu0 %618
        %621 = vst.msk [vmem:[%s420 + $0xd] sm:$0x1] %vm409, %v619
        %v622 = vld [vmem:[#allocation3 + $0x4] sm:$0x1]
        %v624 = vlaneseq
        %v625 = vshrl.u32 %v624, 7
        %v626 = vsub.s32 0, %v625
        %v627 = vrot.slane %v622, %v626
        %628 = vrot.lane.b32.xlu0 %v627, 83
        %v629 = vpop.permute.xlu0 %628
        %631 = vst.msk [vmem:[#allocation2 + $0xe] sm:$0x1] %vm409, %v629
        %v632 = vld [vmem:[#allocation3 + $0x5] sm:$0x1]
        %v634 = vlaneseq
        %v635 = vshrl.u32 %v634, 7
        %v636 = vsub.s32 0, %v635
        %v637 = vrot.slane %v632, %v636
        %638 = vrot.lane.b32.xlu0 %v637, 83
        %v639 = vpop.permute.xlu0 %638
        %641 = vst.msk [vmem:[%s420 + $0xe] sm:$0x1] %vm409, %v639
        %v642 = vld [vmem:[#allocation3 + $0x4] sm:$0x1]
        %v644 = vlaneseq
        %v645 = vshrl.u32 %v644, 7
        %v646 = vsub.s32 0, %v645
        %v647 = vrot.slane %v642, %v646
        %648 = vrot.lane.b32.xlu0 %v647, 67
        %v649 = vpop.permute.xlu0 %648
        %651 = vst.msk [vmem:[#allocation2 + $0xf] sm:$0x1] %vm409, %v649
        %v652 = vld [vmem:[#allocation3 + $0x5] sm:$0x1]
        %v654 = vlaneseq
        %v655 = vshrl.u32 %v654, 7
        %v656 = vsub.s32 0, %v655
        %v657 = vrot.slane %v652, %v656
        %658 = vrot.lane.b32.xlu0 %v657, 67
        %v659 = vpop.permute.xlu0 %658
        %661 = vst.msk [vmem:[%s420 + $0xf] sm:$0x1] %vm409, %v659
        %v662 = vld [vmem:[#allocation3 + $0x4] sm:$0x1]
        %v664 = vlaneseq
        %v665 = vshrl.u32 %v664, 7
        %v666 = vsub.s32 0, %v665
        %v667 = vrot.slane %v662, %v666
        %668 = vrot.lane.b32.xlu0 %v667, 51
        %v669 = vpop.permute.xlu0 %668
        %671 = vst.msk [vmem:[#allocation2 + $0x10] sm:$0x1] %vm409, %v669
        %v672 = vld [vmem:[#allocation3 + $0x5] sm:$0x1]
        %v674 = vlaneseq
        %v675 = vshrl.u32 %v674, 7
        %v676 = vsub.s32 0, %v675
        %v677 = vrot.slane %v672, %v676
        %678 = vrot.lane.b32.xlu0 %v677, 51
        %v679 = vpop.permute.xlu0 %678
        %681 = vst.msk [vmem:[%s420 + $0x10] sm:$0x1] %vm409, %v679
        %v682 = vld [vmem:[#allocation3 + $0x4] sm:$0x1]
        %v684 = vlaneseq
        %v685 = vshrl.u32 %v684, 7
        %v686 = vsub.s32 0, %v685
        %v687 = vrot.slane %v682, %v686
        %688 = vrot.lane.b32.xlu0 %v687, 35
        %v689 = vpop.permute.xlu0 %688
        %691 = vst.msk [vmem:[#allocation2 + $0x11] sm:$0x1] %vm409, %v689
        %v692 = vld [vmem:[#allocation3 + $0x5] sm:$0x1]
        %v694 = vlaneseq
        %v695 = vshrl.u32 %v694, 7
        %v696 = vsub.s32 0, %v695
        %v697 = vrot.slane %v692, %v696
        %698 = vrot.lane.b32.xlu0 %v697, 35
        %v699 = vpop.permute.xlu0 %698
        %701 = vst.msk [vmem:[%s420 + $0x11] sm:$0x1] %vm409, %v699
        %v702 = vld [vmem:[#allocation3 + $0x4] sm:$0x1]
        %v704 = vlaneseq
        %v705 = vshrl.u32 %v704, 7
        %v706 = vsub.s32 0, %v705
        %v707 = vrot.slane %v702, %v706
        %708 = vrot.lane.b32.xlu0 %v707, 19
        %v709 = vpop.permute.xlu0 %708
        %711 = vst.msk [vmem:[#allocation2 + $0x12] sm:$0x1] %vm409, %v709
        %v712 = vld [vmem:[#allocation3 + $0x5] sm:$0x1]
        %v714 = vlaneseq
        %v715 = vshrl.u32 %v714, 7
        %v716 = vsub.s32 0, %v715
        %v717 = vrot.slane %v712, %v716
        %718 = vrot.lane.b32.xlu0 %v717, 19
        %v719 = vpop.permute.xlu0 %718
        %721 = vst.msk [vmem:[%s420 + $0x12] sm:$0x1] %vm409, %v719
        %v722 = vld [vmem:[#allocation2] sm:$0xff]
        %v723 = vld [vmem:[#allocation2 + $0x8] sm:$0xff]
        %v724 = vld [vmem:[#allocation2 + $0x10] sm:$0x3f]
        %v725 = vstv %s275
        %v726 = vmul.f32 %v725, %v722
        %v727 = vmul.f32 %v725, %v723
        %v728 = vadd.f32 %v726, 0.0
        %v729 = vadd.f32 %v727, 0.0
        %v730 = vstv %s282
        %v731 = vmul.f32 %v730, %v722
        %v732 = vmul.f32 %v730, %v723
        %v733 = vmul.f32 %v730, %v724
        %vm737 = vcmask 1046528
        %v738 = vrot.slane %v731, 1
        %v739 = vrot.slane %v732, 1
        %v740 = vsel %vm737, %v738, %v739
        %v741 = vrot.slane %v733, 1
        %v742 = vsel %vm737, %v739, %v741
        %v745 = vadd.f32 %v728, %v740
        %v746 = vadd.f32 %v729, %v742
        %v747 = vstv %s289
        %v748 = vmul.f32 %v747, %v722
        %v749 = vmul.f32 %v747, %v723
        %v750 = vmul.f32 %v747, %v724
        %vm754 = vcmask 1045504
        %v755 = vrot.slane %v748, 2
        %v756 = vrot.slane %v749, 2
        %v757 = vsel %vm754, %v755, %v756
        %v758 = vrot.slane %v750, 2
        %v759 = vsel %vm754, %v756, %v758
        %v762 = vadd.f32 %v745, %v757
        %v763 = vadd.f32 %v746, %v759
        %v764 = vstv %s296
        %v765 = vmul.f32 %v764, %v722
        %v766 = vmul.f32 %v764, %v723
        %v767 = vmul.f32 %v764, %v724
        %vm771 = vcmask 1044480
        %v772 = vrot.slane %v765, 3
        %v773 = vrot.slane %v766, 3
        %v774 = vsel %vm771, %v772, %v773
        %v775 = vrot.slane %v767, 3
        %v776 = vsel %vm771, %v773, %v775
        %v779 = vadd.f32 %v762, %v774
        %v780 = vadd.f32 %v763, %v776
        %v781 = vstv %s303
        %v782 = vmul.f32 %v781, %v722
        %v783 = vmul.f32 %v781, %v723
        %v784 = vmul.f32 %v781, %v724
        %vm788 = vcmask 1043456
        %v789 = vrot.slane %v782, 4
        %v790 = vrot.slane %v783, 4
        %v791 = vsel %vm788, %v789, %v790
        %v792 = vrot.slane %v784, 4
        %v793 = vsel %vm788, %v790, %v792
        %v796 = vadd.f32 %v779, %v791
        %v797 = vadd.f32 %v780, %v793
        %v798 = vstv %s310
        %v799 = vmul.f32 %v798, %v722
        %v800 = vmul.f32 %v798, %v723
        %v801 = vmul.f32 %v798, %v724
        %vm805 = vcmask 1042432
        %v806 = vrot.slane %v799, 5
        %v807 = vrot.slane %v800, 5
        %v808 = vsel %vm805, %v806, %v807
        %v809 = vrot.slane %v801, 5
        %v810 = vsel %vm805, %v807, %v809
        %v813 = vadd.f32 %v796, %v808
        %v814 = vadd.f32 %v797, %v810
        %v815 = vstv %s317
        %v816 = vmul.f32 %v815, %v722
        %v817 = vmul.f32 %v815, %v723
        %v818 = vmul.f32 %v815, %v724
        %vm822 = vcmask 1041408
        %v823 = vrot.slane %v816, 6
        %v824 = vrot.slane %v817, 6
        %v825 = vsel %vm822, %v823, %v824
        %v826 = vrot.slane %v818, 6
        %v827 = vsel %vm822, %v824, %v826
        %v830 = vadd.f32 %v813, %v825
        %v831 = vadd.f32 %v814, %v827
        %v832 = vstv %s276
        %v833 = vmul.f32 %v832, %v722
        %v834 = vmul.f32 %v832, %v723
        %v835 = vadd.f32 %v833, 0.0
        %v836 = vadd.f32 %v834, 0.0
        %v837 = vstv %s283
        %v838 = vmul.f32 %v837, %v722
        %v839 = vmul.f32 %v837, %v723
        %v840 = vmul.f32 %v837, %v724
        %v844 = vrot.slane %v838, 1
        %v845 = vrot.slane %v839, 1
        %v846 = vsel %vm737, %v844, %v845
        %v847 = vrot.slane %v840, 1
        %v848 = vsel %vm737, %v845, %v847
        %v851 = vadd.f32 %v835, %v846
        %v852 = vadd.f32 %v836, %v848
        %v853 = vstv %s290
        %v854 = vmul.f32 %v853, %v722
        %v855 = vmul.f32 %v853, %v723
        %v856 = vmul.f32 %v853, %v724
        %v860 = vrot.slane %v854, 2
        %v861 = vrot.slane %v855, 2
        %v862 = vsel %vm754, %v860, %v861
        %v863 = vrot.slane %v856, 2
        %v864 = vsel %vm754, %v861, %v863
        %v867 = vadd.f32 %v851, %v862
        %v868 = vadd.f32 %v852, %v864
        %v869 = vstv %s297
        %v870 = vmul.f32 %v869, %v722
        %v871 = vmul.f32 %v869, %v723
        %v872 = vmul.f32 %v869, %v724
        %v876 = vrot.slane %v870, 3
        %v877 = vrot.slane %v871, 3
        %v878 = vsel %vm771, %v876, %v877
        %v879 = vrot.slane %v872, 3
        %v880 = vsel %vm771, %v877, %v879
        %v883 = vadd.f32 %v867, %v878
        %v884 = vadd.f32 %v868, %v880
        %v885 = vstv %s304
        %v886 = vmul.f32 %v885, %v722
        %v887 = vmul.f32 %v885, %v723
        %v888 = vmul.f32 %v885, %v724
        %v892 = vrot.slane %v886, 4
        %v893 = vrot.slane %v887, 4
        %v894 = vsel %vm788, %v892, %v893
        %v895 = vrot.slane %v888, 4
        %v896 = vsel %vm788, %v893, %v895
        %v899 = vadd.f32 %v883, %v894
        %v900 = vadd.f32 %v884, %v896
        %v901 = vstv %s311
        %v902 = vmul.f32 %v901, %v722
        %v903 = vmul.f32 %v901, %v723
        %v904 = vmul.f32 %v901, %v724
        %v908 = vrot.slane %v902, 5
        %v909 = vrot.slane %v903, 5
        %v910 = vsel %vm805, %v908, %v909
        %v911 = vrot.slane %v904, 5
        %v912 = vsel %vm805, %v909, %v911
        %v915 = vadd.f32 %v899, %v910
        %v916 = vadd.f32 %v900, %v912
        %v917 = vstv %s318
        %v918 = vmul.f32 %v917, %v722
        %v919 = vmul.f32 %v917, %v723
        %v920 = vmul.f32 %v917, %v724
        %v924 = vrot.slane %v918, 6
        %v925 = vrot.slane %v919, 6
        %v926 = vsel %vm822, %v924, %v925
        %v927 = vrot.slane %v920, 6
        %v928 = vsel %vm822, %v925, %v927
        %v931 = vadd.f32 %v915, %v926
        %v932 = vadd.f32 %v916, %v928
        %v933 = vstv %s277
        %v934 = vmul.f32 %v933, %v722
        %v935 = vmul.f32 %v933, %v723
        %938 = vrot.lane.b32.xlu0 %v934, 126
        %v939 = vpop.permute.xlu0 %938
        %940 = vrot.lane.b32.xlu0 %v935, 126
        %v941 = vpop.permute.xlu0 %940
        %v944 = vadd.f32 %v830, %v939
        %v945 = vadd.f32 %v831, %v941
        %v946 = vstv %s284
        %v947 = vmul.f32 %v946, %v722
        %v948 = vmul.f32 %v946, %v723
        %v949 = vmul.f32 %v946, %v724
        %v953 = vrot.slane %v947, 1
        %v954 = vrot.slane %v948, 1
        %v955 = vsel %vm737, %v953, %v954
        %v956 = vrot.slane %v949, 1
        %v957 = vsel %vm737, %v954, %v956
        %958 = vrot.lane.b32.xlu0 %v955, 126
        %v959 = vpop.permute.xlu0 %958
        %960 = vrot.lane.b32.xlu0 %v957, 126
        %v961 = vpop.permute.xlu0 %960
        %v964 = vadd.f32 %v944, %v959
        %v965 = vadd.f32 %v945, %v961
        %v966 = vstv %s291
        %v967 = vmul.f32 %v966, %v722
        %v968 = vmul.f32 %v966, %v723
        %v969 = vmul.f32 %v966, %v724
        %v973 = vrot.slane %v967, 2
        %v974 = vrot.slane %v968, 2
        %v975 = vsel %vm754, %v973, %v974
        %v976 = vrot.slane %v969, 2
        %v977 = vsel %vm754, %v974, %v976
        %978 = vrot.lane.b32.xlu0 %v975, 126
        %v979 = vpop.permute.xlu0 %978
        %980 = vrot.lane.b32.xlu0 %v977, 126
        %v981 = vpop.permute.xlu0 %980
        %v984 = vadd.f32 %v964, %v979
        %v985 = vadd.f32 %v965, %v981
        %v986 = vstv %s298
        %v987 = vmul.f32 %v986, %v722
        %v988 = vmul.f32 %v986, %v723
        %v989 = vmul.f32 %v986, %v724
        %v993 = vrot.slane %v987, 3
        %v994 = vrot.slane %v988, 3
        %v995 = vsel %vm771, %v993, %v994
        %v996 = vrot.slane %v989, 3
        %v997 = vsel %vm771, %v994, %v996
        %998 = vrot.lane.b32.xlu0 %v995, 126
        %v999 = vpop.permute.xlu0 %998
        %1000 = vrot.lane.b32.xlu0 %v997, 126
        %v1001 = vpop.permute.xlu0 %1000
        %v1004 = vadd.f32 %v984, %v999
        %v1005 = vadd.f32 %v985, %v1001
        %v1006 = vstv %s305
        %v1007 = vmul.f32 %v1006, %v722
        %v1008 = vmul.f32 %v1006, %v723
        %v1009 = vmul.f32 %v1006, %v724
        %v1013 = vrot.slane %v1007, 4
        %v1014 = vrot.slane %v1008, 4
        %v1015 = vsel %vm788, %v1013, %v1014
        %v1016 = vrot.slane %v1009, 4
        %v1017 = vsel %vm788, %v1014, %v1016
        %1018 = vrot.lane.b32.xlu0 %v1015, 126
        %v1019 = vpop.permute.xlu0 %1018
        %1020 = vrot.lane.b32.xlu0 %v1017, 126
        %v1021 = vpop.permute.xlu0 %1020
        %v1024 = vadd.f32 %v1004, %v1019
        %v1025 = vadd.f32 %v1005, %v1021
        %v1026 = vstv %s312
        %v1027 = vmul.f32 %v1026, %v722
        %v1028 = vmul.f32 %v1026, %v723
        %v1029 = vmul.f32 %v1026, %v724
        %v1033 = vrot.slane %v1027, 5
        %v1034 = vrot.slane %v1028, 5
        %v1035 = vsel %vm805, %v1033, %v1034
        %v1036 = vrot.slane %v1029, 5
        %v1037 = vsel %vm805, %v1034, %v1036
        %1038 = vrot.lane.b32.xlu0 %v1035, 126
        %v1039 = vpop.permute.xlu0 %1038
        %1040 = vrot.lane.b32.xlu0 %v1037, 126
        %v1041 = vpop.permute.xlu0 %1040
        %v1044 = vadd.f32 %v1024, %v1039
        %v1045 = vadd.f32 %v1025, %v1041
        %v1046 = vstv %s319
        %v1047 = vmul.f32 %v1046, %v722
        %v1048 = vmul.f32 %v1046, %v723
        %v1049 = vmul.f32 %v1046, %v724
        %v1053 = vrot.slane %v1047, 6
        %v1054 = vrot.slane %v1048, 6
        %v1055 = vsel %vm822, %v1053, %v1054
        %v1056 = vrot.slane %v1049, 6
        %v1057 = vsel %vm822, %v1054, %v1056
        %1058 = vrot.lane.b32.xlu0 %v1055, 126
        %v1059 = vpop.permute.xlu0 %1058
        %1060 = vrot.lane.b32.xlu0 %v1057, 126
        %v1061 = vpop.permute.xlu0 %1060
        %v1064 = vadd.f32 %v1044, %v1059
        %v1065 = vadd.f32 %v1045, %v1061
        %v1066 = vstv %s278
        %v1067 = vmul.f32 %v1066, %v722
        %v1068 = vmul.f32 %v1066, %v723
        %1071 = vrot.lane.b32.xlu0 %v1067, 126
        %v1072 = vpop.permute.xlu0 %1071
        %1073 = vrot.lane.b32.xlu0 %v1068, 126
        %v1074 = vpop.permute.xlu0 %1073
        %v1077 = vadd.f32 %v931, %v1072
        %v1078 = vadd.f32 %v932, %v1074
        %v1079 = vstv %s285
        %v1080 = vmul.f32 %v1079, %v722
        %v1081 = vmul.f32 %v1079, %v723
        %v1082 = vmul.f32 %v1079, %v724
        %v1086 = vrot.slane %v1080, 1
        %v1087 = vrot.slane %v1081, 1
        %v1088 = vsel %vm737, %v1086, %v1087
        %v1089 = vrot.slane %v1082, 1
        %v1090 = vsel %vm737, %v1087, %v1089
        %1091 = vrot.lane.b32.xlu0 %v1088, 126
        %v1092 = vpop.permute.xlu0 %1091
        %1093 = vrot.lane.b32.xlu0 %v1090, 126
        %v1094 = vpop.permute.xlu0 %1093
        %v1097 = vadd.f32 %v1077, %v1092
        %v1098 = vadd.f32 %v1078, %v1094
        %v1099 = vstv %s292
        %v1100 = vmul.f32 %v1099, %v722
        %v1101 = vmul.f32 %v1099, %v723
        %v1102 = vmul.f32 %v1099, %v724
        %v1106 = vrot.slane %v1100, 2
        %v1107 = vrot.slane %v1101, 2
        %v1108 = vsel %vm754, %v1106, %v1107
        %v1109 = vrot.slane %v1102, 2
        %v1110 = vsel %vm754, %v1107, %v1109
        %1111 = vrot.lane.b32.xlu0 %v1108, 126
        %v1112 = vpop.permute.xlu0 %1111
        %1113 = vrot.lane.b32.xlu0 %v1110, 126
        %v1114 = vpop.permute.xlu0 %1113
        %v1117 = vadd.f32 %v1097, %v1112
        %v1118 = vadd.f32 %v1098, %v1114
        %v1119 = vstv %s299
        %v1120 = vmul.f32 %v1119, %v722
        %v1121 = vmul.f32 %v1119, %v723
        %v1122 = vmul.f32 %v1119, %v724
        %v1126 = vrot.slane %v1120, 3
        %v1127 = vrot.slane %v1121, 3
        %v1128 = vsel %vm771, %v1126, %v1127
        %v1129 = vrot.slane %v1122, 3
        %v1130 = vsel %vm771, %v1127, %v1129
        %1131 = vrot.lane.b32.xlu0 %v1128, 126
        %v1132 = vpop.permute.xlu0 %1131
        %1133 = vrot.lane.b32.xlu0 %v1130, 126
        %v1134 = vpop.permute.xlu0 %1133
        %v1137 = vadd.f32 %v1117, %v1132
        %v1138 = vadd.f32 %v1118, %v1134
        %v1139 = vstv %s306
        %v1140 = vmul.f32 %v1139, %v722
        %v1141 = vmul.f32 %v1139, %v723
        %v1142 = vmul.f32 %v1139, %v724
        %v1146 = vrot.slane %v1140, 4
        %v1147 = vrot.slane %v1141, 4
        %v1148 = vsel %vm788, %v1146, %v1147
        %v1149 = vrot.slane %v1142, 4
        %v1150 = vsel %vm788, %v1147, %v1149
        %1151 = vrot.lane.b32.xlu0 %v1148, 126
        %v1152 = vpop.permute.xlu0 %1151
        %1153 = vrot.lane.b32.xlu0 %v1150, 126
        %v1154 = vpop.permute.xlu0 %1153
        %v1157 = vadd.f32 %v1137, %v1152
        %v1158 = vadd.f32 %v1138, %v1154
        %v1159 = vstv %s313
        %v1160 = vmul.f32 %v1159, %v722
        %v1161 = vmul.f32 %v1159, %v723
        %v1162 = vmul.f32 %v1159, %v724
        %v1166 = vrot.slane %v1160, 5
        %v1167 = vrot.slane %v1161, 5
        %v1168 = vsel %vm805, %v1166, %v1167
        %v1169 = vrot.slane %v1162, 5
        %v1170 = vsel %vm805, %v1167, %v1169
        %1171 = vrot.lane.b32.xlu0 %v1168, 126
        %v1172 = vpop.permute.xlu0 %1171
        %1173 = vrot.lane.b32.xlu0 %v1170, 126
        %v1174 = vpop.permute.xlu0 %1173
        %v1177 = vadd.f32 %v1157, %v1172
        %v1178 = vadd.f32 %v1158, %v1174
        %v1179 = vstv %s320
        %v1180 = vmul.f32 %v1179, %v722
        %v1181 = vmul.f32 %v1179, %v723
        %v1182 = vmul.f32 %v1179, %v724
        %v1186 = vrot.slane %v1180, 6
        %v1187 = vrot.slane %v1181, 6
        %v1188 = vsel %vm822, %v1186, %v1187
        %v1189 = vrot.slane %v1182, 6
        %v1190 = vsel %vm822, %v1187, %v1189
        %1191 = vrot.lane.b32.xlu0 %v1188, 126
        %v1192 = vpop.permute.xlu0 %1191
        %1193 = vrot.lane.b32.xlu0 %v1190, 126
        %v1194 = vpop.permute.xlu0 %1193
        %v1197 = vadd.f32 %v1177, %v1192
        %v1198 = vadd.f32 %v1178, %v1194
        %v1199 = vstv %s279
        %v1200 = vmul.f32 %v1199, %v722
        %v1201 = vmul.f32 %v1199, %v723
        %1204 = vrot.lane.b32.xlu0 %v1200, 124
        %v1205 = vpop.permute.xlu0 %1204
        %1206 = vrot.lane.b32.xlu0 %v1201, 124
        %v1207 = vpop.permute.xlu0 %1206
        %v1210 = vadd.f32 %v1064, %v1205
        %v1211 = vadd.f32 %v1065, %v1207
        %v1212 = vstv %s286
        %v1213 = vmul.f32 %v1212, %v722
        %v1214 = vmul.f32 %v1212, %v723
        %v1215 = vmul.f32 %v1212, %v724
        %v1219 = vrot.slane %v1213, 1
        %v1220 = vrot.slane %v1214, 1
        %v1221 = vsel %vm737, %v1219, %v1220
        %v1222 = vrot.slane %v1215, 1
        %v1223 = vsel %vm737, %v1220, %v1222
        %1224 = vrot.lane.b32.xlu0 %v1221, 124
        %v1225 = vpop.permute.xlu0 %1224
        %1226 = vrot.lane.b32.xlu0 %v1223, 124
        %v1227 = vpop.permute.xlu0 %1226
        %v1230 = vadd.f32 %v1210, %v1225
        %v1231 = vadd.f32 %v1211, %v1227
        %v1232 = vstv %s293
        %v1233 = vmul.f32 %v1232, %v722
        %v1234 = vmul.f32 %v1232, %v723
        %v1235 = vmul.f32 %v1232, %v724
        %v1239 = vrot.slane %v1233, 2
        %v1240 = vrot.slane %v1234, 2
        %v1241 = vsel %vm754, %v1239, %v1240
        %v1242 = vrot.slane %v1235, 2
        %v1243 = vsel %vm754, %v1240, %v1242
        %1244 = vrot.lane.b32.xlu0 %v1241, 124
        %v1245 = vpop.permute.xlu0 %1244
        %1246 = vrot.lane.b32.xlu0 %v1243, 124
        %v1247 = vpop.permute.xlu0 %1246
        %v1250 = vadd.f32 %v1230, %v1245
        %v1251 = vadd.f32 %v1231, %v1247
        %v1252 = vstv %s300
        %v1253 = vmul.f32 %v1252, %v722
        %v1254 = vmul.f32 %v1252, %v723
        %v1255 = vmul.f32 %v1252, %v724
        %v1259 = vrot.slane %v1253, 3
        %v1260 = vrot.slane %v1254, 3
        %v1261 = vsel %vm771, %v1259, %v1260
        %v1262 = vrot.slane %v1255, 3
        %v1263 = vsel %vm771, %v1260, %v1262
        %1264 = vrot.lane.b32.xlu0 %v1261, 124
        %v1265 = vpop.permute.xlu0 %1264
        %1266 = vrot.lane.b32.xlu0 %v1263, 124
        %v1267 = vpop.permute.xlu0 %1266
        %v1270 = vadd.f32 %v1250, %v1265
        %v1271 = vadd.f32 %v1251, %v1267
        %v1272 = vstv %s307
        %v1273 = vmul.f32 %v1272, %v722
        %v1274 = vmul.f32 %v1272, %v723
        %v1275 = vmul.f32 %v1272, %v724
        %v1279 = vrot.slane %v1273, 4
        %v1280 = vrot.slane %v1274, 4
        %v1281 = vsel %vm788, %v1279, %v1280
        %v1282 = vrot.slane %v1275, 4
        %v1283 = vsel %vm788, %v1280, %v1282
        %1284 = vrot.lane.b32.xlu0 %v1281, 124
        %v1285 = vpop.permute.xlu0 %1284
        %1286 = vrot.lane.b32.xlu0 %v1283, 124
        %v1287 = vpop.permute.xlu0 %1286
        %v1290 = vadd.f32 %v1270, %v1285
        %v1291 = vadd.f32 %v1271, %v1287
        %v1292 = vstv %s314
        %v1293 = vmul.f32 %v1292, %v722
        %v1294 = vmul.f32 %v1292, %v723
        %v1295 = vmul.f32 %v1292, %v724
        %v1299 = vrot.slane %v1293, 5
        %v1300 = vrot.slane %v1294, 5
        %v1301 = vsel %vm805, %v1299, %v1300
        %v1302 = vrot.slane %v1295, 5
        %v1303 = vsel %vm805, %v1300, %v1302
        %1304 = vrot.lane.b32.xlu0 %v1301, 124
        %v1305 = vpop.permute.xlu0 %1304
        %1306 = vrot.lane.b32.xlu0 %v1303, 124
        %v1307 = vpop.permute.xlu0 %1306
        %v1310 = vadd.f32 %v1290, %v1305
        %v1311 = vadd.f32 %v1291, %v1307
        %v1312 = vstv %s321
        %v1313 = vmul.f32 %v1312, %v722
        %v1314 = vmul.f32 %v1312, %v723
        %v1315 = vmul.f32 %v1312, %v724
        %v1319 = vrot.slane %v1313, 6
        %v1320 = vrot.slane %v1314, 6
        %v1321 = vsel %vm822, %v1319, %v1320
        %v1322 = vrot.slane %v1315, 6
        %v1323 = vsel %vm822, %v1320, %v1322
        %1324 = vrot.lane.b32.xlu0 %v1321, 124
        %v1325 = vpop.permute.xlu0 %1324
        %1326 = vrot.lane.b32.xlu0 %v1323, 124
        %v1327 = vpop.permute.xlu0 %1326
        %v1330 = vadd.f32 %v1310, %v1325
        %v1331 = vadd.f32 %v1311, %v1327
        %v1332 = vstv %s280
        %v1333 = vmul.f32 %v1332, %v722
        %v1334 = vmul.f32 %v1332, %v723
        %1337 = vrot.lane.b32.xlu0 %v1333, 124
        %v1338 = vpop.permute.xlu0 %1337
        %1339 = vrot.lane.b32.xlu0 %v1334, 124
        %v1340 = vpop.permute.xlu0 %1339
        %v1343 = vadd.f32 %v1197, %v1338
        %v1344 = vadd.f32 %v1198, %v1340
        %v1345 = vstv %s287
        %v1346 = vmul.f32 %v1345, %v722
        %v1347 = vmul.f32 %v1345, %v723
        %v1348 = vmul.f32 %v1345, %v724
        %v1352 = vrot.slane %v1346, 1
        %v1353 = vrot.slane %v1347, 1
        %v1354 = vsel %vm737, %v1352, %v1353
        %v1355 = vrot.slane %v1348, 1
        %v1356 = vsel %vm737, %v1353, %v1355
        %1357 = vrot.lane.b32.xlu0 %v1354, 124
        %v1358 = vpop.permute.xlu0 %1357
        %1359 = vrot.lane.b32.xlu0 %v1356, 124
        %v1360 = vpop.permute.xlu0 %1359
        %v1363 = vadd.f32 %v1343, %v1358
        %v1364 = vadd.f32 %v1344, %v1360
        %v1365 = vstv %s294
        %v1366 = vmul.f32 %v1365, %v722
        %v1367 = vmul.f32 %v1365, %v723
        %v1368 = vmul.f32 %v1365, %v724
        %v1372 = vrot.slane %v1366, 2
        %v1373 = vrot.slane %v1367, 2
        %v1374 = vsel %vm754, %v1372, %v1373
        %v1375 = vrot.slane %v1368, 2
        %v1376 = vsel %vm754, %v1373, %v1375
        %1377 = vrot.lane.b32.xlu0 %v1374, 124
        %v1378 = vpop.permute.xlu0 %1377
        %1379 = vrot.lane.b32.xlu0 %v1376, 124
        %v1380 = vpop.permute.xlu0 %1379
        %v1383 = vadd.f32 %v1363, %v1378
        %v1384 = vadd.f32 %v1364, %v1380
        %v1385 = vstv %s301
        %v1386 = vmul.f32 %v1385, %v722
        %v1387 = vmul.f32 %v1385, %v723
        %v1388 = vmul.f32 %v1385, %v724
        %v1392 = vrot.slane %v1386, 3
        %v1393 = vrot.slane %v1387, 3
        %v1394 = vsel %vm771, %v1392, %v1393
        %v1395 = vrot.slane %v1388, 3
        %v1396 = vsel %vm771, %v1393, %v1395
        %1397 = vrot.lane.b32.xlu0 %v1394, 124
        %v1398 = vpop.permute.xlu0 %1397
        %1399 = vrot.lane.b32.xlu0 %v1396, 124
        %v1400 = vpop.permute.xlu0 %1399
        %v1403 = vadd.f32 %v1383, %v1398
        %v1404 = vadd.f32 %v1384, %v1400
        %v1405 = vstv %s308
        %v1406 = vmul.f32 %v1405, %v722
        %v1407 = vmul.f32 %v1405, %v723
        %v1408 = vmul.f32 %v1405, %v724
        %v1412 = vrot.slane %v1406, 4
        %v1413 = vrot.slane %v1407, 4
        %v1414 = vsel %vm788, %v1412, %v1413
        %v1415 = vrot.slane %v1408, 4
        %v1416 = vsel %vm788, %v1413, %v1415
        %1417 = vrot.lane.b32.xlu0 %v1414, 124
        %v1418 = vpop.permute.xlu0 %1417
        %1419 = vrot.lane.b32.xlu0 %v1416, 124
        %v1420 = vpop.permute.xlu0 %1419
        %v1423 = vadd.f32 %v1403, %v1418
        %v1424 = vadd.f32 %v1404, %v1420
        %v1425 = vstv %s315
        %v1426 = vmul.f32 %v1425, %v722
        %v1427 = vmul.f32 %v1425, %v723
        %v1428 = vmul.f32 %v1425, %v724
        %v1432 = vrot.slane %v1426, 5
        %v1433 = vrot.slane %v1427, 5
        %v1434 = vsel %vm805, %v1432, %v1433
        %v1435 = vrot.slane %v1428, 5
        %v1436 = vsel %vm805, %v1433, %v1435
        %1437 = vrot.lane.b32.xlu0 %v1434, 124
        %v1438 = vpop.permute.xlu0 %1437
        %1439 = vrot.lane.b32.xlu0 %v1436, 124
        %v1440 = vpop.permute.xlu0 %1439
        %v1443 = vadd.f32 %v1423, %v1438
        %v1444 = vadd.f32 %v1424, %v1440
        %v1445 = vstv %s322
        %v1446 = vmul.f32 %v1445, %v722
        %v1447 = vmul.f32 %v1445, %v723
        %v1448 = vmul.f32 %v1445, %v724
        %v1452 = vrot.slane %v1446, 6
        %v1453 = vrot.slane %v1447, 6
        %v1454 = vsel %vm822, %v1452, %v1453
        %v1455 = vrot.slane %v1448, 6
        %v1456 = vsel %vm822, %v1453, %v1455
        %1457 = vrot.lane.b32.xlu0 %v1454, 124
        %v1458 = vpop.permute.xlu0 %1457
        %1459 = vrot.lane.b32.xlu0 %v1456, 124
        %v1460 = vpop.permute.xlu0 %1459
        %v1463 = vadd.f32 %v1443, %v1458
        %v1464 = vadd.f32 %v1444, %v1460
        %v1465 = vstv %s281
        %v1466 = vmul.f32 %v1465, %v722
        %v1467 = vmul.f32 %v1465, %v723
        %1470 = vrot.lane.b32.xlu0 %v1466, 122
        %v1471 = vpop.permute.xlu0 %1470
        %1472 = vrot.lane.b32.xlu0 %v1467, 122
        %v1473 = vpop.permute.xlu0 %1472
        %v1476 = vadd.f32 %v1330, %v1471
        %v1477 = vadd.f32 %v1331, %v1473
        %v1478 = vstv %s288
        %v1479 = vmul.f32 %v1478, %v722
        %v1480 = vmul.f32 %v1478, %v723
        %v1481 = vmul.f32 %v1478, %v724
        %v1485 = vrot.slane %v1479, 1
        %v1486 = vrot.slane %v1480, 1
        %v1487 = vsel %vm737, %v1485, %v1486
        %v1488 = vrot.slane %v1481, 1
        %v1489 = vsel %vm737, %v1486, %v1488
        %1490 = vrot.lane.b32.xlu0 %v1487, 122
        %v1491 = vpop.permute.xlu0 %1490
        %1492 = vrot.lane.b32.xlu0 %v1489, 122
        %v1493 = vpop.permute.xlu0 %1492
        %v1496 = vadd.f32 %v1476, %v1491
        %v1497 = vadd.f32 %v1477, %v1493
        %v1498 = vstv %s295
        %v1499 = vmul.f32 %v1498, %v722
        %v1500 = vmul.f32 %v1498, %v723
        %v1501 = vmul.f32 %v1498, %v724
        %v1505 = vrot.slane %v1499, 2
        %v1506 = vrot.slane %v1500, 2
        %v1507 = vsel %vm754, %v1505, %v1506
        %v1508 = vrot.slane %v1501, 2
        %v1509 = vsel %vm754, %v1506, %v1508
        %1510 = vrot.lane.b32.xlu0 %v1507, 122
        %v1511 = vpop.permute.xlu0 %1510
        %1512 = vrot.lane.b32.xlu0 %v1509, 122
        %v1513 = vpop.permute.xlu0 %1512
        %v1516 = vadd.f32 %v1496, %v1511
        %v1517 = vadd.f32 %v1497, %v1513
        %v1518 = vstv %s302
        %v1519 = vmul.f32 %v1518, %v722
        %v1520 = vmul.f32 %v1518, %v723
        %v1521 = vmul.f32 %v1518, %v724
        %v1525 = vrot.slane %v1519, 3
        %v1526 = vrot.slane %v1520, 3
        %v1527 = vsel %vm771, %v1525, %v1526
        %v1528 = vrot.slane %v1521, 3
        %v1529 = vsel %vm771, %v1526, %v1528
        %1530 = vrot.lane.b32.xlu0 %v1527, 122
        %v1531 = vpop.permute.xlu0 %1530
        %1532 = vrot.lane.b32.xlu0 %v1529, 122
        %v1533 = vpop.permute.xlu0 %1532
        %v1536 = vadd.f32 %v1516, %v1531
        %v1537 = vadd.f32 %v1517, %v1533
        %v1538 = vstv %s309
        %v1539 = vmul.f32 %v1538, %v722
        %v1540 = vmul.f32 %v1538, %v723
        %v1541 = vmul.f32 %v1538, %v724
        %v1545 = vrot.slane %v1539, 4
        %v1546 = vrot.slane %v1540, 4
        %v1547 = vsel %vm788, %v1545, %v1546
        %v1548 = vrot.slane %v1541, 4
        %v1549 = vsel %vm788, %v1546, %v1548
        %1550 = vrot.lane.b32.xlu0 %v1547, 122
        %v1551 = vpop.permute.xlu0 %1550
        %1552 = vrot.lane.b32.xlu0 %v1549, 122
        %v1553 = vpop.permute.xlu0 %1552
        %v1556 = vadd.f32 %v1536, %v1551
        %v1557 = vadd.f32 %v1537, %v1553
        %v1558 = vstv %s316
        %v1559 = vmul.f32 %v1558, %v722
        %v1560 = vmul.f32 %v1558, %v723
        %v1561 = vmul.f32 %v1558, %v724
        %v1565 = vrot.slane %v1559, 5
        %v1566 = vrot.slane %v1560, 5
        %v1567 = vsel %vm805, %v1565, %v1566
        %v1568 = vrot.slane %v1561, 5
        %v1569 = vsel %vm805, %v1566, %v1568
        %1570 = vrot.lane.b32.xlu0 %v1567, 122
        %v1571 = vpop.permute.xlu0 %1570
        %1572 = vrot.lane.b32.xlu0 %v1569, 122
        %v1573 = vpop.permute.xlu0 %1572
        %v1576 = vadd.f32 %v1556, %v1571
        %v1577 = vadd.f32 %v1557, %v1573
        %v1578 = vstv %s323
        %v1579 = vmul.f32 %v1578, %v722
        %v1580 = vmul.f32 %v1578, %v723
        %v1581 = vmul.f32 %v1578, %v724
        %v1585 = vrot.slane %v1579, 6
        %v1586 = vrot.slane %v1580, 6
        %v1587 = vsel %vm822, %v1585, %v1586
        %v1588 = vrot.slane %v1581, 6
        %v1589 = vsel %vm822, %v1586, %v1588
        %1590 = vrot.lane.b32.xlu0 %v1587, 122
        %v1591 = vpop.permute.xlu0 %1590
        %1592 = vrot.lane.b32.xlu0 %v1589, 122
        %v1593 = vpop.permute.xlu0 %1592
        %v1596 = vadd.f32 %v1576, %v1591
        %v1597 = vadd.f32 %v1577, %v1593
        %v1598 = vld [vmem:[%s420] sm:$0xff]
        %v1599 = vld [vmem:[%s420 + $0x8] sm:$0xff]
        %v1600 = vld [vmem:[%s420 + $0x10] sm:$0x3f]
        %v1601 = vstv %s324
        %v1602 = vmul.f32 %v1601, %v1598
        %v1603 = vmul.f32 %v1601, %v1599
        %v1604 = vadd.f32 %v1602, 0.0
        %v1605 = vadd.f32 %v1603, 0.0
        %v1606 = vstv %s331
        %v1607 = vmul.f32 %v1606, %v1598
        %v1608 = vmul.f32 %v1606, %v1599
        %v1609 = vmul.f32 %v1606, %v1600
        %v1613 = vrot.slane %v1607, 1
        %v1614 = vrot.slane %v1608, 1
        %v1615 = vsel %vm737, %v1613, %v1614
        %v1616 = vrot.slane %v1609, 1
        %v1617 = vsel %vm737, %v1614, %v1616
        %v1620 = vadd.f32 %v1604, %v1615
        %v1621 = vadd.f32 %v1605, %v1617
        %v1622 = vstv %s338
        %v1623 = vmul.f32 %v1622, %v1598
        %v1624 = vmul.f32 %v1622, %v1599
        %v1625 = vmul.f32 %v1622, %v1600
        %v1629 = vrot.slane %v1623, 2
        %v1630 = vrot.slane %v1624, 2
        %v1631 = vsel %vm754, %v1629, %v1630
        %v1632 = vrot.slane %v1625, 2
        %v1633 = vsel %vm754, %v1630, %v1632
        %v1636 = vadd.f32 %v1620, %v1631
        %v1637 = vadd.f32 %v1621, %v1633
        %v1638 = vstv %s345
        %v1639 = vmul.f32 %v1638, %v1598
        %v1640 = vmul.f32 %v1638, %v1599
        %v1641 = vmul.f32 %v1638, %v1600
        %v1645 = vrot.slane %v1639, 3
        %v1646 = vrot.slane %v1640, 3
        %v1647 = vsel %vm771, %v1645, %v1646
        %v1648 = vrot.slane %v1641, 3
        %v1649 = vsel %vm771, %v1646, %v1648
        %v1652 = vadd.f32 %v1636, %v1647
        %v1653 = vadd.f32 %v1637, %v1649
        %v1654 = vstv %s352
        %v1655 = vmul.f32 %v1654, %v1598
        %v1656 = vmul.f32 %v1654, %v1599
        %v1657 = vmul.f32 %v1654, %v1600
        %v1661 = vrot.slane %v1655, 4
        %v1662 = vrot.slane %v1656, 4
        %v1663 = vsel %vm788, %v1661, %v1662
        %v1664 = vrot.slane %v1657, 4
        %v1665 = vsel %vm788, %v1662, %v1664
        %v1668 = vadd.f32 %v1652, %v1663
        %v1669 = vadd.f32 %v1653, %v1665
        %v1670 = vstv %s359
        %v1671 = vmul.f32 %v1670, %v1598
        %v1672 = vmul.f32 %v1670, %v1599
        %v1673 = vmul.f32 %v1670, %v1600
        %v1677 = vrot.slane %v1671, 5
        %v1678 = vrot.slane %v1672, 5
        %v1679 = vsel %vm805, %v1677, %v1678
        %v1680 = vrot.slane %v1673, 5
        %v1681 = vsel %vm805, %v1678, %v1680
        %v1684 = vadd.f32 %v1668, %v1679
        %v1685 = vadd.f32 %v1669, %v1681
        %v1686 = vstv %s366
        %v1687 = vmul.f32 %v1686, %v1598
        %v1688 = vmul.f32 %v1686, %v1599
        %v1689 = vmul.f32 %v1686, %v1600
        %v1693 = vrot.slane %v1687, 6
        %v1694 = vrot.slane %v1688, 6
        %v1695 = vsel %vm822, %v1693, %v1694
        %v1696 = vrot.slane %v1689, 6
        %v1697 = vsel %vm822, %v1694, %v1696
        %v1700 = vadd.f32 %v1684, %v1695
        %v1701 = vadd.f32 %v1685, %v1697
        %v1702 = vstv %s325
        %v1703 = vmul.f32 %v1702, %v1598
        %v1704 = vmul.f32 %v1702, %v1599
        %v1705 = vadd.f32 %v1703, 0.0
        %v1706 = vadd.f32 %v1704, 0.0
        %v1707 = vstv %s332
        %v1708 = vmul.f32 %v1707, %v1598
        %v1709 = vmul.f32 %v1707, %v1599
        %v1710 = vmul.f32 %v1707, %v1600
        %v1714 = vrot.slane %v1708, 1
        %v1715 = vrot.slane %v1709, 1
        %v1716 = vsel %vm737, %v1714, %v1715
        %v1717 = vrot.slane %v1710, 1
        %v1718 = vsel %vm737, %v1715, %v1717
        %v1721 = vadd.f32 %v1705, %v1716
        %v1722 = vadd.f32 %v1706, %v1718
        %v1723 = vstv %s339
        %v1724 = vmul.f32 %v1723, %v1598
        %v1725 = vmul.f32 %v1723, %v1599
        %v1726 = vmul.f32 %v1723, %v1600
        %v1730 = vrot.slane %v1724, 2
        %v1731 = vrot.slane %v1725, 2
        %v1732 = vsel %vm754, %v1730, %v1731
        %v1733 = vrot.slane %v1726, 2
        %v1734 = vsel %vm754, %v1731, %v1733
        %v1737 = vadd.f32 %v1721, %v1732
        %v1738 = vadd.f32 %v1722, %v1734
        %v1739 = vstv %s346
        %v1740 = vmul.f32 %v1739, %v1598
        %v1741 = vmul.f32 %v1739, %v1599
        %v1742 = vmul.f32 %v1739, %v1600
        %v1746 = vrot.slane %v1740, 3
        %v1747 = vrot.slane %v1741, 3
        %v1748 = vsel %vm771, %v1746, %v1747
        %v1749 = vrot.slane %v1742, 3
        %v1750 = vsel %vm771, %v1747, %v1749
        %v1753 = vadd.f32 %v1737, %v1748
        %v1754 = vadd.f32 %v1738, %v1750
        %v1755 = vstv %s353
        %v1756 = vmul.f32 %v1755, %v1598
        %v1757 = vmul.f32 %v1755, %v1599
        %v1758 = vmul.f32 %v1755, %v1600
        %v1762 = vrot.slane %v1756, 4
        %v1763 = vrot.slane %v1757, 4
        %v1764 = vsel %vm788, %v1762, %v1763
        %v1765 = vrot.slane %v1758, 4
        %v1766 = vsel %vm788, %v1763, %v1765
        %v1769 = vadd.f32 %v1753, %v1764
        %v1770 = vadd.f32 %v1754, %v1766
        %v1771 = vstv %s360
        %v1772 = vmul.f32 %v1771, %v1598
        %v1773 = vmul.f32 %v1771, %v1599
        %v1774 = vmul.f32 %v1771, %v1600
        %v1778 = vrot.slane %v1772, 5
        %v1779 = vrot.slane %v1773, 5
        %v1780 = vsel %vm805, %v1778, %v1779
        %v1781 = vrot.slane %v1774, 5
        %v1782 = vsel %vm805, %v1779, %v1781
        %v1785 = vadd.f32 %v1769, %v1780
        %v1786 = vadd.f32 %v1770, %v1782
        %v1787 = vstv %s367
        %v1788 = vmul.f32 %v1787, %v1598
        %v1789 = vmul.f32 %v1787, %v1599
        %v1790 = vmul.f32 %v1787, %v1600
        %v1794 = vrot.slane %v1788, 6
        %v1795 = vrot.slane %v1789, 6
        %v1796 = vsel %vm822, %v1794, %v1795
        %v1797 = vrot.slane %v1790, 6
        %v1798 = vsel %vm822, %v1795, %v1797
        %v1801 = vadd.f32 %v1785, %v1796
        %v1802 = vadd.f32 %v1786, %v1798
        %v1803 = vstv %s326
        %v1804 = vmul.f32 %v1803, %v1598
        %v1805 = vmul.f32 %v1803, %v1599
        %1808 = vrot.lane.b32.xlu0 %v1804, 126
        %v1809 = vpop.permute.xlu0 %1808
        %1810 = vrot.lane.b32.xlu0 %v1805, 126
        %v1811 = vpop.permute.xlu0 %1810
        %v1814 = vadd.f32 %v1700, %v1809
        %v1815 = vadd.f32 %v1701, %v1811
        %v1816 = vstv %s333
        %v1817 = vmul.f32 %v1816, %v1598
        %v1818 = vmul.f32 %v1816, %v1599
        %v1819 = vmul.f32 %v1816, %v1600
        %v1823 = vrot.slane %v1817, 1
        %v1824 = vrot.slane %v1818, 1
        %v1825 = vsel %vm737, %v1823, %v1824
        %v1826 = vrot.slane %v1819, 1
        %v1827 = vsel %vm737, %v1824, %v1826
        %1828 = vrot.lane.b32.xlu0 %v1825, 126
        %v1829 = vpop.permute.xlu0 %1828
        %1830 = vrot.lane.b32.xlu0 %v1827, 126
        %v1831 = vpop.permute.xlu0 %1830
        %v1834 = vadd.f32 %v1814, %v1829
        %v1835 = vadd.f32 %v1815, %v1831
        %v1836 = vstv %s340
        %v1837 = vmul.f32 %v1836, %v1598
        %v1838 = vmul.f32 %v1836, %v1599
        %v1839 = vmul.f32 %v1836, %v1600
        %v1843 = vrot.slane %v1837, 2
        %v1844 = vrot.slane %v1838, 2
        %v1845 = vsel %vm754, %v1843, %v1844
        %v1846 = vrot.slane %v1839, 2
        %v1847 = vsel %vm754, %v1844, %v1846
        %1848 = vrot.lane.b32.xlu0 %v1845, 126
        %v1849 = vpop.permute.xlu0 %1848
        %1850 = vrot.lane.b32.xlu0 %v1847, 126
        %v1851 = vpop.permute.xlu0 %1850
        %v1854 = vadd.f32 %v1834, %v1849
        %v1855 = vadd.f32 %v1835, %v1851
        %v1856 = vstv %s347
        %v1857 = vmul.f32 %v1856, %v1598
        %v1858 = vmul.f32 %v1856, %v1599
        %v1859 = vmul.f32 %v1856, %v1600
        %v1863 = vrot.slane %v1857, 3
        %v1864 = vrot.slane %v1858, 3
        %v1865 = vsel %vm771, %v1863, %v1864
        %v1866 = vrot.slane %v1859, 3
        %v1867 = vsel %vm771, %v1864, %v1866
        %1868 = vrot.lane.b32.xlu0 %v1865, 126
        %v1869 = vpop.permute.xlu0 %1868
        %1870 = vrot.lane.b32.xlu0 %v1867, 126
        %v1871 = vpop.permute.xlu0 %1870
        %v1874 = vadd.f32 %v1854, %v1869
        %v1875 = vadd.f32 %v1855, %v1871
        %v1876 = vstv %s354
        %v1877 = vmul.f32 %v1876, %v1598
        %v1878 = vmul.f32 %v1876, %v1599
        %v1879 = vmul.f32 %v1876, %v1600
        %v1883 = vrot.slane %v1877, 4
        %v1884 = vrot.slane %v1878, 4
        %v1885 = vsel %vm788, %v1883, %v1884
        %v1886 = vrot.slane %v1879, 4
        %v1887 = vsel %vm788, %v1884, %v1886
        %1888 = vrot.lane.b32.xlu0 %v1885, 126
        %v1889 = vpop.permute.xlu0 %1888
        %1890 = vrot.lane.b32.xlu0 %v1887, 126
        %v1891 = vpop.permute.xlu0 %1890
        %v1894 = vadd.f32 %v1874, %v1889
        %v1895 = vadd.f32 %v1875, %v1891
        %v1896 = vstv %s361
        %v1897 = vmul.f32 %v1896, %v1598
        %v1898 = vmul.f32 %v1896, %v1599
        %v1899 = vmul.f32 %v1896, %v1600
        %v1903 = vrot.slane %v1897, 5
        %v1904 = vrot.slane %v1898, 5
        %v1905 = vsel %vm805, %v1903, %v1904
        %v1906 = vrot.slane %v1899, 5
        %v1907 = vsel %vm805, %v1904, %v1906
        %1908 = vrot.lane.b32.xlu0 %v1905, 126
        %v1909 = vpop.permute.xlu0 %1908
        %1910 = vrot.lane.b32.xlu0 %v1907, 126
        %v1911 = vpop.permute.xlu0 %1910
        %v1914 = vadd.f32 %v1894, %v1909
        %v1915 = vadd.f32 %v1895, %v1911
        %v1916 = vstv %s368
        %v1917 = vmul.f32 %v1916, %v1598
        %v1918 = vmul.f32 %v1916, %v1599
        %v1919 = vmul.f32 %v1916, %v1600
        %v1923 = vrot.slane %v1917, 6
        %v1924 = vrot.slane %v1918, 6
        %v1925 = vsel %vm822, %v1923, %v1924
        %v1926 = vrot.slane %v1919, 6
        %v1927 = vsel %vm822, %v1924, %v1926
        %1928 = vrot.lane.b32.xlu0 %v1925, 126
        %v1929 = vpop.permute.xlu0 %1928
        %1930 = vrot.lane.b32.xlu0 %v1927, 126
        %v1931 = vpop.permute.xlu0 %1930
        %v1934 = vadd.f32 %v1914, %v1929
        %v1935 = vadd.f32 %v1915, %v1931
        %v1936 = vstv %s327
        %v1937 = vmul.f32 %v1936, %v1598
        %v1938 = vmul.f32 %v1936, %v1599
        %1941 = vrot.lane.b32.xlu0 %v1937, 126
        %v1942 = vpop.permute.xlu0 %1941
        %1943 = vrot.lane.b32.xlu0 %v1938, 126
        %v1944 = vpop.permute.xlu0 %1943
        %v1947 = vadd.f32 %v1801, %v1942
        %v1948 = vadd.f32 %v1802, %v1944
        %v1949 = vstv %s334
        %v1950 = vmul.f32 %v1949, %v1598
        %v1951 = vmul.f32 %v1949, %v1599
        %v1952 = vmul.f32 %v1949, %v1600
        %v1956 = vrot.slane %v1950, 1
        %v1957 = vrot.slane %v1951, 1
        %v1958 = vsel %vm737, %v1956, %v1957
        %v1959 = vrot.slane %v1952, 1
        %v1960 = vsel %vm737, %v1957, %v1959
        %1961 = vrot.lane.b32.xlu0 %v1958, 126
        %v1962 = vpop.permute.xlu0 %1961
        %1963 = vrot.lane.b32.xlu0 %v1960, 126
        %v1964 = vpop.permute.xlu0 %1963
        %v1967 = vadd.f32 %v1947, %v1962
        %v1968 = vadd.f32 %v1948, %v1964
        %v1969 = vstv %s341
        %v1970 = vmul.f32 %v1969, %v1598
        %v1971 = vmul.f32 %v1969, %v1599
        %v1972 = vmul.f32 %v1969, %v1600
        %v1976 = vrot.slane %v1970, 2
        %v1977 = vrot.slane %v1971, 2
        %v1978 = vsel %vm754, %v1976, %v1977
        %v1979 = vrot.slane %v1972, 2
        %v1980 = vsel %vm754, %v1977, %v1979
        %1981 = vrot.lane.b32.xlu0 %v1978, 126
        %v1982 = vpop.permute.xlu0 %1981
        %1983 = vrot.lane.b32.xlu0 %v1980, 126
        %v1984 = vpop.permute.xlu0 %1983
        %v1987 = vadd.f32 %v1967, %v1982
        %v1988 = vadd.f32 %v1968, %v1984
        %v1989 = vstv %s348
        %v1990 = vmul.f32 %v1989, %v1598
        %v1991 = vmul.f32 %v1989, %v1599
        %v1992 = vmul.f32 %v1989, %v1600
        %v1996 = vrot.slane %v1990, 3
        %v1997 = vrot.slane %v1991, 3
        %v1998 = vsel %vm771, %v1996, %v1997
        %v1999 = vrot.slane %v1992, 3
        %v2000 = vsel %vm771, %v1997, %v1999
        %2001 = vrot.lane.b32.xlu0 %v1998, 126
        %v2002 = vpop.permute.xlu0 %2001
        %2003 = vrot.lane.b32.xlu0 %v2000, 126
        %v2004 = vpop.permute.xlu0 %2003
        %v2007 = vadd.f32 %v1987, %v2002
        %v2008 = vadd.f32 %v1988, %v2004
        %v2009 = vstv %s355
        %v2010 = vmul.f32 %v2009, %v1598
        %v2011 = vmul.f32 %v2009, %v1599
        %v2012 = vmul.f32 %v2009, %v1600
        %v2016 = vrot.slane %v2010, 4
        %v2017 = vrot.slane %v2011, 4
        %v2018 = vsel %vm788, %v2016, %v2017
        %v2019 = vrot.slane %v2012, 4
        %v2020 = vsel %vm788, %v2017, %v2019
        %2021 = vrot.lane.b32.xlu0 %v2018, 126
        %v2022 = vpop.permute.xlu0 %2021
        %2023 = vrot.lane.b32.xlu0 %v2020, 126
        %v2024 = vpop.permute.xlu0 %2023
        %v2027 = vadd.f32 %v2007, %v2022
        %v2028 = vadd.f32 %v2008, %v2024
        %v2029 = vstv %s362
        %v2030 = vmul.f32 %v2029, %v1598
        %v2031 = vmul.f32 %v2029, %v1599
        %v2032 = vmul.f32 %v2029, %v1600
        %v2036 = vrot.slane %v2030, 5
        %v2037 = vrot.slane %v2031, 5
        %v2038 = vsel %vm805, %v2036, %v2037
        %v2039 = vrot.slane %v2032, 5
        %v2040 = vsel %vm805, %v2037, %v2039
        %2041 = vrot.lane.b32.xlu0 %v2038, 126
        %v2042 = vpop.permute.xlu0 %2041
        %2043 = vrot.lane.b32.xlu0 %v2040, 126
        %v2044 = vpop.permute.xlu0 %2043
        %v2047 = vadd.f32 %v2027, %v2042
        %v2048 = vadd.f32 %v2028, %v2044
        %v2049 = vstv %s369
        %v2050 = vmul.f32 %v2049, %v1598
        %v2051 = vmul.f32 %v2049, %v1599
        %v2052 = vmul.f32 %v2049, %v1600
        %v2056 = vrot.slane %v2050, 6
        %v2057 = vrot.slane %v2051, 6
        %v2058 = vsel %vm822, %v2056, %v2057
        %v2059 = vrot.slane %v2052, 6
        %v2060 = vsel %vm822, %v2057, %v2059
        %2061 = vrot.lane.b32.xlu0 %v2058, 126
        %v2062 = vpop.permute.xlu0 %2061
        %2063 = vrot.lane.b32.xlu0 %v2060, 126
        %v2064 = vpop.permute.xlu0 %2063
        %v2067 = vadd.f32 %v2047, %v2062
        %v2068 = vadd.f32 %v2048, %v2064
        %v2069 = vstv %s328
        %v2070 = vmul.f32 %v2069, %v1598
        %v2071 = vmul.f32 %v2069, %v1599
        %2074 = vrot.lane.b32.xlu0 %v2070, 124
        %v2075 = vpop.permute.xlu0 %2074
        %2076 = vrot.lane.b32.xlu0 %v2071, 124
        %v2077 = vpop.permute.xlu0 %2076
        %v2080 = vadd.f32 %v1934, %v2075
        %v2081 = vadd.f32 %v1935, %v2077
        %v2082 = vstv %s335
        %v2083 = vmul.f32 %v2082, %v1598
        %v2084 = vmul.f32 %v2082, %v1599
        %v2085 = vmul.f32 %v2082, %v1600
        %v2089 = vrot.slane %v2083, 1
        %v2090 = vrot.slane %v2084, 1
        %v2091 = vsel %vm737, %v2089, %v2090
        %v2092 = vrot.slane %v2085, 1
        %v2093 = vsel %vm737, %v2090, %v2092
        %2094 = vrot.lane.b32.xlu0 %v2091, 124
        %v2095 = vpop.permute.xlu0 %2094
        %2096 = vrot.lane.b32.xlu0 %v2093, 124
        %v2097 = vpop.permute.xlu0 %2096
        %v2100 = vadd.f32 %v2080, %v2095
        %v2101 = vadd.f32 %v2081, %v2097
        %v2102 = vstv %s342
        %v2103 = vmul.f32 %v2102, %v1598
        %v2104 = vmul.f32 %v2102, %v1599
        %v2105 = vmul.f32 %v2102, %v1600
        %v2109 = vrot.slane %v2103, 2
        %v2110 = vrot.slane %v2104, 2
        %v2111 = vsel %vm754, %v2109, %v2110
        %v2112 = vrot.slane %v2105, 2
        %v2113 = vsel %vm754, %v2110, %v2112
        %2114 = vrot.lane.b32.xlu0 %v2111, 124
        %v2115 = vpop.permute.xlu0 %2114
        %2116 = vrot.lane.b32.xlu0 %v2113, 124
        %v2117 = vpop.permute.xlu0 %2116
        %v2120 = vadd.f32 %v2100, %v2115
        %v2121 = vadd.f32 %v2101, %v2117
        %v2122 = vstv %s349
        %v2123 = vmul.f32 %v2122, %v1598
        %v2124 = vmul.f32 %v2122, %v1599
        %v2125 = vmul.f32 %v2122, %v1600
        %v2129 = vrot.slane %v2123, 3
        %v2130 = vrot.slane %v2124, 3
        %v2131 = vsel %vm771, %v2129, %v2130
        %v2132 = vrot.slane %v2125, 3
        %v2133 = vsel %vm771, %v2130, %v2132
        %2134 = vrot.lane.b32.xlu0 %v2131, 124
        %v2135 = vpop.permute.xlu0 %2134
        %2136 = vrot.lane.b32.xlu0 %v2133, 124
        %v2137 = vpop.permute.xlu0 %2136
        %v2140 = vadd.f32 %v2120, %v2135
        %v2141 = vadd.f32 %v2121, %v2137
        %v2142 = vstv %s356
        %v2143 = vmul.f32 %v2142, %v1598
        %v2144 = vmul.f32 %v2142, %v1599
        %v2145 = vmul.f32 %v2142, %v1600
        %v2149 = vrot.slane %v2143, 4
        %v2150 = vrot.slane %v2144, 4
        %v2151 = vsel %vm788, %v2149, %v2150
        %v2152 = vrot.slane %v2145, 4
        %v2153 = vsel %vm788, %v2150, %v2152
        %2154 = vrot.lane.b32.xlu0 %v2151, 124
        %v2155 = vpop.permute.xlu0 %2154
        %2156 = vrot.lane.b32.xlu0 %v2153, 124
        %v2157 = vpop.permute.xlu0 %2156
        %v2160 = vadd.f32 %v2140, %v2155
        %v2161 = vadd.f32 %v2141, %v2157
        %v2162 = vstv %s363
        %v2163 = vmul.f32 %v2162, %v1598
        %v2164 = vmul.f32 %v2162, %v1599
        %v2165 = vmul.f32 %v2162, %v1600
        %v2169 = vrot.slane %v2163, 5
        %v2170 = vrot.slane %v2164, 5
        %v2171 = vsel %vm805, %v2169, %v2170
        %v2172 = vrot.slane %v2165, 5
        %v2173 = vsel %vm805, %v2170, %v2172
        %2174 = vrot.lane.b32.xlu0 %v2171, 124
        %v2175 = vpop.permute.xlu0 %2174
        %2176 = vrot.lane.b32.xlu0 %v2173, 124
        %v2177 = vpop.permute.xlu0 %2176
        %v2180 = vadd.f32 %v2160, %v2175
        %v2181 = vadd.f32 %v2161, %v2177
        %v2182 = vstv %s370
        %v2183 = vmul.f32 %v2182, %v1598
        %v2184 = vmul.f32 %v2182, %v1599
        %v2185 = vmul.f32 %v2182, %v1600
        %v2189 = vrot.slane %v2183, 6
        %v2190 = vrot.slane %v2184, 6
        %v2191 = vsel %vm822, %v2189, %v2190
        %v2192 = vrot.slane %v2185, 6
        %v2193 = vsel %vm822, %v2190, %v2192
        %2194 = vrot.lane.b32.xlu0 %v2191, 124
        %v2195 = vpop.permute.xlu0 %2194
        %2196 = vrot.lane.b32.xlu0 %v2193, 124
        %v2197 = vpop.permute.xlu0 %2196
        %v2200 = vadd.f32 %v2180, %v2195
        %v2201 = vadd.f32 %v2181, %v2197
        %v2202 = vstv %s329
        %v2203 = vmul.f32 %v2202, %v1598
        %v2204 = vmul.f32 %v2202, %v1599
        %2207 = vrot.lane.b32.xlu0 %v2203, 124
        %v2208 = vpop.permute.xlu0 %2207
        %2209 = vrot.lane.b32.xlu0 %v2204, 124
        %v2210 = vpop.permute.xlu0 %2209
        %v2213 = vadd.f32 %v2067, %v2208
        %v2214 = vadd.f32 %v2068, %v2210
        %v2215 = vstv %s336
        %v2216 = vmul.f32 %v2215, %v1598
        %v2217 = vmul.f32 %v2215, %v1599
        %v2218 = vmul.f32 %v2215, %v1600
        %v2222 = vrot.slane %v2216, 1
        %v2223 = vrot.slane %v2217, 1
        %v2224 = vsel %vm737, %v2222, %v2223
        %v2225 = vrot.slane %v2218, 1
        %v2226 = vsel %vm737, %v2223, %v2225
        %2227 = vrot.lane.b32.xlu0 %v2224, 124
        %v2228 = vpop.permute.xlu0 %2227
        %2229 = vrot.lane.b32.xlu0 %v2226, 124
        %v2230 = vpop.permute.xlu0 %2229
        %v2233 = vadd.f32 %v2213, %v2228
        %v2234 = vadd.f32 %v2214, %v2230
        %v2235 = vstv %s343
        %v2236 = vmul.f32 %v2235, %v1598
        %v2237 = vmul.f32 %v2235, %v1599
        %v2238 = vmul.f32 %v2235, %v1600
        %v2242 = vrot.slane %v2236, 2
        %v2243 = vrot.slane %v2237, 2
        %v2244 = vsel %vm754, %v2242, %v2243
        %v2245 = vrot.slane %v2238, 2
        %v2246 = vsel %vm754, %v2243, %v2245
        %2247 = vrot.lane.b32.xlu0 %v2244, 124
        %v2248 = vpop.permute.xlu0 %2247
        %2249 = vrot.lane.b32.xlu0 %v2246, 124
        %v2250 = vpop.permute.xlu0 %2249
        %v2253 = vadd.f32 %v2233, %v2248
        %v2254 = vadd.f32 %v2234, %v2250
        %v2255 = vstv %s350
        %v2256 = vmul.f32 %v2255, %v1598
        %v2257 = vmul.f32 %v2255, %v1599
        %v2258 = vmul.f32 %v2255, %v1600
        %v2262 = vrot.slane %v2256, 3
        %v2263 = vrot.slane %v2257, 3
        %v2264 = vsel %vm771, %v2262, %v2263
        %v2265 = vrot.slane %v2258, 3
        %v2266 = vsel %vm771, %v2263, %v2265
        %2267 = vrot.lane.b32.xlu0 %v2264, 124
        %v2268 = vpop.permute.xlu0 %2267
        %2269 = vrot.lane.b32.xlu0 %v2266, 124
        %v2270 = vpop.permute.xlu0 %2269
        %v2273 = vadd.f32 %v2253, %v2268
        %v2274 = vadd.f32 %v2254, %v2270
        %v2275 = vstv %s357
        %v2276 = vmul.f32 %v2275, %v1598
        %v2277 = vmul.f32 %v2275, %v1599
        %v2278 = vmul.f32 %v2275, %v1600
        %v2282 = vrot.slane %v2276, 4
        %v2283 = vrot.slane %v2277, 4
        %v2284 = vsel %vm788, %v2282, %v2283
        %v2285 = vrot.slane %v2278, 4
        %v2286 = vsel %vm788, %v2283, %v2285
        %2287 = vrot.lane.b32.xlu0 %v2284, 124
        %v2288 = vpop.permute.xlu0 %2287
        %2289 = vrot.lane.b32.xlu0 %v2286, 124
        %v2290 = vpop.permute.xlu0 %2289
        %v2293 = vadd.f32 %v2273, %v2288
        %v2294 = vadd.f32 %v2274, %v2290
        %v2295 = vstv %s364
        %v2296 = vmul.f32 %v2295, %v1598
        %v2297 = vmul.f32 %v2295, %v1599
        %v2298 = vmul.f32 %v2295, %v1600
        %v2302 = vrot.slane %v2296, 5
        %v2303 = vrot.slane %v2297, 5
        %v2304 = vsel %vm805, %v2302, %v2303
        %v2305 = vrot.slane %v2298, 5
        %v2306 = vsel %vm805, %v2303, %v2305
        %2307 = vrot.lane.b32.xlu0 %v2304, 124
        %v2308 = vpop.permute.xlu0 %2307
        %2309 = vrot.lane.b32.xlu0 %v2306, 124
        %v2310 = vpop.permute.xlu0 %2309
        %v2313 = vadd.f32 %v2293, %v2308
        %v2314 = vadd.f32 %v2294, %v2310
        %v2315 = vstv %s371
        %v2316 = vmul.f32 %v2315, %v1598
        %v2317 = vmul.f32 %v2315, %v1599
        %v2318 = vmul.f32 %v2315, %v1600
        %v2322 = vrot.slane %v2316, 6
        %v2323 = vrot.slane %v2317, 6
        %v2324 = vsel %vm822, %v2322, %v2323
        %v2325 = vrot.slane %v2318, 6
        %v2326 = vsel %vm822, %v2323, %v2325
        %2327 = vrot.lane.b32.xlu0 %v2324, 124
        %v2328 = vpop.permute.xlu0 %2327
        %2329 = vrot.lane.b32.xlu0 %v2326, 124
        %v2330 = vpop.permute.xlu0 %2329
        %v2333 = vadd.f32 %v2313, %v2328
        %v2334 = vadd.f32 %v2314, %v2330
        %v2335 = vstv %s330
        %v2336 = vmul.f32 %v2335, %v1598
        %v2337 = vmul.f32 %v2335, %v1599
        %2340 = vrot.lane.b32.xlu0 %v2336, 122
        %v2341 = vpop.permute.xlu0 %2340
        %2342 = vrot.lane.b32.xlu0 %v2337, 122
        %v2343 = vpop.permute.xlu0 %2342
        %v2346 = vadd.f32 %v2200, %v2341
        %v2347 = vadd.f32 %v2201, %v2343
        %v2348 = vstv %s337
        %v2349 = vmul.f32 %v2348, %v1598
        %v2350 = vmul.f32 %v2348, %v1599
        %v2351 = vmul.f32 %v2348, %v1600
        %v2355 = vrot.slane %v2349, 1
        %v2356 = vrot.slane %v2350, 1
        %v2357 = vsel %vm737, %v2355, %v2356
        %v2358 = vrot.slane %v2351, 1
        %v2359 = vsel %vm737, %v2356, %v2358
        %2360 = vrot.lane.b32.xlu0 %v2357, 122
        %v2361 = vpop.permute.xlu0 %2360
        %2362 = vrot.lane.b32.xlu0 %v2359, 122
        %v2363 = vpop.permute.xlu0 %2362
        %v2366 = vadd.f32 %v2346, %v2361
        %v2367 = vadd.f32 %v2347, %v2363
        %v2368 = vstv %s344
        %v2369 = vmul.f32 %v2368, %v1598
        %v2370 = vmul.f32 %v2368, %v1599
        %v2371 = vmul.f32 %v2368, %v1600
        %v2375 = vrot.slane %v2369, 2
        %v2376 = vrot.slane %v2370, 2
        %v2377 = vsel %vm754, %v2375, %v2376
        %v2378 = vrot.slane %v2371, 2
        %v2379 = vsel %vm754, %v2376, %v2378
        %2380 = vrot.lane.b32.xlu0 %v2377, 122
        %v2381 = vpop.permute.xlu0 %2380
        %2382 = vrot.lane.b32.xlu0 %v2379, 122
        %v2383 = vpop.permute.xlu0 %2382
        %v2386 = vadd.f32 %v2366, %v2381
        %v2387 = vadd.f32 %v2367, %v2383
        %v2388 = vstv %s351
        %v2389 = vmul.f32 %v2388, %v1598
        %v2390 = vmul.f32 %v2388, %v1599
        %v2391 = vmul.f32 %v2388, %v1600
        %v2395 = vrot.slane %v2389, 3
        %v2396 = vrot.slane %v2390, 3
        %v2397 = vsel %vm771, %v2395, %v2396
        %v2398 = vrot.slane %v2391, 3
        %v2399 = vsel %vm771, %v2396, %v2398
        %2400 = vrot.lane.b32.xlu0 %v2397, 122
        %v2401 = vpop.permute.xlu0 %2400
        %2402 = vrot.lane.b32.xlu0 %v2399, 122
        %v2403 = vpop.permute.xlu0 %2402
        %v2406 = vadd.f32 %v2386, %v2401
        %v2407 = vadd.f32 %v2387, %v2403
        %v2408 = vstv %s358
        %v2409 = vmul.f32 %v2408, %v1598
        %v2410 = vmul.f32 %v2408, %v1599
        %v2411 = vmul.f32 %v2408, %v1600
        %v2415 = vrot.slane %v2409, 4
        %v2416 = vrot.slane %v2410, 4
        %v2417 = vsel %vm788, %v2415, %v2416
        %v2418 = vrot.slane %v2411, 4
        %v2419 = vsel %vm788, %v2416, %v2418
        %2420 = vrot.lane.b32.xlu0 %v2417, 122
        %v2421 = vpop.permute.xlu0 %2420
        %2422 = vrot.lane.b32.xlu0 %v2419, 122
        %v2423 = vpop.permute.xlu0 %2422
        %v2426 = vadd.f32 %v2406, %v2421
        %v2427 = vadd.f32 %v2407, %v2423
        %v2428 = vstv %s365
        %v2429 = vmul.f32 %v2428, %v1598
        %v2430 = vmul.f32 %v2428, %v1599
        %v2431 = vmul.f32 %v2428, %v1600
        %v2435 = vrot.slane %v2429, 5
        %v2436 = vrot.slane %v2430, 5
        %v2437 = vsel %vm805, %v2435, %v2436
        %v2438 = vrot.slane %v2431, 5
        %v2439 = vsel %vm805, %v2436, %v2438
        %2440 = vrot.lane.b32.xlu0 %v2437, 122
        %v2441 = vpop.permute.xlu0 %2440
        %2442 = vrot.lane.b32.xlu0 %v2439, 122
        %v2443 = vpop.permute.xlu0 %2442
        %v2446 = vadd.f32 %v2426, %v2441
        %v2447 = vadd.f32 %v2427, %v2443
        %v2448 = vstv %s372
        %v2449 = vmul.f32 %v2448, %v1598
        %v2450 = vmul.f32 %v2448, %v1599
        %v2451 = vmul.f32 %v2448, %v1600
        %v2455 = vrot.slane %v2449, 6
        %v2456 = vrot.slane %v2450, 6
        %v2457 = vsel %vm822, %v2455, %v2456
        %v2458 = vrot.slane %v2451, 6
        %v2459 = vsel %vm822, %v2456, %v2458
        %2460 = vrot.lane.b32.xlu0 %v2457, 122
        %v2461 = vpop.permute.xlu0 %2460
        %2462 = vrot.lane.b32.xlu0 %v2459, 122
        %v2463 = vpop.permute.xlu0 %2462
        %v2466 = vadd.f32 %v2446, %v2461
        %v2467 = vadd.f32 %v2447, %v2463
        %2470 = vrot.lane.b32.xlu0 %v1463, 127
        %v2471 = vpop.permute.xlu0 %2470
        %2472 = vrot.lane.b32.xlu0 %v1464, 127
        %v2473 = vpop.permute.xlu0 %2472
        %v2476 = vadd.f32 %v1596, %v2471
        %v2477 = vadd.f32 %v1597, %v2473
        %2480 = vrot.lane.b32.xlu0 %v2333, 127
        %v2481 = vpop.permute.xlu0 %2480
        %2482 = vrot.lane.b32.xlu0 %v2334, 127
        %v2483 = vpop.permute.xlu0 %2482
        %v2486 = vadd.f32 %v2466, %v2481
        %v2487 = vadd.f32 %v2467, %v2483
        %v2488 = vadd.f32 %v2476, %v2486
        %v2489 = vadd.f32 %v2477, %v2487
        %vm2490 = vcmask 122880
        %2491 = vst.msk [vmem:[#allocation3 + $0x2] sm:$0x1] %vm2490, %v2488
        %v2493 = vrot.slane %v2488, 5
        %v2494 = vrot.slane %v2493, 4
        %2495 = vrot.lane.b32.xlu0 %v2494, 16
        %v2496 = vpop.permute.xlu0 %2495
        %vm2498 = vcmask 254080
        %2499 = vst.msk [vmem:[#allocation3 + $0x2] sm:$0x1] %vm2498, %v2496
        %v2500 = vrot.slane %v2488, 6
        %v2501 = vrot.slane %v2500, 4
        %2502 = vrot.lane.b32.xlu0 %v2501, 32
        %v2503 = vpop.permute.xlu0 %2502
        %vm2505 = vcmask 385280
        %2506 = vst.msk [vmem:[#allocation3 + $0x2] sm:$0x1] %vm2505, %v2503
        %v2507 = vrot.slane %v2488, 7
        %v2508 = vrot.slane %v2507, 4
        %2509 = vrot.lane.b32.xlu0 %v2508, 48
        %v2510 = vpop.permute.xlu0 %2509
        %vm2512 = vcmask 516480
        %2513 = vst.msk [vmem:[#allocation3 + $0x2] sm:$0x1] %vm2512, %v2510
        %v2514 = vcombine.high %v2488, %v2488
        %2515 = vrot.lane.b32.xlu0 %v2514, 64
        %v2516 = vpop.permute.xlu0 %2515
        %vm2518 = vcmask 647680
        %2519 = vst.msk [vmem:[#allocation3 + $0x2] sm:$0x1] %vm2518, %v2516
        %v2520 = vrot.slane %v2514, 5
        %v2521 = vrot.slane %v2520, 4
        %2522 = vrot.lane.b32.xlu0 %v2521, 80
        %v2523 = vpop.permute.xlu0 %2522
        %vm2525 = vcmask 778880
        %2526 = vst.msk [vmem:[#allocation3 + $0x2] sm:$0x1] %vm2525, %v2523
        %v2527 = vrot.slane %v2514, 6
        %v2528 = vrot.slane %v2527, 4
        %2529 = vrot.lane.b32.xlu0 %v2528, 96
        %v2530 = vpop.permute.xlu0 %2529
        %vm2532 = vcmask 910080
        %2533 = vst.msk [vmem:[#allocation3 + $0x2] sm:$0x1] %vm2532, %v2530
        %v2534 = vrot.slane %v2514, 7
        %v2535 = vrot.slane %v2534, 4
        %2536 = vrot.lane.b32.xlu0 %v2535, 112
        %v2537 = vpop.permute.xlu0 %2536
        %vm2539 = vcmask 1041280
        %2540 = vst.msk [vmem:[#allocation3 + $0x2] sm:$0x1] %vm2539, %v2537
        %2541 = vst.msk [vmem:[#allocation3 + $0x6] sm:$0x1] %vm2490, %v2489
        %v2543 = vrot.slane %v2489, 5
        %v2544 = vrot.slane %v2543, 4
        %2545 = vrot.lane.b32.xlu0 %v2544, 16
        %v2546 = vpop.permute.xlu0 %2545
        %2548 = vst.msk [vmem:[#allocation3 + $0x6] sm:$0x1] %vm2498, %v2546
        %v2549 = vrot.slane %v2489, 6
        %v2550 = vrot.slane %v2549, 4
        %2551 = vrot.lane.b32.xlu0 %v2550, 32
        %v2552 = vpop.permute.xlu0 %2551
        %2554 = vst.msk [vmem:[#allocation3 + $0x6] sm:$0x1] %vm2505, %v2552
        %v2555 = vrot.slane %v2489, 7
        %v2556 = vrot.slane %v2555, 4
        %2557 = vrot.lane.b32.xlu0 %v2556, 48
        %v2558 = vpop.permute.xlu0 %2557
        %2560 = vst.msk [vmem:[#allocation3 + $0x6] sm:$0x1] %vm2512, %v2558
        %v2561 = vcombine.high %v2489, %v2489
        %2562 = vrot.lane.b32.xlu0 %v2561, 64
        %v2563 = vpop.permute.xlu0 %2562
        %2565 = vst.msk [vmem:[#allocation3 + $0x6] sm:$0x1] %vm2518, %v2563
        %v2566 = vrot.slane %v2561, 5
        %v2567 = vrot.slane %v2566, 4
        %2568 = vrot.lane.b32.xlu0 %v2567, 80
        %v2569 = vpop.permute.xlu0 %2568
        %2571 = vst.msk [vmem:[#allocation3 + $0x6] sm:$0x1] %vm2525, %v2569
        %v2572 = vrot.slane %v2561, 6
        %v2573 = vrot.slane %v2572, 4
        %2574 = vrot.lane.b32.xlu0 %v2573, 96
        %v2575 = vpop.permute.xlu0 %2574
        %2577 = vst.msk [vmem:[#allocation3 + $0x6] sm:$0x1] %vm2532, %v2575
        %v2578 = vrot.slane %v2561, 7
        %v2579 = vrot.slane %v2578, 4
        %2580 = vrot.lane.b32.xlu0 %v2579, 112
        %v2581 = vpop.permute.xlu0 %2580
        %2583 = vst.msk [vmem:[#allocation3 + $0x6] sm:$0x1] %vm2539, %v2581
        %s2584 = scalar_lea.vmem [#allocation3], 2
        %v2585 = vld [vmem:[%s2584] ss:$4 sm:$0x3]
        %v2586 = vstv %s373
        %v2587 = vadd.f32 %v2585, %v2586
        %v2588 = vld [vmem:[%s239] sm:$0x3]
        %v2589 = vadd.f32 %v2587, %v2588
        %2590 = vst.msk [vmem:[%s274] sm:$0x3] %vm396, %v2589
        %v2591 = vmax.f32 %v2589, -60.0
        %v2592 = vsub.f32 0.0, %v2591
        %v2593 = vmul.f32 %v2592, 1.442695
        %v2594 = vpow.pop %v2593
        %v2595 = vadd.f32 %v2594, 1.0
        %v2596 = vrcp.pop %v2595
        %v2597 = vld [vmem:[%s230] ss:$4 sm:$0x3]
        %v2598 = vmul.f32 %v2597, %v2596
        %2599 = vst.msk [vmem:[%s267] ss:$4 sm:$0x3] %vm396, %v2598
        %v2600 = vld [vmem:[%s381] ss:$4 sm:$0x3]
        %v2601 = vmul.f32 %v2600, %v2596
        %s2602 = scalar_lea.vmem %s267, 1 [#allocation11]
        %2603 = vst.msk [vmem:[%s2602] ss:$4 sm:$0x3] %vm396, %v2601
        %v2604 = vld [vmem:[%s385] ss:$4 sm:$0x3]
        %v2605 = vmul.f32 %v2604, %v2596
        %s2606 = scalar_lea.vmem %s267, 2 [#allocation11]
        %2607 = vst.msk [vmem:[%s2606] ss:$4 sm:$0x3] %vm396, %v2605
        %v2608 = vld [vmem:[%s389] ss:$4 sm:$0x3]
        %v2609 = vmul.f32 %v2608, %v2596
        %s2610 = scalar_lea.vmem %s267, 3 [#allocation11]
        %2611 = vst.msk [vmem:[%s2610] ss:$4 sm:$0x3] %vm396, %v2609
        %s2612 = sand.u32 %s110, 1
        %s2613 = scalar_lea.sflag [#allocation6], %s2612
        %s2614 = sand.u32 %s110, 1
        %s2615 = smul.addr %s2614, 8
        %s2616 = scalar_lea.vmem [#allocation11], %s2615
        %s2617 = sand.u32 %s136, 1
        %s2618 = scalar_lea.sflag [#allocation13], %s2617
        %s2619 = sand.u32 %s136, 1
        %s2620 = smul.addr %s2619, 2
        %s2621 = scalar_lea.vmem [#allocation12], %s2620
        // Predicated region
        $region45: #{tpu_custom_call.1} parent=31 // pred_check
          %p2622 = pneg %p120
        $region46: #{tpu_custom_call.1} parent=31 // pred_check_branch
          %2624 = sbr.rel (%p2622) target = $region48
        $region47: #{tpu_custom_call.1} parent=31 // pred_region
          %s2626 = ssub.s32 128, 128
          %2627 = vsyncadd %s2613, %s2626
          %s2628 = smul.addr %s29, 2
          %s2629 = smul.addr %s2628, 64
          %s2630 = scalar_lea.hbm %s3, %s2629
          %s2632 = sshll.u32 %s2616, 4
          %s2633 = int_to_ptr.vmem [resolvable:$true] %s2632
          %2635 = dma.vmem_to_hbm [thread:$0]  %s2633, 128, %s2630, %s2613
        $region48: #{tpu_custom_call.1} parent=31 // pred_fallthru
          _
        // Predicated region
        $region49: #{tpu_custom_call.1} parent=31 // pred_check
          %p2636 = pneg %p146
        $region50: #{tpu_custom_call.1} parent=31 // pred_check_branch
          %2638 = sbr.rel (%p2636) target = $region52
        $region51: #{tpu_custom_call.1} parent=31 // pred_region
          %s2640 = ssub.s32 32, 32
          %2641 = vsyncadd %s2618, %s2640
          %s2642 = smul.addr %s29, 2
          %s2643 = smul.addr %s2642, 16
          %s2644 = scalar_lea.hbm %s4, %s2643
          %s2646 = sshll.u32 %s2621, 4
          %s2647 = int_to_ptr.vmem [resolvable:$true] %s2646
          %2649 = dma.vmem_to_hbm [thread:$0]  %s2647, 32, %s2644, %s2618
        $region52: #{tpu_custom_call.1} parent=31 // pred_fallthru
          _
      $region32: #{tpu_custom_call.1} parent=5 // pred_fallthru
        _
      %p2650 = scmp.le.s32.totalorder 2, %s24
      // Predicated region
      $region53: #{tpu_custom_call.1} parent=5 // pred_check
        %p2651 = pneg %p2650
      $region54: #{tpu_custom_call.1} parent=5 // pred_check_branch
        %2653 = sbr.rel (%p2651) target = $region56
      $region55: #{tpu_custom_call.1} parent=5 // pred_region
        %s2654 = ssub.s32 %s24, 2
        // Predicated region
        $region57: #{tpu_custom_call.1} parent=55 // pred_check
          %p2655 = pneg %p126
        $region58: #{tpu_custom_call.1} parent=55 // pred_check_branch
          %2657 = sbr.rel (%p2655) target = $region60
        $region59: #{tpu_custom_call.1} parent=55 // pred_region
          %s2658 = sand.u32 %s111, 1
          %s2659 = scalar_lea.sflag [#allocation6], %s2658
          %s2660 = sand.u32 %s111, 1
          %s2661 = smul.addr %s2660, 8
          %s2662 = scalar_lea.vmem [#allocation11], %s2661
          %2663 = dma.done %s2659, 128
        $region60: #{tpu_custom_call.1} parent=55 // pred_fallthru
          _
        // Predicated region
        $region61: #{tpu_custom_call.1} parent=55 // pred_check
          %p2664 = pneg %p152
        $region62: #{tpu_custom_call.1} parent=55 // pred_check_branch
          %2666 = sbr.rel (%p2664) target = $region64
        $region63: #{tpu_custom_call.1} parent=55 // pred_region
          %s2667 = sand.u32 %s137, 1
          %s2668 = scalar_lea.sflag [#allocation13], %s2667
          %s2669 = sand.u32 %s137, 1
          %s2670 = smul.addr %s2669, 2
          %s2671 = scalar_lea.vmem [#allocation12], %s2670
          %2672 = dma.done %s2668, 32
        $region64: #{tpu_custom_call.1} parent=55 // pred_fallthru
          _
      $region56: #{tpu_custom_call.1} parent=5 // pred_fallthru
        _
    $region6: #{tpu_custom_call.1} parent=1 // loop_footer
      %s28 = sadd.s32 1, %s24
    $region7: #{tpu_custom_call.1} parent=1 // loop_footer_branch
      %23 = sbr.rel target = $region3
    $region8: #{tpu_custom_call.1} parent=1 // loop_exit
      _
    %2673 = vsyncpa [#allocation5], 1
    %s2674 = scalar_lea.sflag [#allocation5], 1
    %2675 = vsyncpa %s2674, 1
    %2676 = vsyncpa [#allocation10], 1
    %s2677 = scalar_lea.sflag [#allocation10], 1
    %2678 = vsyncpa %s2677, 1
    %2679 = vsyncpa [#allocation6], 1
    %s2680 = scalar_lea.sflag [#allocation6], 1
    %2681 = vsyncpa %s2680, 1
    %2682 = vsyncpa [#allocation13], 1
    %s2683 = scalar_lea.sflag [#allocation13], 1
    %2684 = vsyncpa %s2683, 1
    %2685 = vsyncpa [#allocation7], 1
    %s2686 = scalar_lea.sflag [#allocation7], 1
    %2687 = vsyncpa %s2686, 1

</llo_original>
